<compile_context>
chip_gen: v5e
topology: v5e:2x2
jax: 0.10.0
libtpu: 0.0.40
codegen_flags: <defaults>
</compile_context>

<pallas_src>
import functools
import math

import jax
import jax.numpy as jnp
from jax.experimental import pallas as pl
from jax.experimental.pallas import tpu as pltpu


CONFIG = dict(
    vocab_size=64,
    max_position=32,
    type_vocab_size=2,
    hidden_size=128,
    num_heads=4,
    num_layers=2,
    intermediate_size=256,
    num_classes=3,
    dropout_parameter=0.1,  # eval-mode dropout -> identity
)

LOGIT_PAD = 128   # lane-dense padded width of the classifier head output
LN_EPS = 1e-12


# ----------------------------------------------------------------------------- #
# In-kernel helpers (plain jnp; traced inside the Pallas kernel)
# ----------------------------------------------------------------------------- #
def _layernorm(x, g, b, eps):
    mean = jnp.mean(x, axis=-1, keepdims=True)
    cen = x - mean
    var = jnp.mean(cen * cen, axis=-1, keepdims=True)
    return cen * jax.lax.rsqrt(var + eps) * g + b


def _gelu(y):
    # tanh-approximate GELU (BERT reference uses erf-GELU; numerically very close)
    return 0.5 * y * (1.0 + jnp.tanh(0.7978845608028654 * (y + 0.044715 * y * y * y)))


# ----------------------------------------------------------------------------- #
# Fully fused kernel: embed-LN -> L x (QKV, MHA, out-proj, add+LN, FFN, add+LN)
#                     -> pooler(tanh) -> dropout(identity) -> padded linear head
# ----------------------------------------------------------------------------- #
def _fused_bert_kernel(emb_ref, bias_ref, embg_ref, embb_ref,
                       wqkv_ref, bqkv_ref, wo_ref, bo_ref, ln1g_ref, ln1b_ref,
                       w1_ref, b1_ref, w2_ref, b2_ref, ln2g_ref, ln2b_ref,
                       pw_ref, pb_ref, ow_ref, ob_ref,
                       logits_ref,
                       h_scr, ctx_scr,
                       *, batch, seq, num_heads, head_dim, eps):
    lyr = pl.program_id(0)
    n_layers = pl.num_programs(0)
    H = num_heads * head_dim
    scale = 1.0 / math.sqrt(head_dim)

    # --- layer 0 prologue: embedding LayerNorm into the resident VMEM stream ---
    @pl.when(lyr == 0)
    def _():
        e = emb_ref[...].astype(jnp.float32)
        h_scr[...] = _layernorm(e, embg_ref[...], embb_ref[...], eps)

    x = h_scr[...]                                        # (B*S, H) f32 residual stream
    bias = bias_ref[...].astype(jnp.float32)              # (B, 1, S) additive key mask
    bias_full = jnp.broadcast_to(bias, (batch, seq, seq))  # hoisted (shared by all heads)

    # Fused QKV projection: one (B*S,H) @ (H,3H) MXU pass (bf16 in, f32 accumulate).
    qkv = jnp.dot(x.astype(jnp.bfloat16), wqkv_ref[...],
                  preferred_element_type=jnp.float32) + bqkv_ref[...]        # (B*S, 3H)

    # Multi-head attention: per head, batched over B (single-batch-dim dot_general);
    # each head's context is written straight to its lane offset in VMEM (no concat).
    for h in range(num_heads):
        q_h = qkv[:, h * head_dim:(h + 1) * head_dim].reshape(batch, seq, head_dim)
        k_h = qkv[:, H + h * head_dim:H + (h + 1) * head_dim].reshape(batch, seq, head_dim)
        v_h = qkv[:, 2 * H + h * head_dim:2 * H + (h + 1) * head_dim].reshape(
            batch, seq, head_dim)
        s = jnp.einsum("bqd,bkd->bqk",
                       q_h.astype(jnp.bfloat16), k_h.astype(jnp.bfloat16),
                       preferred_element_type=jnp.float32) * scale + bias_full  # (B,S,S)
        s = s - jnp.max(s, axis=-1, keepdims=True)
        e = jnp.exp(s)
        p = e * pl.reciprocal(jnp.sum(e, axis=-1, keepdims=True), approx=True)
        c = jnp.einsum("bqk,bkd->bqd",
                       p.astype(jnp.bfloat16), v_h.astype(jnp.bfloat16),
                       preferred_element_type=jnp.float32)                   # (B,S,hd)
        ctx_scr[:, h * head_dim:(h + 1) * head_dim] = c.reshape(batch * seq, head_dim)

    # Output projection + residual + LayerNorm.
    attn = jnp.dot(ctx_scr[...].astype(jnp.bfloat16), wo_ref[...],
                   preferred_element_type=jnp.float32) + bo_ref[...]
    h1 = _layernorm(attn + x, ln1g_ref[...], ln1b_ref[...], eps)

    # Feed-forward (GELU) + residual + LayerNorm.
    ff = jnp.dot(h1.astype(jnp.bfloat16), w1_ref[...],
                 preferred_element_type=jnp.float32) + b1_ref[...]
    ff = _gelu(ff)
    ff2 = jnp.dot(ff.astype(jnp.bfloat16), w2_ref[...],
                  preferred_element_type=jnp.float32) + b2_ref[...]
    h2 = _layernorm(ff2 + h1, ln2g_ref[...], ln2b_ref[...], eps)

    h_scr[...] = h2   # residual stream stays resident in VMEM across layers

    # --- last-layer epilogue: BERT pooler tanh, dropout (eval identity), head ---
    @pl.when(lyr == n_layers - 1)
    def _():
        # CLS token row of every batch element (rows 0, S, 2S, ...).
        cls = jnp.concatenate([h2[b * seq:b * seq + 1, :] for b in range(batch)], axis=0)
        pooled = jnp.tanh(jnp.dot(cls.astype(jnp.bfloat16), pw_ref[...],
                                  preferred_element_type=jnp.float32) + pb_ref[...])
        # Dropout is eval-mode identity.
        # TODO(synk): training-mode dropout would use pltpu.prng_seed / prng_random_bits.
        logits = jnp.dot(pooled.astype(jnp.bfloat16), ow_ref[...],
                         preferred_element_type=jnp.float32) + ob_ref[...]   # (B, 128)
        logits_ref[...] = logits.astype(logits_ref.dtype)


def pallas_sentiment_fused(emb2d, bias, p, *, batch, seq, num_heads, eps=LN_EPS):
    BS, H = emb2d.shape
    L = p["wqkv"].shape[0]
    FF = p["w1"].shape[2]
    N = p["out_w_pad"].shape[1]
    head_dim = H // num_heads

    def const2(shape):
        return pl.BlockSpec(shape, lambda l: (0, 0))

    def const3(shape):
        return pl.BlockSpec(shape, lambda l: (0, 0, 0))

    def per_layer(shape2):
        # leading L axis indexed by the grid, squeezed out of the kernel Ref
        return pl.BlockSpec((None,) + shape2, lambda l: (l, 0, 0))

    return pl.pallas_call(
        functools.partial(_fused_bert_kernel, batch=batch, seq=seq,
                          num_heads=num_heads, head_dim=head_dim, eps=eps),
        out_shape=jax.ShapeDtypeStruct((batch, N), jnp.float32),
        grid=(L,),
        in_specs=[
            const2((BS, H)),                                # pre-LN embeddings
            const3((batch, 1, seq)),                        # additive attention mask
            const2((1, H)), const2((1, H)),                 # embedding LN gamma/beta
            per_layer((H, 3 * H)), per_layer((1, 3 * H)),   # wqkv, bqkv (fused q|k|v)
            per_layer((H, H)),     per_layer((1, H)),       # wo, bo
            per_layer((1, H)),     per_layer((1, H)),       # ln1 gamma/beta
            per_layer((H, FF)),    per_layer((1, FF)),      # w1, b1
            per_layer((FF, H)),    per_layer((1, H)),       # w2, b2
            per_layer((1, H)),     per_layer((1, H)),       # ln2 gamma/beta
            const2((H, H)),        const2((1, H)),          # pooler W, b
            const2((H, N)),        const2((1, N)),          # padded classifier head W, b
        ],
        out_specs=pl.BlockSpec((batch, N), lambda l: (0, 0)),
        scratch_shapes=[
            pltpu.VMEM((BS, H), jnp.float32),   # resident residual stream
            pltpu.VMEM((BS, H), jnp.float32),   # per-layer attention context
        ],
        compiler_params=pltpu.CompilerParams(dimension_semantics=("arbitrary",)),
    )(emb2d, bias,
      p["emb_ln_g"], p["emb_ln_b"],
      p["wqkv"], p["bqkv"], p["wo"], p["bo"], p["ln1_g"], p["ln1_b"],
      p["w1"], p["b1"], p["w2"], p["b2"], p["ln2_g"], p["ln2_b"],
      p["pooler_w"], p["pooler_b"], p["out_w_pad"], p["out_b_pad"])


# ----------------------------------------------------------------------------- #
# Deterministic parameter init (BertModel.from_pretrained is a checkpoint load)
# ----------------------------------------------------------------------------- #
def init_params(key, cfg):
    H = cfg["hidden_size"]
    FF = cfg["intermediate_size"]
    C = cfg["num_classes"]
    L = cfg["num_layers"]

    def nrm(k, shape, scale=0.02, dtype=jnp.float32):
        return (scale * jax.random.normal(k, shape, dtype=jnp.float32)).astype(dtype)

    keys = iter(jax.random.split(key, 16))

    out_w = nrm(next(keys), (H, C))
    out_w_pad = (jnp.zeros((H, LOGIT_PAD), jnp.float32)
                 .at[:, :C].set(out_w).astype(jnp.bfloat16))   # lane-dense padded head

    return {
        "word_emb": nrm(next(keys), (cfg["vocab_size"], H)),
        "pos_emb": nrm(next(keys), (cfg["max_position"], H)),
        "type_emb": nrm(next(keys), (cfg["type_vocab_size"], H)),
        "emb_ln_g": jnp.ones((1, H), jnp.float32),
        "emb_ln_b": jnp.zeros((1, H), jnp.float32),
        "pooler_w": nrm(next(keys), (H, H), dtype=jnp.bfloat16),
        "pooler_b": jnp.zeros((1, H), jnp.float32),
        "out_w_pad": out_w_pad,
        "out_b_pad": jnp.zeros((1, LOGIT_PAD), jnp.float32),
        # per-layer weights stacked on a leading L axis (one fused pallas_call)
        "wqkv": nrm(next(keys), (L, H, 3 * H), dtype=jnp.bfloat16),
        "bqkv": jnp.zeros((L, 1, 3 * H), jnp.float32),
        "wo": nrm(next(keys), (L, H, H), dtype=jnp.bfloat16),
        "bo": jnp.zeros((L, 1, H), jnp.float32),
        "ln1_g": jnp.ones((L, 1, H), jnp.float32),
        "ln1_b": jnp.zeros((L, 1, H), jnp.float32),
        "w1": nrm(next(keys), (L, H, FF), dtype=jnp.bfloat16),
        "b1": jnp.zeros((L, 1, FF), jnp.float32),
        "w2": nrm(next(keys), (L, FF, H), dtype=jnp.bfloat16),
        "b2": jnp.zeros((L, 1, H), jnp.float32),
        "ln2_g": jnp.ones((L, 1, H), jnp.float32),
        "ln2_b": jnp.zeros((L, 1, H), jnp.float32),
    }


# ----------------------------------------------------------------------------- #
# Forward pass (mirrors SentimentClassifier.forward)
# ----------------------------------------------------------------------------- #
def sentiment_classifier_forward(params, input_ids, attention_mask, cfg):
    B, S = input_ids.shape
    H = cfg["hidden_size"]

    # BERT embeddings: gathers are glue (left to XLA); everything after runs in Pallas.
    emb = (
        jnp.take(params["word_emb"], input_ids, axis=0)
        + params["pos_emb"][None, :S, :]
        + params["type_emb"][0][None, None, :]
    )  # (B, S, H)
    emb2d = emb.reshape(B * S, H)

    # Additive attention-mask bias: one copy per batch element (heads share it).
    bias = ((1.0 - attention_mask.astype(jnp.float32)) * -1e4).reshape(B, 1, S)

    logits_pad = pallas_sentiment_fused(emb2d, bias, params,
                                        batch=B, seq=S, num_heads=cfg["num_heads"])
    return logits_pad[:, :cfg["num_classes"]]             # slice padded lanes back to C


# ----------------------------------------------------------------------------- #
# Main
# ----------------------------------------------------------------------------- #
if __name__ == "__main__":
    cfg = CONFIG
    B, S = 2, 16

    key = jax.random.PRNGKey(0)
    k_param, k_ids = jax.random.split(key)

    params = init_params(k_param, cfg)
    input_ids = jax.random.randint(k_ids, (B, S), 0, cfg["vocab_size"], dtype=jnp.int32)
    # batch 0 fully attended, batch 1 has 4 padding positions
    attention_mask = (jnp.arange(S)[None, :] < jnp.array([S, S - 4])[:, None]).astype(jnp.int32)

    fwd = jax.jit(functools.partial(sentiment_classifier_forward, cfg=cfg))
    logits = fwd(params, input_ids, attention_mask)
    jax.block_until_ready(logits)

    assert logits.shape == (B, cfg["num_classes"])
    print("KERNEL_OK")
</pallas_src>

<mosaic_0001>
module attributes {stable_mosaic.version = 11 : i64} {
  func.func @_fused_bert_kernel(%arg0: i32, %arg1: memref<32x128xf32, #tpu.memory_space<vmem>>, %arg2: memref<2x1x16xf32, #tpu.memory_space<vmem>>, %arg3: memref<1x128xf32, #tpu.memory_space<vmem>>, %arg4: memref<1x128xf32, #tpu.memory_space<vmem>>, %arg5: memref<1x128x384xbf16, #tpu.memory_space<vmem>>, %arg6: memref<1x1x384xf32, #tpu.memory_space<vmem>>, %arg7: memref<1x128x128xbf16, #tpu.memory_space<vmem>>, %arg8: memref<1x1x128xf32, #tpu.memory_space<vmem>>, %arg9: memref<1x1x128xf32, #tpu.memory_space<vmem>>, %arg10: memref<1x1x128xf32, #tpu.memory_space<vmem>>, %arg11: memref<1x128x256xbf16, #tpu.memory_space<vmem>>, %arg12: memref<1x1x256xf32, #tpu.memory_space<vmem>>, %arg13: memref<1x256x128xbf16, #tpu.memory_space<vmem>>, %arg14: memref<1x1x128xf32, #tpu.memory_space<vmem>>, %arg15: memref<1x1x128xf32, #tpu.memory_space<vmem>>, %arg16: memref<1x1x128xf32, #tpu.memory_space<vmem>>, %arg17: memref<128x128xbf16, #tpu.memory_space<vmem>>, %arg18: memref<1x128xf32, #tpu.memory_space<vmem>>, %arg19: memref<128x128xbf16, #tpu.memory_space<vmem>>, %arg20: memref<1x128xf32, #tpu.memory_space<vmem>>, %arg21: memref<2x128xf32, #tpu.memory_space<vmem>>, %arg22: memref<32x128xf32, #tpu.memory_space<vmem>>, %arg23: memref<32x128xf32, #tpu.memory_space<vmem>>) attributes {dimension_semantics = [#tpu.dimension_semantics<arbitrary>], iteration_bounds = array<i64: 2>, scalar_prefetch = 0 : i64, scratch_operands = 2 : i64, tpu.core_type = #tpu.core_type<tc>, window_params = [{pipeline_mode = #tpu.pipeline_mode<synchronous>, transform_indices = @transform_0, window_bounds = array<i64: 32, 128>}, {pipeline_mode = #tpu.pipeline_mode<synchronous>, transform_indices = @transform_1, window_bounds = array<i64: 2, 1, 16>}, {pipeline_mode = #tpu.pipeline_mode<synchronous>, transform_indices = @transform_2, window_bounds = array<i64: 1, 128>}, {pipeline_mode = #tpu.pipeline_mode<synchronous>, transform_indices = @transform_3, window_bounds = array<i64: 1, 128>}, {transform_indices = @transform_4, window_bounds = array<i64: 1, 128, 384>}, {transform_indices = @transform_5, window_bounds = array<i64: 1, 1, 384>}, {transform_indices = @transform_6, window_bounds = array<i64: 1, 128, 128>}, {transform_indices = @transform_7, window_bounds = array<i64: 1, 1, 128>}, {transform_indices = @transform_8, window_bounds = array<i64: 1, 1, 128>}, {transform_indices = @transform_9, window_bounds = array<i64: 1, 1, 128>}, {transform_indices = @transform_10, window_bounds = array<i64: 1, 128, 256>}, {transform_indices = @transform_11, window_bounds = array<i64: 1, 1, 256>}, {transform_indices = @transform_12, window_bounds = array<i64: 1, 256, 128>}, {transform_indices = @transform_13, window_bounds = array<i64: 1, 1, 128>}, {transform_indices = @transform_14, window_bounds = array<i64: 1, 1, 128>}, {transform_indices = @transform_15, window_bounds = array<i64: 1, 1, 128>}, {pipeline_mode = #tpu.pipeline_mode<synchronous>, transform_indices = @transform_16, window_bounds = array<i64: 128, 128>}, {pipeline_mode = #tpu.pipeline_mode<synchronous>, transform_indices = @transform_17, window_bounds = array<i64: 1, 128>}, {pipeline_mode = #tpu.pipeline_mode<synchronous>, transform_indices = @transform_18, window_bounds = array<i64: 128, 128>}, {pipeline_mode = #tpu.pipeline_mode<synchronous>, transform_indices = @transform_19, window_bounds = array<i64: 1, 128>}, {pipeline_mode = #tpu.pipeline_mode<synchronous>, transform_indices = @transform_20, window_bounds = array<i64: 2, 128>}]} {
    %c0_i32 = arith.constant 0 : i32
    %0 = arith.cmpi eq, %arg0, %c0_i32 : i32
    %1 = arith.extui %0 : i1 to i32
    %c0_i32_0 = arith.constant 0 : i32
    %2 = arith.cmpi ne, %1, %c0_i32_0 : i32
    scf.if %2 {
      %c0_88 = arith.constant 0 : index
      %c0_89 = arith.constant 0 : index
      %215 = vector.load %arg1[%c0_88, %c0_89] : memref<32x128xf32, #tpu.memory_space<vmem>>, vector<32x128xf32>
      %c0_90 = arith.constant 0 : index
      %c0_91 = arith.constant 0 : index
      %216 = vector.load %arg3[%c0_90, %c0_91] : memref<1x128xf32, #tpu.memory_space<vmem>>, vector<1x128xf32>
      %c0_92 = arith.constant 0 : index
      %c0_93 = arith.constant 0 : index
      %217 = vector.load %arg4[%c0_92, %c0_93] : memref<1x128xf32, #tpu.memory_space<vmem>>, vector<1x128xf32>
      %cst_94 = arith.constant dense<0.000000e+00> : vector<32xf32>
      %218 = vector.multi_reduction <add>, %215, %cst_94 [1] : vector<32x128xf32> to vector<32xf32>
      %219 = vector.shape_cast %218 : vector<32xf32> to vector<32x1xf32>
      %cst_95 = arith.constant 1.280000e+02 : f32
      %220 = vector.broadcast %cst_95 : f32 to vector<32x1xf32>
      %221 = arith.divf %219, %220 : vector<32x1xf32>
      %222 = vector.broadcast %221 : vector<32x1xf32> to vector<32x128xf32>
      %223 = arith.subf %215, %222 : vector<32x128xf32>
      %224 = arith.mulf %223, %223 : vector<32x128xf32>
      %cst_96 = arith.constant dense<0.000000e+00> : vector<32xf32>
      %225 = vector.multi_reduction <add>, %224, %cst_96 [1] : vector<32x128xf32> to vector<32xf32>
      %226 = vector.shape_cast %225 : vector<32xf32> to vector<32x1xf32>
      %cst_97 = arith.constant 1.280000e+02 : f32
      %227 = vector.broadcast %cst_97 : f32 to vector<32x1xf32>
      %228 = arith.divf %226, %227 : vector<32x1xf32>
      %cst_98 = arith.constant 9.99999996E-13 : f32
      %229 = vector.broadcast %cst_98 : f32 to vector<32x1xf32>
      %230 = arith.addf %228, %229 : vector<32x1xf32>
      %231 = math.rsqrt %230 : vector<32x1xf32>
      %232 = vector.broadcast %231 : vector<32x1xf32> to vector<32x128xf32>
      %233 = arith.mulf %223, %232 : vector<32x128xf32>
      %234 = vector.broadcast %216 : vector<1x128xf32> to vector<32x128xf32>
      %235 = arith.mulf %233, %234 : vector<32x128xf32>
      %236 = vector.broadcast %217 : vector<1x128xf32> to vector<32x128xf32>
      %237 = arith.addf %235, %236 : vector<32x128xf32>
      %c0_99 = arith.constant 0 : index
      %c0_100 = arith.constant 0 : index
      %238 = vector.load %arg22[%c0_99, %c0_100] : memref<32x128xf32, #tpu.memory_space<vmem>>, vector<32x128xf32>
      tpu.vector_store %arg22[%c0_99, %c0_100], %237 {strides = array<i32>} : memref<32x128xf32, #tpu.memory_space<vmem>>, vector<32x128xf32>,
    } else {
    }
    %c0 = arith.constant 0 : index
    %c0_1 = arith.constant 0 : index
    %3 = vector.load %arg22[%c0, %c0_1] : memref<32x128xf32, #tpu.memory_space<vmem>>, vector<32x128xf32>
    %c0_2 = arith.constant 0 : index
    %c0_3 = arith.constant 0 : index
    %c0_4 = arith.constant 0 : index
    %4 = vector.load %arg2[%c0_2, %c0_3, %c0_4] : memref<2x1x16xf32, #tpu.memory_space<vmem>>, vector<2x1x16xf32>
    %5 = vector.shape_cast %4 : vector<2x1x16xf32> to vector<2x1x16xf32>
    %6 = vector.broadcast %5 : vector<2x1x16xf32> to vector<2x16x16xf32>
    %7 = arith.truncf %3 : vector<32x128xf32> to vector<32x128xbf16>
    %c0_5 = arith.constant 0 : index
    %c0_6 = arith.constant 0 : index
    %c0_7 = arith.constant 0 : index
    %8 = vector.load %arg5[%c0_5, %c0_6, %c0_7] : memref<1x128x384xbf16, #tpu.memory_space<vmem>>, vector<1x128x384xbf16>
    %9 = vector.shape_cast %8 : vector<1x128x384xbf16> to vector<128x384xbf16>
    %cst = arith.constant dense<0.000000e+00> : vector<32x384xf32>
    %10 = tpu.matmul %7, %9, %cst {dimension_numbers = #tpu.dot_dimension_numbers<[1], [0], [0], [1], [0, 0, 1, 1], [], []>} : vector<32x128xbf16>, vector<128x384xbf16>, vector<32x384xf32> -> vector<32x384xf32>
    %c0_8 = arith.constant 0 : index
    %c0_9 = arith.constant 0 : index
    %c0_10 = arith.constant 0 : index
    %11 = vector.load %arg6[%c0_8, %c0_9, %c0_10] : memref<1x1x384xf32, #tpu.memory_space<vmem>>, vector<1x1x384xf32>
    %12 = vector.shape_cast %11 : vector<1x1x384xf32> to vector<1x384xf32>
    %13 = vector.broadcast %12 : vector<1x384xf32> to vector<32x384xf32>
    %14 = arith.addf %10, %13 : vector<32x384xf32>
    %15 = vector.extract_strided_slice %14 {offsets = [0, 0], sizes = [32, 32], strides = [1, 1]} : vector<32x384xf32> to vector<32x32xf32>
    %16 = vector.shape_cast %15 : vector<32x32xf32> to vector<2x16x32xf32>
    %17 = vector.extract_strided_slice %14 {offsets = [0, 128], sizes = [32, 32], strides = [1, 1]} : vector<32x384xf32> to vector<32x32xf32>
    %18 = vector.shape_cast %17 : vector<32x32xf32> to vector<2x16x32xf32>
    %19 = vector.extract_strided_slice %14 {offsets = [0, 256], sizes = [32, 32], strides = [1, 1]} : vector<32x384xf32> to vector<32x32xf32>
    %20 = vector.shape_cast %19 : vector<32x32xf32> to vector<2x16x32xf32>
    %21 = arith.truncf %16 : vector<2x16x32xf32> to vector<2x16x32xbf16>
    %22 = arith.truncf %18 : vector<2x16x32xf32> to vector<2x16x32xbf16>
    "tpu.trace_start"() <{level = 10 : i32, message = "bqd,bkd->bqk"}> : () -> ()
    %cst_11 = arith.constant dense<0.000000e+00> : vector<2x16x16xf32>
    %23 = tpu.matmul %21, %22, %cst_11 {dimension_numbers = #tpu.dot_dimension_numbers<[2], [2], [1], [1], [0, 0, 0, 1, 1, 1], [0], [0]>} : vector<2x16x32xbf16>, vector<2x16x32xbf16>, vector<2x16x16xf32> -> vector<2x16x16xf32>
    "tpu.trace_stop"() : () -> ()
    %cst_12 = arith.constant 0.176776692 : f32
    %24 = vector.broadcast %cst_12 : f32 to vector<2x16x16xf32>
    %25 = arith.mulf %23, %24 : vector<2x16x16xf32>
    %26 = arith.addf %25, %6 : vector<2x16x16xf32>
    %cst_13 = arith.constant dense<0xFF800000> : vector<2x16xf32>
    %27 = vector.multi_reduction <maximumf>, %26, %cst_13 [2] : vector<2x16x16xf32> to vector<2x16xf32>
    %28 = vector.shape_cast %27 : vector<2x16xf32> to vector<2x16x1xf32>
    %29 = vector.broadcast %28 : vector<2x16x1xf32> to vector<2x16x16xf32>
    %30 = arith.subf %26, %29 : vector<2x16x16xf32>
    %31 = math.exp %30 : vector<2x16x16xf32>
    %cst_14 = arith.constant dense<0.000000e+00> : vector<2x16xf32>
    %32 = vector.multi_reduction <add>, %31, %cst_14 [2] : vector<2x16x16xf32> to vector<2x16xf32>
    %33 = vector.shape_cast %32 : vector<2x16xf32> to vector<2x16x1xf32>
    %34 = tpu.reciprocal %33 {approx = true} : vector<2x16x1xf32> -> vector<2x16x1xf32>
    %35 = vector.broadcast %34 : vector<2x16x1xf32> to vector<2x16x16xf32>
    %36 = arith.mulf %31, %35 : vector<2x16x16xf32>
    %37 = arith.truncf %36 : vector<2x16x16xf32> to vector<2x16x16xbf16>
    %38 = arith.truncf %20 : vector<2x16x32xf32> to vector<2x16x32xbf16>
    "tpu.trace_start"() <{level = 10 : i32, message = "bqk,bkd->bqd"}> : () -> ()
    %cst_15 = arith.constant dense<0.000000e+00> : vector<2x16x32xf32>
    %39 = tpu.matmul %37, %38, %cst_15 {dimension_numbers = #tpu.dot_dimension_numbers<[2], [1], [1], [2], [0, 0, 0, 1, 1, 2], [0], [0]>} : vector<2x16x16xbf16>, vector<2x16x32xbf16>, vector<2x16x32xf32> -> vector<2x16x32xf32>
    "tpu.trace_stop"() : () -> ()
    %40 = vector.shape_cast %39 : vector<2x16x32xf32> to vector<32x32xf32>
    %c0_16 = arith.constant 0 : index
    %c0_17 = arith.constant 0 : index
    %41 = vector.load %arg23[%c0_16, %c0_17] : memref<32x128xf32, #tpu.memory_space<vmem>>, vector<32x32xf32>
    tpu.vector_store %arg23[%c0_16, %c0_17], %40 {strides = array<i32>} : memref<32x128xf32, #tpu.memory_space<vmem>>, vector<32x32xf32>,
    %42 = vector.extract_strided_slice %14 {offsets = [0, 32], sizes = [32, 32], strides = [1, 1]} : vector<32x384xf32> to vector<32x32xf32>
    %43 = vector.shape_cast %42 : vector<32x32xf32> to vector<2x16x32xf32>
    %44 = vector.extract_strided_slice %14 {offsets = [0, 160], sizes = [32, 32], strides = [1, 1]} : vector<32x384xf32> to vector<32x32xf32>
    %45 = vector.shape_cast %44 : vector<32x32xf32> to vector<2x16x32xf32>
    %46 = vector.extract_strided_slice %14 {offsets = [0, 288], sizes = [32, 32], strides = [1, 1]} : vector<32x384xf32> to vector<32x32xf32>
    %47 = vector.shape_cast %46 : vector<32x32xf32> to vector<2x16x32xf32>
    %48 = arith.truncf %43 : vector<2x16x32xf32> to vector<2x16x32xbf16>
    %49 = arith.truncf %45 : vector<2x16x32xf32> to vector<2x16x32xbf16>
    "tpu.trace_start"() <{level = 10 : i32, message = "bqd,bkd->bqk"}> : () -> ()
    %cst_18 = arith.constant dense<0.000000e+00> : vector<2x16x16xf32>
    %50 = tpu.matmul %48, %49, %cst_18 {dimension_numbers = #tpu.dot_dimension_numbers<[2], [2], [1], [1], [0, 0, 0, 1, 1, 1], [0], [0]>} : vector<2x16x32xbf16>, vector<2x16x32xbf16>, vector<2x16x16xf32> -> vector<2x16x16xf32>
    "tpu.trace_stop"() : () -> ()
    %cst_19 = arith.constant 0.176776692 : f32
    %51 = vector.broadcast %cst_19 : f32 to vector<2x16x16xf32>
    %52 = arith.mulf %50, %51 : vector<2x16x16xf32>
    %53 = arith.addf %52, %6 : vector<2x16x16xf32>
    %cst_20 = arith.constant dense<0xFF800000> : vector<2x16xf32>
    %54 = vector.multi_reduction <maximumf>, %53, %cst_20 [2] : vector<2x16x16xf32> to vector<2x16xf32>
    %55 = vector.shape_cast %54 : vector<2x16xf32> to vector<2x16x1xf32>
    %56 = vector.broadcast %55 : vector<2x16x1xf32> to vector<2x16x16xf32>
    %57 = arith.subf %53, %56 : vector<2x16x16xf32>
    %58 = math.exp %57 : vector<2x16x16xf32>
    %cst_21 = arith.constant dense<0.000000e+00> : vector<2x16xf32>
    %59 = vector.multi_reduction <add>, %58, %cst_21 [2] : vector<2x16x16xf32> to vector<2x16xf32>
    %60 = vector.shape_cast %59 : vector<2x16xf32> to vector<2x16x1xf32>
    %61 = tpu.reciprocal %60 {approx = true} : vector<2x16x1xf32> -> vector<2x16x1xf32>
    %62 = vector.broadcast %61 : vector<2x16x1xf32> to vector<2x16x16xf32>
    %63 = arith.mulf %58, %62 : vector<2x16x16xf32>
    %64 = arith.truncf %63 : vector<2x16x16xf32> to vector<2x16x16xbf16>
    %65 = arith.truncf %47 : vector<2x16x32xf32> to vector<2x16x32xbf16>
    "tpu.trace_start"() <{level = 10 : i32, message = "bqk,bkd->bqd"}> : () -> ()
    %cst_22 = arith.constant dense<0.000000e+00> : vector<2x16x32xf32>
    %66 = tpu.matmul %64, %65, %cst_22 {dimension_numbers = #tpu.dot_dimension_numbers<[2], [1], [1], [2], [0, 0, 0, 1, 1, 2], [0], [0]>} : vector<2x16x16xbf16>, vector<2x16x32xbf16>, vector<2x16x32xf32> -> vector<2x16x32xf32>
    "tpu.trace_stop"() : () -> ()
    %67 = vector.shape_cast %66 : vector<2x16x32xf32> to vector<32x32xf32>
    %c0_23 = arith.constant 0 : index
    %c32 = arith.constant 32 : index
    %68 = vector.load %arg23[%c0_23, %c32] : memref<32x128xf32, #tpu.memory_space<vmem>>, vector<32x32xf32>
    tpu.vector_store %arg23[%c0_23, %c32], %67 {strides = array<i32>} : memref<32x128xf32, #tpu.memory_space<vmem>>, vector<32x32xf32>,
    %69 = vector.extract_strided_slice %14 {offsets = [0, 64], sizes = [32, 32], strides = [1, 1]} : vector<32x384xf32> to vector<32x32xf32>
    %70 = vector.shape_cast %69 : vector<32x32xf32> to vector<2x16x32xf32>
    %71 = vector.extract_strided_slice %14 {offsets = [0, 192], sizes = [32, 32], strides = [1, 1]} : vector<32x384xf32> to vector<32x32xf32>
    %72 = vector.shape_cast %71 : vector<32x32xf32> to vector<2x16x32xf32>
    %73 = vector.extract_strided_slice %14 {offsets = [0, 320], sizes = [32, 32], strides = [1, 1]} : vector<32x384xf32> to vector<32x32xf32>
    %74 = vector.shape_cast %73 : vector<32x32xf32> to vector<2x16x32xf32>
    %75 = arith.truncf %70 : vector<2x16x32xf32> to vector<2x16x32xbf16>
    %76 = arith.truncf %72 : vector<2x16x32xf32> to vector<2x16x32xbf16>
    "tpu.trace_start"() <{level = 10 : i32, message = "bqd,bkd->bqk"}> : () -> ()
    %cst_24 = arith.constant dense<0.000000e+00> : vector<2x16x16xf32>
    %77 = tpu.matmul %75, %76, %cst_24 {dimension_numbers = #tpu.dot_dimension_numbers<[2], [2], [1], [1], [0, 0, 0, 1, 1, 1], [0], [0]>} : vector<2x16x32xbf16>, vector<2x16x32xbf16>, vector<2x16x16xf32> -> vector<2x16x16xf32>
    "tpu.trace_stop"() : () -> ()
    %cst_25 = arith.constant 0.176776692 : f32
    %78 = vector.broadcast %cst_25 : f32 to vector<2x16x16xf32>
    %79 = arith.mulf %77, %78 : vector<2x16x16xf32>
    %80 = arith.addf %79, %6 : vector<2x16x16xf32>
    %cst_26 = arith.constant dense<0xFF800000> : vector<2x16xf32>
    %81 = vector.multi_reduction <maximumf>, %80, %cst_26 [2] : vector<2x16x16xf32> to vector<2x16xf32>
    %82 = vector.shape_cast %81 : vector<2x16xf32> to vector<2x16x1xf32>
    %83 = vector.broadcast %82 : vector<2x16x1xf32> to vector<2x16x16xf32>
    %84 = arith.subf %80, %83 : vector<2x16x16xf32>
    %85 = math.exp %84 : vector<2x16x16xf32>
    %cst_27 = arith.constant dense<0.000000e+00> : vector<2x16xf32>
    %86 = vector.multi_reduction <add>, %85, %cst_27 [2] : vector<2x16x16xf32> to vector<2x16xf32>
    %87 = vector.shape_cast %86 : vector<2x16xf32> to vector<2x16x1xf32>
    %88 = tpu.reciprocal %87 {approx = true} : vector<2x16x1xf32> -> vector<2x16x1xf32>
    %89 = vector.broadcast %88 : vector<2x16x1xf32> to vector<2x16x16xf32>
    %90 = arith.mulf %85, %89 : vector<2x16x16xf32>
    %91 = arith.truncf %90 : vector<2x16x16xf32> to vector<2x16x16xbf16>
    %92 = arith.truncf %74 : vector<2x16x32xf32> to vector<2x16x32xbf16>
    "tpu.trace_start"() <{level = 10 : i32, message = "bqk,bkd->bqd"}> : () -> ()
    %cst_28 = arith.constant dense<0.000000e+00> : vector<2x16x32xf32>
    %93 = tpu.matmul %91, %92, %cst_28 {dimension_numbers = #tpu.dot_dimension_numbers<[2], [1], [1], [2], [0, 0, 0, 1, 1, 2], [0], [0]>} : vector<2x16x16xbf16>, vector<2x16x32xbf16>, vector<2x16x32xf32> -> vector<2x16x32xf32>
    "tpu.trace_stop"() : () -> ()
    %94 = vector.shape_cast %93 : vector<2x16x32xf32> to vector<32x32xf32>
    %c0_29 = arith.constant 0 : index
    %c64 = arith.constant 64 : index
    %95 = vector.load %arg23[%c0_29, %c64] : memref<32x128xf32, #tpu.memory_space<vmem>>, vector<32x32xf32>
    tpu.vector_store %arg23[%c0_29, %c64], %94 {strides = array<i32>} : memref<32x128xf32, #tpu.memory_space<vmem>>, vector<32x32xf32>,
    %96 = vector.extract_strided_slice %14 {offsets = [0, 96], sizes = [32, 32], strides = [1, 1]} : vector<32x384xf32> to vector<32x32xf32>
    %97 = vector.shape_cast %96 : vector<32x32xf32> to vector<2x16x32xf32>
    %98 = vector.extract_strided_slice %14 {offsets = [0, 224], sizes = [32, 32], strides = [1, 1]} : vector<32x384xf32> to vector<32x32xf32>
    %99 = vector.shape_cast %98 : vector<32x32xf32> to vector<2x16x32xf32>
    %100 = vector.extract_strided_slice %14 {offsets = [0, 352], sizes = [32, 32], strides = [1, 1]} : vector<32x384xf32> to vector<32x32xf32>
    %101 = vector.shape_cast %100 : vector<32x32xf32> to vector<2x16x32xf32>
    %102 = arith.truncf %97 : vector<2x16x32xf32> to vector<2x16x32xbf16>
    %103 = arith.truncf %99 : vector<2x16x32xf32> to vector<2x16x32xbf16>
    "tpu.trace_start"() <{level = 10 : i32, message = "bqd,bkd->bqk"}> : () -> ()
    %cst_30 = arith.constant dense<0.000000e+00> : vector<2x16x16xf32>
    %104 = tpu.matmul %102, %103, %cst_30 {dimension_numbers = #tpu.dot_dimension_numbers<[2], [2], [1], [1], [0, 0, 0, 1, 1, 1], [0], [0]>} : vector<2x16x32xbf16>, vector<2x16x32xbf16>, vector<2x16x16xf32> -> vector<2x16x16xf32>
    "tpu.trace_stop"() : () -> ()
    %cst_31 = arith.constant 0.176776692 : f32
    %105 = vector.broadcast %cst_31 : f32 to vector<2x16x16xf32>
    %106 = arith.mulf %104, %105 : vector<2x16x16xf32>
    %107 = arith.addf %106, %6 : vector<2x16x16xf32>
    %cst_32 = arith.constant dense<0xFF800000> : vector<2x16xf32>
    %108 = vector.multi_reduction <maximumf>, %107, %cst_32 [2] : vector<2x16x16xf32> to vector<2x16xf32>
    %109 = vector.shape_cast %108 : vector<2x16xf32> to vector<2x16x1xf32>
    %110 = vector.broadcast %109 : vector<2x16x1xf32> to vector<2x16x16xf32>
    %111 = arith.subf %107, %110 : vector<2x16x16xf32>
    %112 = math.exp %111 : vector<2x16x16xf32>
    %cst_33 = arith.constant dense<0.000000e+00> : vector<2x16xf32>
    %113 = vector.multi_reduction <add>, %112, %cst_33 [2] : vector<2x16x16xf32> to vector<2x16xf32>
    %114 = vector.shape_cast %113 : vector<2x16xf32> to vector<2x16x1xf32>
    %115 = tpu.reciprocal %114 {approx = true} : vector<2x16x1xf32> -> vector<2x16x1xf32>
    %116 = vector.broadcast %115 : vector<2x16x1xf32> to vector<2x16x16xf32>
    %117 = arith.mulf %112, %116 : vector<2x16x16xf32>
    %118 = arith.truncf %117 : vector<2x16x16xf32> to vector<2x16x16xbf16>
    %119 = arith.truncf %101 : vector<2x16x32xf32> to vector<2x16x32xbf16>
    "tpu.trace_start"() <{level = 10 : i32, message = "bqk,bkd->bqd"}> : () -> ()
    %cst_34 = arith.constant dense<0.000000e+00> : vector<2x16x32xf32>
    %120 = tpu.matmul %118, %119, %cst_34 {dimension_numbers = #tpu.dot_dimension_numbers<[2], [1], [1], [2], [0, 0, 0, 1, 1, 2], [0], [0]>} : vector<2x16x16xbf16>, vector<2x16x32xbf16>, vector<2x16x32xf32> -> vector<2x16x32xf32>
    "tpu.trace_stop"() : () -> ()
    %121 = vector.shape_cast %120 : vector<2x16x32xf32> to vector<32x32xf32>
    %c0_35 = arith.constant 0 : index
    %c96 = arith.constant 96 : index
    %122 = vector.load %arg23[%c0_35, %c96] : memref<32x128xf32, #tpu.memory_space<vmem>>, vector<32x32xf32>
    tpu.vector_store %arg23[%c0_35, %c96], %121 {strides = array<i32>} : memref<32x128xf32, #tpu.memory_space<vmem>>, vector<32x32xf32>,
    %c0_36 = arith.constant 0 : index
    %c0_37 = arith.constant 0 : index
    %123 = vector.load %arg23[%c0_36, %c0_37] : memref<32x128xf32, #tpu.memory_space<vmem>>, vector<32x128xf32>
    %124 = arith.truncf %123 : vector<32x128xf32> to vector<32x128xbf16>
    %c0_38 = arith.constant 0 : index
    %c0_39 = arith.constant 0 : index
    %c0_40 = arith.constant 0 : index
    %125 = vector.load %arg7[%c0_38, %c0_39, %c0_40] : memref<1x128x128xbf16, #tpu.memory_space<vmem>>, vector<1x128x128xbf16>
    %126 = vector.shape_cast %125 : vector<1x128x128xbf16> to vector<128x128xbf16>
    %cst_41 = arith.constant dense<0.000000e+00> : vector<32x128xf32>
    %127 = tpu.matmul %124, %126, %cst_41 {dimension_numbers = #tpu.dot_dimension_numbers<[1], [0], [0], [1], [0, 0, 1, 1], [], []>} : vector<32x128xbf16>, vector<128x128xbf16>, vector<32x128xf32> -> vector<32x128xf32>
    %c0_42 = arith.constant 0 : index
    %c0_43 = arith.constant 0 : index
    %c0_44 = arith.constant 0 : index
    %128 = vector.load %arg8[%c0_42, %c0_43, %c0_44] : memref<1x1x128xf32, #tpu.memory_space<vmem>>, vector<1x1x128xf32>
    %129 = vector.shape_cast %128 : vector<1x1x128xf32> to vector<1x128xf32>
    %130 = vector.broadcast %129 : vector<1x128xf32> to vector<32x128xf32>
    %131 = arith.addf %127, %130 : vector<32x128xf32>
    %132 = arith.addf %131, %3 : vector<32x128xf32>
    %c0_45 = arith.constant 0 : index
    %c0_46 = arith.constant 0 : index
    %c0_47 = arith.constant 0 : index
    %133 = vector.load %arg9[%c0_45, %c0_46, %c0_47] : memref<1x1x128xf32, #tpu.memory_space<vmem>>, vector<1x1x128xf32>
    %134 = vector.shape_cast %133 : vector<1x1x128xf32> to vector<1x128xf32>
    %c0_48 = arith.constant 0 : index
    %c0_49 = arith.constant 0 : index
    %c0_50 = arith.constant 0 : index
    %135 = vector.load %arg10[%c0_48, %c0_49, %c0_50] : memref<1x1x128xf32, #tpu.memory_space<vmem>>, vector<1x1x128xf32>
    %136 = vector.shape_cast %135 : vector<1x1x128xf32> to vector<1x128xf32>
    %cst_51 = arith.constant dense<0.000000e+00> : vector<32xf32>
    %137 = vector.multi_reduction <add>, %132, %cst_51 [1] : vector<32x128xf32> to vector<32xf32>
    %138 = vector.shape_cast %137 : vector<32xf32> to vector<32x1xf32>
    %cst_52 = arith.constant 1.280000e+02 : f32
    %139 = vector.broadcast %cst_52 : f32 to vector<32x1xf32>
    %140 = arith.divf %138, %139 : vector<32x1xf32>
    %141 = vector.broadcast %140 : vector<32x1xf32> to vector<32x128xf32>
    %142 = arith.subf %132, %141 : vector<32x128xf32>
    %143 = arith.mulf %142, %142 : vector<32x128xf32>
    %cst_53 = arith.constant dense<0.000000e+00> : vector<32xf32>
    %144 = vector.multi_reduction <add>, %143, %cst_53 [1] : vector<32x128xf32> to vector<32xf32>
    %145 = vector.shape_cast %144 : vector<32xf32> to vector<32x1xf32>
    %cst_54 = arith.constant 1.280000e+02 : f32
    %146 = vector.broadcast %cst_54 : f32 to vector<32x1xf32>
    %147 = arith.divf %145, %146 : vector<32x1xf32>
    %cst_55 = arith.constant 9.99999996E-13 : f32
    %148 = vector.broadcast %cst_55 : f32 to vector<32x1xf32>
    %149 = arith.addf %147, %148 : vector<32x1xf32>
    %150 = math.rsqrt %149 : vector<32x1xf32>
    %151 = vector.broadcast %150 : vector<32x1xf32> to vector<32x128xf32>
    %152 = arith.mulf %142, %151 : vector<32x128xf32>
    %153 = vector.broadcast %134 : vector<1x128xf32> to vector<32x128xf32>
    %154 = arith.mulf %152, %153 : vector<32x128xf32>
    %155 = vector.broadcast %136 : vector<1x128xf32> to vector<32x128xf32>
    %156 = arith.addf %154, %155 : vector<32x128xf32>
    %157 = arith.truncf %156 : vector<32x128xf32> to vector<32x128xbf16>
    %c0_56 = arith.constant 0 : index
    %c0_57 = arith.constant 0 : index
    %c0_58 = arith.constant 0 : index
    %158 = vector.load %arg11[%c0_56, %c0_57, %c0_58] : memref<1x128x256xbf16, #tpu.memory_space<vmem>>, vector<1x128x256xbf16>
    %159 = vector.shape_cast %158 : vector<1x128x256xbf16> to vector<128x256xbf16>
    %cst_59 = arith.constant dense<0.000000e+00> : vector<32x256xf32>
    %160 = tpu.matmul %157, %159, %cst_59 {dimension_numbers = #tpu.dot_dimension_numbers<[1], [0], [0], [1], [0, 0, 1, 1], [], []>} : vector<32x128xbf16>, vector<128x256xbf16>, vector<32x256xf32> -> vector<32x256xf32>
    %c0_60 = arith.constant 0 : index
    %c0_61 = arith.constant 0 : index
    %c0_62 = arith.constant 0 : index
    %161 = vector.load %arg12[%c0_60, %c0_61, %c0_62] : memref<1x1x256xf32, #tpu.memory_space<vmem>>, vector<1x1x256xf32>
    %162 = vector.shape_cast %161 : vector<1x1x256xf32> to vector<1x256xf32>
    %163 = vector.broadcast %162 : vector<1x256xf32> to vector<32x256xf32>
    %164 = arith.addf %160, %163 : vector<32x256xf32>
    %cst_63 = arith.constant 5.000000e-01 : f32
    %165 = vector.broadcast %cst_63 : f32 to vector<32x256xf32>
    %166 = arith.mulf %165, %164 : vector<32x256xf32>
    %cst_64 = arith.constant 4.471500e-02 : f32
    %167 = vector.broadcast %cst_64 : f32 to vector<32x256xf32>
    %168 = arith.mulf %167, %164 : vector<32x256xf32>
    %169 = arith.mulf %168, %164 : vector<32x256xf32>
    %170 = arith.mulf %169, %164 : vector<32x256xf32>
    %171 = arith.addf %164, %170 : vector<32x256xf32>
    %cst_65 = arith.constant 0.797884583 : f32
    %172 = vector.broadcast %cst_65 : f32 to vector<32x256xf32>
    %173 = arith.mulf %172, %171 : vector<32x256xf32>
    %174 = math.tanh %173 : vector<32x256xf32>
    %cst_66 = arith.constant 1.000000e+00 : f32
    %175 = vector.broadcast %cst_66 : f32 to vector<32x256xf32>
    %176 = arith.addf %175, %174 : vector<32x256xf32>
    %177 = arith.mulf %166, %176 : vector<32x256xf32>
    %178 = arith.truncf %177 : vector<32x256xf32> to vector<32x256xbf16>
    %c0_67 = arith.constant 0 : index
    %c0_68 = arith.constant 0 : index
    %c0_69 = arith.constant 0 : index
    %179 = vector.load %arg13[%c0_67, %c0_68, %c0_69] : memref<1x256x128xbf16, #tpu.memory_space<vmem>>, vector<1x256x128xbf16>
    %180 = vector.shape_cast %179 : vector<1x256x128xbf16> to vector<256x128xbf16>
    %cst_70 = arith.constant dense<0.000000e+00> : vector<32x128xf32>
    %181 = tpu.matmul %178, %180, %cst_70 {dimension_numbers = #tpu.dot_dimension_numbers<[1], [0], [0], [1], [0, 0, 1, 1], [], []>} : vector<32x256xbf16>, vector<256x128xbf16>, vector<32x128xf32> -> vector<32x128xf32>
    %c0_71 = arith.constant 0 : index
    %c0_72 = arith.constant 0 : index
    %c0_73 = arith.constant 0 : index
    %182 = vector.load %arg14[%c0_71, %c0_72, %c0_73] : memref<1x1x128xf32, #tpu.memory_space<vmem>>, vector<1x1x128xf32>
    %183 = vector.shape_cast %182 : vector<1x1x128xf32> to vector<1x128xf32>
    %184 = vector.broadcast %183 : vector<1x128xf32> to vector<32x128xf32>
    %185 = arith.addf %181, %184 : vector<32x128xf32>
    %186 = arith.addf %185, %156 : vector<32x128xf32>
    %c0_74 = arith.constant 0 : index
    %c0_75 = arith.constant 0 : index
    %c0_76 = arith.constant 0 : index
    %187 = vector.load %arg15[%c0_74, %c0_75, %c0_76] : memref<1x1x128xf32, #tpu.memory_space<vmem>>, vector<1x1x128xf32>
    %188 = vector.shape_cast %187 : vector<1x1x128xf32> to vector<1x128xf32>
    %c0_77 = arith.constant 0 : index
    %c0_78 = arith.constant 0 : index
    %c0_79 = arith.constant 0 : index
    %189 = vector.load %arg16[%c0_77, %c0_78, %c0_79] : memref<1x1x128xf32, #tpu.memory_space<vmem>>, vector<1x1x128xf32>
    %190 = vector.shape_cast %189 : vector<1x1x128xf32> to vector<1x128xf32>
    %cst_80 = arith.constant dense<0.000000e+00> : vector<32xf32>
    %191 = vector.multi_reduction <add>, %186, %cst_80 [1] : vector<32x128xf32> to vector<32xf32>
    %192 = vector.shape_cast %191 : vector<32xf32> to vector<32x1xf32>
    %cst_81 = arith.constant 1.280000e+02 : f32
    %193 = vector.broadcast %cst_81 : f32 to vector<32x1xf32>
    %194 = arith.divf %192, %193 : vector<32x1xf32>
    %195 = vector.broadcast %194 : vector<32x1xf32> to vector<32x128xf32>
    %196 = arith.subf %186, %195 : vector<32x128xf32>
    %197 = arith.mulf %196, %196 : vector<32x128xf32>
    %cst_82 = arith.constant dense<0.000000e+00> : vector<32xf32>
    %198 = vector.multi_reduction <add>, %197, %cst_82 [1] : vector<32x128xf32> to vector<32xf32>
    %199 = vector.shape_cast %198 : vector<32xf32> to vector<32x1xf32>
    %cst_83 = arith.constant 1.280000e+02 : f32
    %200 = vector.broadcast %cst_83 : f32 to vector<32x1xf32>
    %201 = arith.divf %199, %200 : vector<32x1xf32>
    %cst_84 = arith.constant 9.99999996E-13 : f32
    %202 = vector.broadcast %cst_84 : f32 to vector<32x1xf32>
    %203 = arith.addf %201, %202 : vector<32x1xf32>
    %204 = math.rsqrt %203 : vector<32x1xf32>
    %205 = vector.broadcast %204 : vector<32x1xf32> to vector<32x128xf32>
    %206 = arith.mulf %196, %205 : vector<32x128xf32>
    %207 = vector.broadcast %188 : vector<1x128xf32> to vector<32x128xf32>
    %208 = arith.mulf %206, %207 : vector<32x128xf32>
    %209 = vector.broadcast %190 : vector<1x128xf32> to vector<32x128xf32>
    %210 = arith.addf %208, %209 : vector<32x128xf32>
    %c0_85 = arith.constant 0 : index
    %c0_86 = arith.constant 0 : index
    %211 = vector.load %arg22[%c0_85, %c0_86] : memref<32x128xf32, #tpu.memory_space<vmem>>, vector<32x128xf32>
    tpu.vector_store %arg22[%c0_85, %c0_86], %210 {strides = array<i32>} : memref<32x128xf32, #tpu.memory_space<vmem>>, vector<32x128xf32>,
    %c1_i32 = arith.constant 1 : i32
    %212 = arith.cmpi eq, %arg0, %c1_i32 : i32
    %213 = arith.extui %212 : i1 to i32
    %c0_i32_87 = arith.constant 0 : i32
    %214 = arith.cmpi ne, %213, %c0_i32_87 : i32
    scf.if %214 {
      %215 = vector.extract_strided_slice %210 {offsets = [0, 0], sizes = [1, 128], strides = [1, 1]} : vector<32x128xf32> to vector<1x128xf32>
      %216 = vector.extract_strided_slice %210 {offsets = [16, 0], sizes = [1, 128], strides = [1, 1]} : vector<32x128xf32> to vector<1x128xf32>
      %217 = tpu.concatenate %215, %216 in 0 : vector<1x128xf32>, vector<1x128xf32> -> vector<2x128xf32>
      %218 = arith.truncf %217 : vector<2x128xf32> to vector<2x128xbf16>
      %c0_88 = arith.constant 0 : index
      %c0_89 = arith.constant 0 : index
      %219 = vector.load %arg17[%c0_88, %c0_89] : memref<128x128xbf16, #tpu.memory_space<vmem>>, vector<128x128xbf16>
      %cst_90 = arith.constant dense<0.000000e+00> : vector<2x128xf32>
      %220 = tpu.matmul %218, %219, %cst_90 {dimension_numbers = #tpu.dot_dimension_numbers<[1], [0], [0], [1], [0, 0, 1, 1], [], []>} : vector<2x128xbf16>, vector<128x128xbf16>, vector<2x128xf32> -> vector<2x128xf32>
      %c0_91 = arith.constant 0 : index
      %c0_92 = arith.constant 0 : index
      %221 = vector.load %arg18[%c0_91, %c0_92] : memref<1x128xf32, #tpu.memory_space<vmem>>, vector<1x128xf32>
      %222 = vector.broadcast %221 : vector<1x128xf32> to vector<2x128xf32>
      %223 = arith.addf %220, %222 : vector<2x128xf32>
      %224 = math.tanh %223 : vector<2x128xf32>
      %225 = arith.truncf %224 : vector<2x128xf32> to vector<2x128xbf16>
      %c0_93 = arith.constant 0 : index
      %c0_94 = arith.constant 0 : index
      %226 = vector.load %arg19[%c0_93, %c0_94] : memref<128x128xbf16, #tpu.memory_space<vmem>>, vector<128x128xbf16>
      %cst_95 = arith.constant dense<0.000000e+00> : vector<2x128xf32>
      %227 = tpu.matmul %225, %226, %cst_95 {dimension_numbers = #tpu.dot_dimension_numbers<[1], [0], [0], [1], [0, 0, 1, 1], [], []>} : vector<2x128xbf16>, vector<128x128xbf16>, vector<2x128xf32> -> vector<2x128xf32>
      %c0_96 = arith.constant 0 : index
      %c0_97 = arith.constant 0 : index
      %228 = vector.load %arg20[%c0_96, %c0_97] : memref<1x128xf32, #tpu.memory_space<vmem>>, vector<1x128xf32>
      %229 = vector.broadcast %228 : vector<1x128xf32> to vector<2x128xf32>
      %230 = arith.addf %227, %229 : vector<2x128xf32>
      %c0_98 = arith.constant 0 : index
      %c0_99 = arith.constant 0 : index
      %231 = vector.load %arg21[%c0_98, %c0_99] : memref<2x128xf32, #tpu.memory_space<vmem>>, vector<2x128xf32>
      tpu.vector_store %arg21[%c0_98, %c0_99], %230 {strides = array<i32>} : memref<2x128xf32, #tpu.memory_space<vmem>>, vector<2x128xf32>,
    } else {
    }
    return
  }
  func.func @transform_0(%arg0: i32) -> (i32, i32) {
    %c0_i32 = arith.constant 0 : i32
    %c0_i32_0 = arith.constant 0 : i32
    %c0_i32_1 = arith.constant 0 : i32
    return %c0_i32, %c0_i32_0 : i32, i32
  }
  func.func @transform_1(%arg0: i32) -> (i32, i32, i32) {
    %c0_i32 = arith.constant 0 : i32
    %c0_i32_0 = arith.constant 0 : i32
    %c0_i32_1 = arith.constant 0 : i32
    %c0_i32_2 = arith.constant 0 : i32
    return %c0_i32, %c0_i32_0, %c0_i32_1 : i32, i32, i32
  }
  func.func @transform_2(%arg0: i32) -> (i32, i32) {
    %c0_i32 = arith.constant 0 : i32
    %c0_i32_0 = arith.constant 0 : i32
    %c0_i32_1 = arith.constant 0 : i32
    return %c0_i32, %c0_i32_0 : i32, i32
  }
  func.func @transform_3(%arg0: i32) -> (i32, i32) {
    %c0_i32 = arith.constant 0 : i32
    %c0_i32_0 = arith.constant 0 : i32
    %c0_i32_1 = arith.constant 0 : i32
    return %c0_i32, %c0_i32_0 : i32, i32
  }
  func.func @transform_4(%arg0: i32) -> (i32, i32, i32) {
    %c0_i32 = arith.constant 0 : i32
    %c0_i32_0 = arith.constant 0 : i32
    %c0_i32_1 = arith.constant 0 : i32
    return %arg0, %c0_i32, %c0_i32_0 : i32, i32, i32
  }
  func.func @transform_5(%arg0: i32) -> (i32, i32, i32) {
    %c0_i32 = arith.constant 0 : i32
    %c0_i32_0 = arith.constant 0 : i32
    %c0_i32_1 = arith.constant 0 : i32
    return %arg0, %c0_i32, %c0_i32_0 : i32, i32, i32
  }
  func.func @transform_6(%arg0: i32) -> (i32, i32, i32) {
    %c0_i32 = arith.constant 0 : i32
    %c0_i32_0 = arith.constant 0 : i32
    %c0_i32_1 = arith.constant 0 : i32
    return %arg0, %c0_i32, %c0_i32_0 : i32, i32, i32
  }
  func.func @transform_7(%arg0: i32) -> (i32, i32, i32) {
    %c0_i32 = arith.constant 0 : i32
    %c0_i32_0 = arith.constant 0 : i32
    %c0_i32_1 = arith.constant 0 : i32
    return %arg0, %c0_i32, %c0_i32_0 : i32, i32, i32
  }
  func.func @transform_8(%arg0: i32) -> (i32, i32, i32) {
    %c0_i32 = arith.constant 0 : i32
    %c0_i32_0 = arith.constant 0 : i32
    %c0_i32_1 = arith.constant 0 : i32
    return %arg0, %c0_i32, %c0_i32_0 : i32, i32, i32
  }
  func.func @transform_9(%arg0: i32) -> (i32, i32, i32) {
    %c0_i32 = arith.constant 0 : i32
    %c0_i32_0 = arith.constant 0 : i32
    %c0_i32_1 = arith.constant 0 : i32
    return %arg0, %c0_i32, %c0_i32_0 : i32, i32, i32
  }
  func.func @transform_10(%arg0: i32) -> (i32, i32, i32) {
    %c0_i32 = arith.constant 0 : i32
    %c0_i32_0 = arith.constant 0 : i32
    %c0_i32_1 = arith.constant 0 : i32
    return %arg0, %c0_i32, %c0_i32_0 : i32, i32, i32
  }
  func.func @transform_11(%arg0: i32) -> (i32, i32, i32) {
    %c0_i32 = arith.constant 0 : i32
    %c0_i32_0 = arith.constant 0 : i32
    %c0_i32_1 = arith.constant 0 : i32
    return %arg0, %c0_i32, %c0_i32_0 : i32, i32, i32
  }
  func.func @transform_12(%arg0: i32) -> (i32, i32, i32) {
    %c0_i32 = arith.constant 0 : i32
    %c0_i32_0 = arith.constant 0 : i32
    %c0_i32_1 = arith.constant 0 : i32
    return %arg0, %c0_i32, %c0_i32_0 : i32, i32, i32
  }
  func.func @transform_13(%arg0: i32) -> (i32, i32, i32) {
    %c0_i32 = arith.constant 0 : i32
    %c0_i32_0 = arith.constant 0 : i32
    %c0_i32_1 = arith.constant 0 : i32
    return %arg0, %c0_i32, %c0_i32_0 : i32, i32, i32
  }
  func.func @transform_14(%arg0: i32) -> (i32, i32, i32) {
    %c0_i32 = arith.constant 0 : i32
    %c0_i32_0 = arith.constant 0 : i32
    %c0_i32_1 = arith.constant 0 : i32
    return %arg0, %c0_i32, %c0_i32_0 : i32, i32, i32
  }
  func.func @transform_15(%arg0: i32) -> (i32, i32, i32) {
    %c0_i32 = arith.constant 0 : i32
    %c0_i32_0 = arith.constant 0 : i32
    %c0_i32_1 = arith.constant 0 : i32
    return %arg0, %c0_i32, %c0_i32_0 : i32, i32, i32
  }
  func.func @transform_16(%arg0: i32) -> (i32, i32) {
    %c0_i32 = arith.constant 0 : i32
    %c0_i32_0 = arith.constant 0 : i32
    %c0_i32_1 = arith.constant 0 : i32
    return %c0_i32, %c0_i32_0 : i32, i32
  }
  func.func @transform_17(%arg0: i32) -> (i32, i32) {
    %c0_i32 = arith.constant 0 : i32
    %c0_i32_0 = arith.constant 0 : i32
    %c0_i32_1 = arith.constant 0 : i32
    return %c0_i32, %c0_i32_0 : i32, i32
  }
  func.func @transform_18(%arg0: i32) -> (i32, i32) {
    %c0_i32 = arith.constant 0 : i32
    %c0_i32_0 = arith.constant 0 : i32
    %c0_i32_1 = arith.constant 0 : i32
    return %c0_i32, %c0_i32_0 : i32, i32
  }
  func.func @transform_19(%arg0: i32) -> (i32, i32) {
    %c0_i32 = arith.constant 0 : i32
    %c0_i32_0 = arith.constant 0 : i32
    %c0_i32_1 = arith.constant 0 : i32
    return %c0_i32, %c0_i32_0 : i32, i32
  }
  func.func @transform_20(%arg0: i32) -> (i32, i32) {
    %c0_i32 = arith.constant 0 : i32
    %c0_i32_0 = arith.constant 0 : i32
    %c0_i32_1 = arith.constant 0 : i32
    return %c0_i32, %c0_i32_0 : i32, i32
  }
}

</mosaic_0001>

<llo_original>
// kernel: sentiment_classifier_forward.1
$region0: #{sentiment_classifier_forward.1}
  #allocation0 [shape = 'u32[]', space=smem, size = 0x4, offset = 0x4, fixed_abs, tag = 'smem constant byte address 0x4 - core index']
  #allocation1 [shape = 'u32[72,128]{1,0:T(1,128)}', space=vmem, size = 0x9000, scoped, tag = 'internal scratch']
  #allocation2 [shape = 'f32[32,128]{1,0:T(8,128)}', space=vmem, size = 0x4000, scoped, tag = 'scratch operand']
  #allocation3 [shape = 'f32[32,128]{1,0:T(8,128)}', space=vmem, size = 0x4000, scoped, tag = 'scratch operand']
  %s0 = inlined_call_operand.vmem [shape: f32[32,128], index: 0, kind: input, shape index: {}]
  %s1 = inlined_call_operand.vmem [shape: f32[2,1,16], index: 1, kind: input, shape index: {}]
  %s2 = inlined_call_operand.vmem [shape: f32[1,128], index: 2, kind: input, shape index: {}]
  %s3 = inlined_call_operand.vmem [shape: f32[1,128], index: 3, kind: input, shape index: {}]
  %s4 = inlined_call_operand.hbm [shape: bf16[2,128,384], index: 4, kind: input, shape index: {}]
  %s5 = inlined_call_operand.vmem [shape: f32[2,1,384], index: 5, kind: input, shape index: {}]
  %s6 = inlined_call_operand.hbm [shape: bf16[2,128,128], index: 6, kind: input, shape index: {}]
  %s7 = inlined_call_operand.vmem [shape: f32[2,1,128], index: 7, kind: input, shape index: {}]
  %s8 = inlined_call_operand.vmem [shape: f32[2,1,128], index: 8, kind: input, shape index: {}]
  %s9 = inlined_call_operand.vmem [shape: f32[2,1,128], index: 9, kind: input, shape index: {}]
  %s10 = inlined_call_operand.vmem [shape: bf16[2,128,256], index: 10, kind: input, shape index: {}]
  %s11 = inlined_call_operand.vmem [shape: f32[2,1,256], index: 11, kind: input, shape index: {}]
  %s12 = inlined_call_operand.hbm [shape: bf16[2,256,128], index: 12, kind: input, shape index: {}]
  %s13 = inlined_call_operand.vmem [shape: f32[2,1,128], index: 13, kind: input, shape index: {}]
  %s14 = inlined_call_operand.vmem [shape: f32[2,1,128], index: 14, kind: input, shape index: {}]
  %s15 = inlined_call_operand.vmem [shape: f32[2,1,128], index: 15, kind: input, shape index: {}]
  %s16 = inlined_call_operand.vmem [shape: bf16[128,128], index: 16, kind: input, shape index: {}]
  %s17 = inlined_call_operand.vmem [shape: f32[1,128], index: 17, kind: input, shape index: {}]
  %s18 = inlined_call_operand.vmem [shape: bf16[128,128], index: 18, kind: input, shape index: {}]
  %s19 = inlined_call_operand.vmem [shape: f32[1,128], index: 19, kind: input, shape index: {}]
  %s20 = inlined_call_operand.hbm [shape: f32[2,128], index: 20, kind: output, shape index: {}]
  %s21 = sld [smem:[#allocation0]]
  $region133: #{sentiment_classifier_forward.1} parent=0
    _
  %s23 = ssub.s32 1, %s21
  %s24 = scalar_select 0, %s23, %s21
  $region1: #{sentiment_classifier_forward.1} parent=0
    #allocation4 [shape = 'u8[196608]{0}', space=vmem, size = 0x30000, scoped, tag = 'input window, operand 4']
    #allocation5 [shape = 's32[2]{0}', space=sflag, size = 0x8, scoped, tag = 'scoped memory for sentiment_classifier_forward.1']
    #allocation6 [shape = 's32[2]{0}', space=sflag, size = 0x8, scoped, tag = 'scoped memory for sentiment_classifier_forward.1']
    #allocation7 [shape = 'u8[65536]{0}', space=vmem, size = 0x10000, scoped, tag = 'input window, operand 6']
    #allocation8 [shape = 's32[2]{0}', space=sflag, size = 0x8, scoped, tag = 'scoped memory for sentiment_classifier_forward.1']
    #allocation9 [shape = 'u8[131072]{0}', space=vmem, size = 0x20000, scoped, tag = 'input window, operand 12']
    #allocation10 [shape = 'u8[1024]{0}', space=vmem, size = 0x400, scoped, tag = 'output window, operand 0, single buffered']
    %25 = vsyncpa [#allocation5], 0
    %s26 = scalar_lea.sflag [#allocation5], 1
    %27 = vsyncpa %s26, 0
    %28 = vsyncpa [#allocation8], 0
    %s29 = scalar_lea.sflag [#allocation8], 1
    %30 = vsyncpa %s29, 0
    %31 = vsyncpa [#allocation6], 0
    loop: start=0, step=1, limit=4
    $region2: #{sentiment_classifier_forward.1} parent=1 // loop_pre_header
      _
    $region3: #{sentiment_classifier_forward.1} parent=1 // loop_header
      %s33 = sphi 0, %s37
      %p34 = scmp.ge.s32.totalorder %s33, 4
      %s41 = sphi 0, %s41
      %s43 = sphi 0, %s41
      %s44 = sphi 0, %s43
      %s58 = sphi 0, %s44
      %s62 = sphi 0, %s62
      %s64 = sphi 0, %s62
      %s65 = sphi 0, %s64
      %s79 = sphi 0, %s65
      %s83 = sphi 0, %s83
      %s85 = sphi 0, %s83
      %s86 = sphi 0, %s85
      %s100 = sphi 0, %s86
      %s104 = sphi 0, %s104
      %s106 = sphi 0, %s104
      %s107 = sphi 0, %s106
      %s121 = sphi 0, %s107
      %s127 = sphi 0, %s129
      %s130 = sphi 0, %s127
      %s131 = sphi 0, %s130
      %s147 = sphi 0, %s131
      %s153 = sphi 0, %s155
      %s156 = sphi 0, %s153
      %s157 = sphi 0, %s156
      %s173 = sphi 0, %s157
      %s179 = sphi 0, %s181
      %s182 = sphi 0, %s179
      %s183 = sphi 0, %s182
      %s199 = sphi 0, %s183
      %s205 = sphi 0, %s207
      %s208 = sphi 0, %s205
      %s209 = sphi 0, %s208
      %s225 = sphi 0, %s209
      %s231 = sphi 0, %s233
      %s234 = sphi 0, %s231
      %s235 = sphi 0, %s234
      %s251 = sphi 0, %s235
      %s257 = sphi 0, %s259
      %s260 = sphi 0, %s257
      %s261 = sphi 0, %s260
      %s277 = sphi 0, %s261
      %s283 = sphi 0, %s285
      %s286 = sphi 0, %s283
      %s287 = sphi 0, %s286
      %s303 = sphi 0, %s287
      %s309 = sphi 0, %s311
      %s312 = sphi 0, %s309
      %s313 = sphi 0, %s312
      %s329 = sphi 0, %s313
      %s335 = sphi 0, %s337
      %s338 = sphi 0, %s335
      %s339 = sphi 0, %s338
      %s355 = sphi 0, %s339
      %s361 = sphi 0, %s363
      %s364 = sphi 0, %s361
      %s365 = sphi 0, %s364
      %s381 = sphi 0, %s365
      %s387 = sphi 0, %s389
      %s390 = sphi 0, %s387
      %s391 = sphi 0, %s390
      %s407 = sphi 0, %s391
      %s413 = sphi 0, %s415
      %s416 = sphi 0, %s413
      %s417 = sphi 0, %s416
      %s433 = sphi 0, %s417
      %s437 = sphi 0, %s437
      %s439 = sphi 0, %s437
      %s440 = sphi 0, %s439
      %s454 = sphi 0, %s440
      %s458 = sphi 0, %s458
      %s460 = sphi 0, %s458
      %s461 = sphi 0, %s460
      %s475 = sphi 0, %s461
      %s479 = sphi 0, %s479
      %s481 = sphi 0, %s479
      %s482 = sphi 0, %s481
      %s496 = sphi 0, %s482
      %s500 = sphi 0, %s500
      %s502 = sphi 0, %s500
      %s503 = sphi 0, %s502
      %s517 = sphi 0, %s503
      %s521 = sphi 0, %s521
      %s523 = sphi 0, %s521
      %s524 = sphi 0, %s523
      %s538 = sphi 0, %s524
    $region4: #{sentiment_classifier_forward.1} parent=1 // loop_header_branch
      %36 = sbr.rel (%p34) target = $region8
    $region5: #{sentiment_classifier_forward.1} parent=1 // loop_body
      %s38 = ssub.s32 %s33, 1
      %s39 = ssub.s32 %s33, 2
      %s40 = sadd.s32 %s33, 1
      %s42 = sadd.s32 %s41, 1
      %p45 = scmp.eq.s32.totalorder %s33, 1
      %p46 = scmp.ne.s32.totalorder %s41, %s43
      %p47 = scmp.eq.s32.totalorder %s33, 0
      %p48 = por %p46, %p47
      %p49 = scmp.ne.s32.totalorder %s41, %s43
      %p50 = scmp.eq.s32.totalorder %s38, 1
      %p51 = por %p49, %p50
      %p52 = scmp.ne.s32.totalorder %s43, %s44
      %p53 = scmp.eq.s32.totalorder %s38, 0
      %p54 = por %p52, %p53
      %p55 = scmp.ne.s32.totalorder %s43, %s44
      %p56 = scmp.eq.s32.totalorder %s39, 1
      %p57 = por %p55, %p56
      %p59 = scmp.ne.s32.totalorder %s44, %s58
      %p60 = scmp.eq.s32.totalorder %s39, 0
      %p61 = por %p59, %p60
      %s63 = sadd.s32 %s62, 1
      %p66 = scmp.eq.s32.totalorder %s33, 1
      %p67 = scmp.ne.s32.totalorder %s62, %s64
      %p68 = scmp.eq.s32.totalorder %s33, 0
      %p69 = por %p67, %p68
      %p70 = scmp.ne.s32.totalorder %s62, %s64
      %p71 = scmp.eq.s32.totalorder %s38, 1
      %p72 = por %p70, %p71
      %p73 = scmp.ne.s32.totalorder %s64, %s65
      %p74 = scmp.eq.s32.totalorder %s38, 0
      %p75 = por %p73, %p74
      %p76 = scmp.ne.s32.totalorder %s64, %s65
      %p77 = scmp.eq.s32.totalorder %s39, 1
      %p78 = por %p76, %p77
      %p80 = scmp.ne.s32.totalorder %s65, %s79
      %p81 = scmp.eq.s32.totalorder %s39, 0
      %p82 = por %p80, %p81
      %s84 = sadd.s32 %s83, 1
      %p87 = scmp.eq.s32.totalorder %s33, 1
      %p88 = scmp.ne.s32.totalorder %s83, %s85
      %p89 = scmp.eq.s32.totalorder %s33, 0
      %p90 = por %p88, %p89
      %p91 = scmp.ne.s32.totalorder %s83, %s85
      %p92 = scmp.eq.s32.totalorder %s38, 1
      %p93 = por %p91, %p92
      %p94 = scmp.ne.s32.totalorder %s85, %s86
      %p95 = scmp.eq.s32.totalorder %s38, 0
      %p96 = por %p94, %p95
      %p97 = scmp.ne.s32.totalorder %s85, %s86
      %p98 = scmp.eq.s32.totalorder %s39, 1
      %p99 = por %p97, %p98
      %p101 = scmp.ne.s32.totalorder %s86, %s100
      %p102 = scmp.eq.s32.totalorder %s39, 0
      %p103 = por %p101, %p102
      %s105 = sadd.s32 %s104, 1
      %p108 = scmp.eq.s32.totalorder %s33, 1
      %p109 = scmp.ne.s32.totalorder %s104, %s106
      %p110 = scmp.eq.s32.totalorder %s33, 0
      %p111 = por %p109, %p110
      %p112 = scmp.ne.s32.totalorder %s104, %s106
      %p113 = scmp.eq.s32.totalorder %s38, 1
      %p114 = por %p112, %p113
      %p115 = scmp.ne.s32.totalorder %s106, %s107
      %p116 = scmp.eq.s32.totalorder %s38, 0
      %p117 = por %p115, %p116
      %p118 = scmp.ne.s32.totalorder %s106, %s107
      %p119 = scmp.eq.s32.totalorder %s39, 1
      %p120 = por %p118, %p119
      %p122 = scmp.ne.s32.totalorder %s107, %s121
      %p123 = scmp.eq.s32.totalorder %s39, 0
      %p124 = por %p122, %p123
      %s125 = ssub.s32 %s33, %s40
      %p126 = scmp.eq.s32.totalorder %s125, 0
      %s128 = sadd.s32 %s127, 1
      %s129 = scalar_select %p126, %s127, %s128
      %p132 = pneg %p126
      %p133 = scmp.eq.s32.totalorder %s33, 1
      %p134 = por %p132, %p133
      %p135 = scmp.ne.s32.totalorder %s127, %s130
      %p136 = scmp.eq.s32.totalorder %s33, 0
      %p137 = por %p135, %p136
      %p138 = scmp.ne.s32.totalorder %s127, %s130
      %p139 = scmp.eq.s32.totalorder %s38, 1
      %p140 = por %p138, %p139
      %p141 = scmp.ne.s32.totalorder %s130, %s131
      %p142 = scmp.eq.s32.totalorder %s38, 0
      %p143 = por %p141, %p142
      %p144 = scmp.ne.s32.totalorder %s130, %s131
      %p145 = scmp.eq.s32.totalorder %s39, 1
      %p146 = por %p144, %p145
      %p148 = scmp.ne.s32.totalorder %s131, %s147
      %p149 = scmp.eq.s32.totalorder %s39, 0
      %p150 = por %p148, %p149
      %s151 = ssub.s32 %s33, %s40
      %p152 = scmp.eq.s32.totalorder %s151, 0
      %s154 = sadd.s32 %s153, 1
      %s155 = scalar_select %p152, %s153, %s154
      %p158 = pneg %p152
      %p159 = scmp.eq.s32.totalorder %s33, 1
      %p160 = por %p158, %p159
      %p161 = scmp.ne.s32.totalorder %s153, %s156
      %p162 = scmp.eq.s32.totalorder %s33, 0
      %p163 = por %p161, %p162
      %p164 = scmp.ne.s32.totalorder %s153, %s156
      %p165 = scmp.eq.s32.totalorder %s38, 1
      %p166 = por %p164, %p165
      %p167 = scmp.ne.s32.totalorder %s156, %s157
      %p168 = scmp.eq.s32.totalorder %s38, 0
      %p169 = por %p167, %p168
      %p170 = scmp.ne.s32.totalorder %s156, %s157
      %p171 = scmp.eq.s32.totalorder %s39, 1
      %p172 = por %p170, %p171
      %p174 = scmp.ne.s32.totalorder %s157, %s173
      %p175 = scmp.eq.s32.totalorder %s39, 0
      %p176 = por %p174, %p175
      %s177 = ssub.s32 %s33, %s40
      %p178 = scmp.eq.s32.totalorder %s177, 0
      %s180 = sadd.s32 %s179, 1
      %s181 = scalar_select %p178, %s179, %s180
      %p184 = pneg %p178
      %p185 = scmp.eq.s32.totalorder %s33, 1
      %p186 = por %p184, %p185
      %p187 = scmp.ne.s32.totalorder %s179, %s182
      %p188 = scmp.eq.s32.totalorder %s33, 0
      %p189 = por %p187, %p188
      %p190 = scmp.ne.s32.totalorder %s179, %s182
      %p191 = scmp.eq.s32.totalorder %s38, 1
      %p192 = por %p190, %p191
      %p193 = scmp.ne.s32.totalorder %s182, %s183
      %p194 = scmp.eq.s32.totalorder %s38, 0
      %p195 = por %p193, %p194
      %p196 = scmp.ne.s32.totalorder %s182, %s183
      %p197 = scmp.eq.s32.totalorder %s39, 1
      %p198 = por %p196, %p197
      %p200 = scmp.ne.s32.totalorder %s183, %s199
      %p201 = scmp.eq.s32.totalorder %s39, 0
      %p202 = por %p200, %p201
      %s203 = ssub.s32 %s33, %s40
      %p204 = scmp.eq.s32.totalorder %s203, 0
      %s206 = sadd.s32 %s205, 1
      %s207 = scalar_select %p204, %s205, %s206
      %p210 = pneg %p204
      %p211 = scmp.eq.s32.totalorder %s33, 1
      %p212 = por %p210, %p211
      %p213 = scmp.ne.s32.totalorder %s205, %s208
      %p214 = scmp.eq.s32.totalorder %s33, 0
      %p215 = por %p213, %p214
      %p216 = scmp.ne.s32.totalorder %s205, %s208
      %p217 = scmp.eq.s32.totalorder %s38, 1
      %p218 = por %p216, %p217
      %p219 = scmp.ne.s32.totalorder %s208, %s209
      %p220 = scmp.eq.s32.totalorder %s38, 0
      %p221 = por %p219, %p220
      %p222 = scmp.ne.s32.totalorder %s208, %s209
      %p223 = scmp.eq.s32.totalorder %s39, 1
      %p224 = por %p222, %p223
      %p226 = scmp.ne.s32.totalorder %s209, %s225
      %p227 = scmp.eq.s32.totalorder %s39, 0
      %p228 = por %p226, %p227
      %s229 = ssub.s32 %s33, %s40
      %p230 = scmp.eq.s32.totalorder %s229, 0
      %s232 = sadd.s32 %s231, 1
      %s233 = scalar_select %p230, %s231, %s232
      %p236 = pneg %p230
      %p237 = scmp.eq.s32.totalorder %s33, 1
      %p238 = por %p236, %p237
      %p239 = scmp.ne.s32.totalorder %s231, %s234
      %p240 = scmp.eq.s32.totalorder %s33, 0
      %p241 = por %p239, %p240
      %p242 = scmp.ne.s32.totalorder %s231, %s234
      %p243 = scmp.eq.s32.totalorder %s38, 1
      %p244 = por %p242, %p243
      %p245 = scmp.ne.s32.totalorder %s234, %s235
      %p246 = scmp.eq.s32.totalorder %s38, 0
      %p247 = por %p245, %p246
      %p248 = scmp.ne.s32.totalorder %s234, %s235
      %p249 = scmp.eq.s32.totalorder %s39, 1
      %p250 = por %p248, %p249
      %p252 = scmp.ne.s32.totalorder %s235, %s251
      %p253 = scmp.eq.s32.totalorder %s39, 0
      %p254 = por %p252, %p253
      %s255 = ssub.s32 %s33, %s40
      %p256 = scmp.eq.s32.totalorder %s255, 0
      %s258 = sadd.s32 %s257, 1
      %s259 = scalar_select %p256, %s257, %s258
      %p262 = pneg %p256
      %p263 = scmp.eq.s32.totalorder %s33, 1
      %p264 = por %p262, %p263
      %p265 = scmp.ne.s32.totalorder %s257, %s260
      %p266 = scmp.eq.s32.totalorder %s33, 0
      %p267 = por %p265, %p266
      %p268 = scmp.ne.s32.totalorder %s257, %s260
      %p269 = scmp.eq.s32.totalorder %s38, 1
      %p270 = por %p268, %p269
      %p271 = scmp.ne.s32.totalorder %s260, %s261
      %p272 = scmp.eq.s32.totalorder %s38, 0
      %p273 = por %p271, %p272
      %p274 = scmp.ne.s32.totalorder %s260, %s261
      %p275 = scmp.eq.s32.totalorder %s39, 1
      %p276 = por %p274, %p275
      %p278 = scmp.ne.s32.totalorder %s261, %s277
      %p279 = scmp.eq.s32.totalorder %s39, 0
      %p280 = por %p278, %p279
      %s281 = ssub.s32 %s33, %s40
      %p282 = scmp.eq.s32.totalorder %s281, 0
      %s284 = sadd.s32 %s283, 1
      %s285 = scalar_select %p282, %s283, %s284
      %p288 = pneg %p282
      %p289 = scmp.eq.s32.totalorder %s33, 1
      %p290 = por %p288, %p289
      %p291 = scmp.ne.s32.totalorder %s283, %s286
      %p292 = scmp.eq.s32.totalorder %s33, 0
      %p293 = por %p291, %p292
      %p294 = scmp.ne.s32.totalorder %s283, %s286
      %p295 = scmp.eq.s32.totalorder %s38, 1
      %p296 = por %p294, %p295
      %p297 = scmp.ne.s32.totalorder %s286, %s287
      %p298 = scmp.eq.s32.totalorder %s38, 0
      %p299 = por %p297, %p298
      %p300 = scmp.ne.s32.totalorder %s286, %s287
      %p301 = scmp.eq.s32.totalorder %s39, 1
      %p302 = por %p300, %p301
      %p304 = scmp.ne.s32.totalorder %s287, %s303
      %p305 = scmp.eq.s32.totalorder %s39, 0
      %p306 = por %p304, %p305
      %s307 = ssub.s32 %s33, %s40
      %p308 = scmp.eq.s32.totalorder %s307, 0
      %s310 = sadd.s32 %s309, 1
      %s311 = scalar_select %p308, %s309, %s310
      %p314 = pneg %p308
      %p315 = scmp.eq.s32.totalorder %s33, 1
      %p316 = por %p314, %p315
      %p317 = scmp.ne.s32.totalorder %s309, %s312
      %p318 = scmp.eq.s32.totalorder %s33, 0
      %p319 = por %p317, %p318
      %p320 = scmp.ne.s32.totalorder %s309, %s312
      %p321 = scmp.eq.s32.totalorder %s38, 1
      %p322 = por %p320, %p321
      %p323 = scmp.ne.s32.totalorder %s312, %s313
      %p324 = scmp.eq.s32.totalorder %s38, 0
      %p325 = por %p323, %p324
      %p326 = scmp.ne.s32.totalorder %s312, %s313
      %p327 = scmp.eq.s32.totalorder %s39, 1
      %p328 = por %p326, %p327
      %p330 = scmp.ne.s32.totalorder %s313, %s329
      %p331 = scmp.eq.s32.totalorder %s39, 0
      %p332 = por %p330, %p331
      %s333 = ssub.s32 %s33, %s40
      %p334 = scmp.eq.s32.totalorder %s333, 0
      %s336 = sadd.s32 %s335, 1
      %s337 = scalar_select %p334, %s335, %s336
      %p340 = pneg %p334
      %p341 = scmp.eq.s32.totalorder %s33, 1
      %p342 = por %p340, %p341
      %p343 = scmp.ne.s32.totalorder %s335, %s338
      %p344 = scmp.eq.s32.totalorder %s33, 0
      %p345 = por %p343, %p344
      %p346 = scmp.ne.s32.totalorder %s335, %s338
      %p347 = scmp.eq.s32.totalorder %s38, 1
      %p348 = por %p346, %p347
      %p349 = scmp.ne.s32.totalorder %s338, %s339
      %p350 = scmp.eq.s32.totalorder %s38, 0
      %p351 = por %p349, %p350
      %p352 = scmp.ne.s32.totalorder %s338, %s339
      %p353 = scmp.eq.s32.totalorder %s39, 1
      %p354 = por %p352, %p353
      %p356 = scmp.ne.s32.totalorder %s339, %s355
      %p357 = scmp.eq.s32.totalorder %s39, 0
      %p358 = por %p356, %p357
      %s359 = ssub.s32 %s33, %s40
      %p360 = scmp.eq.s32.totalorder %s359, 0
      %s362 = sadd.s32 %s361, 1
      %s363 = scalar_select %p360, %s361, %s362
      %p366 = pneg %p360
      %p367 = scmp.eq.s32.totalorder %s33, 1
      %p368 = por %p366, %p367
      %p369 = scmp.ne.s32.totalorder %s361, %s364
      %p370 = scmp.eq.s32.totalorder %s33, 0
      %p371 = por %p369, %p370
      %p372 = scmp.ne.s32.totalorder %s361, %s364
      %p373 = scmp.eq.s32.totalorder %s38, 1
      %p374 = por %p372, %p373
      %p375 = scmp.ne.s32.totalorder %s364, %s365
      %p376 = scmp.eq.s32.totalorder %s38, 0
      %p377 = por %p375, %p376
      %p378 = scmp.ne.s32.totalorder %s364, %s365
      %p379 = scmp.eq.s32.totalorder %s39, 1
      %p380 = por %p378, %p379
      %p382 = scmp.ne.s32.totalorder %s365, %s381
      %p383 = scmp.eq.s32.totalorder %s39, 0
      %p384 = por %p382, %p383
      %s385 = ssub.s32 %s33, %s40
      %p386 = scmp.eq.s32.totalorder %s385, 0
      %s388 = sadd.s32 %s387, 1
      %s389 = scalar_select %p386, %s387, %s388
      %p392 = pneg %p386
      %p393 = scmp.eq.s32.totalorder %s33, 1
      %p394 = por %p392, %p393
      %p395 = scmp.ne.s32.totalorder %s387, %s390
      %p396 = scmp.eq.s32.totalorder %s33, 0
      %p397 = por %p395, %p396
      %p398 = scmp.ne.s32.totalorder %s387, %s390
      %p399 = scmp.eq.s32.totalorder %s38, 1
      %p400 = por %p398, %p399
      %p401 = scmp.ne.s32.totalorder %s390, %s391
      %p402 = scmp.eq.s32.totalorder %s38, 0
      %p403 = por %p401, %p402
      %p404 = scmp.ne.s32.totalorder %s390, %s391
      %p405 = scmp.eq.s32.totalorder %s39, 1
      %p406 = por %p404, %p405
      %p408 = scmp.ne.s32.totalorder %s391, %s407
      %p409 = scmp.eq.s32.totalorder %s39, 0
      %p410 = por %p408, %p409
      %s411 = ssub.s32 %s33, %s40
      %p412 = scmp.eq.s32.totalorder %s411, 0
      %s414 = sadd.s32 %s413, 1
      %s415 = scalar_select %p412, %s413, %s414
      %p418 = pneg %p412
      %p419 = scmp.eq.s32.totalorder %s33, 1
      %p420 = por %p418, %p419
      %p421 = scmp.ne.s32.totalorder %s413, %s416
      %p422 = scmp.eq.s32.totalorder %s33, 0
      %p423 = por %p421, %p422
      %p424 = scmp.ne.s32.totalorder %s413, %s416
      %p425 = scmp.eq.s32.totalorder %s38, 1
      %p426 = por %p424, %p425
      %p427 = scmp.ne.s32.totalorder %s416, %s417
      %p428 = scmp.eq.s32.totalorder %s38, 0
      %p429 = por %p427, %p428
      %p430 = scmp.ne.s32.totalorder %s416, %s417
      %p431 = scmp.eq.s32.totalorder %s39, 1
      %p432 = por %p430, %p431
      %p434 = scmp.ne.s32.totalorder %s417, %s433
      %p435 = scmp.eq.s32.totalorder %s39, 0
      %p436 = por %p434, %p435
      %s438 = sadd.s32 %s437, 1
      %p441 = scmp.eq.s32.totalorder %s33, 1
      %p442 = scmp.ne.s32.totalorder %s437, %s439
      %p443 = scmp.eq.s32.totalorder %s33, 0
      %p444 = por %p442, %p443
      %p445 = scmp.ne.s32.totalorder %s437, %s439
      %p446 = scmp.eq.s32.totalorder %s38, 1
      %p447 = por %p445, %p446
      %p448 = scmp.ne.s32.totalorder %s439, %s440
      %p449 = scmp.eq.s32.totalorder %s38, 0
      %p450 = por %p448, %p449
      %p451 = scmp.ne.s32.totalorder %s439, %s440
      %p452 = scmp.eq.s32.totalorder %s39, 1
      %p453 = por %p451, %p452
      %p455 = scmp.ne.s32.totalorder %s440, %s454
      %p456 = scmp.eq.s32.totalorder %s39, 0
      %p457 = por %p455, %p456
      %s459 = sadd.s32 %s458, 1
      %p462 = scmp.eq.s32.totalorder %s33, 1
      %p463 = scmp.ne.s32.totalorder %s458, %s460
      %p464 = scmp.eq.s32.totalorder %s33, 0
      %p465 = por %p463, %p464
      %p466 = scmp.ne.s32.totalorder %s458, %s460
      %p467 = scmp.eq.s32.totalorder %s38, 1
      %p468 = por %p466, %p467
      %p469 = scmp.ne.s32.totalorder %s460, %s461
      %p470 = scmp.eq.s32.totalorder %s38, 0
      %p471 = por %p469, %p470
      %p472 = scmp.ne.s32.totalorder %s460, %s461
      %p473 = scmp.eq.s32.totalorder %s39, 1
      %p474 = por %p472, %p473
      %p476 = scmp.ne.s32.totalorder %s461, %s475
      %p477 = scmp.eq.s32.totalorder %s39, 0
      %p478 = por %p476, %p477
      %s480 = sadd.s32 %s479, 1
      %p483 = scmp.eq.s32.totalorder %s33, 1
      %p484 = scmp.ne.s32.totalorder %s479, %s481
      %p485 = scmp.eq.s32.totalorder %s33, 0
      %p486 = por %p484, %p485
      %p487 = scmp.ne.s32.totalorder %s479, %s481
      %p488 = scmp.eq.s32.totalorder %s38, 1
      %p489 = por %p487, %p488
      %p490 = scmp.ne.s32.totalorder %s481, %s482
      %p491 = scmp.eq.s32.totalorder %s38, 0
      %p492 = por %p490, %p491
      %p493 = scmp.ne.s32.totalorder %s481, %s482
      %p494 = scmp.eq.s32.totalorder %s39, 1
      %p495 = por %p493, %p494
      %p497 = scmp.ne.s32.totalorder %s482, %s496
      %p498 = scmp.eq.s32.totalorder %s39, 0
      %p499 = por %p497, %p498
      %s501 = sadd.s32 %s500, 1
      %p504 = scmp.eq.s32.totalorder %s33, 1
      %p505 = scmp.ne.s32.totalorder %s500, %s502
      %p506 = scmp.eq.s32.totalorder %s33, 0
      %p507 = por %p505, %p506
      %p508 = scmp.ne.s32.totalorder %s500, %s502
      %p509 = scmp.eq.s32.totalorder %s38, 1
      %p510 = por %p508, %p509
      %p511 = scmp.ne.s32.totalorder %s502, %s503
      %p512 = scmp.eq.s32.totalorder %s38, 0
      %p513 = por %p511, %p512
      %p514 = scmp.ne.s32.totalorder %s502, %s503
      %p515 = scmp.eq.s32.totalorder %s39, 1
      %p516 = por %p514, %p515
      %p518 = scmp.ne.s32.totalorder %s503, %s517
      %p519 = scmp.eq.s32.totalorder %s39, 0
      %p520 = por %p518, %p519
      %s522 = sadd.s32 %s521, 1
      %p525 = scmp.eq.s32.totalorder %s33, 1
      %p526 = scmp.ne.s32.totalorder %s521, %s523
      %p527 = scmp.eq.s32.totalorder %s33, 0
      %p528 = por %p526, %p527
      %p529 = scmp.ne.s32.totalorder %s521, %s523
      %p530 = scmp.eq.s32.totalorder %s38, 1
      %p531 = por %p529, %p530
      %p532 = scmp.ne.s32.totalorder %s523, %s524
      %p533 = scmp.eq.s32.totalorder %s38, 0
      %p534 = por %p532, %p533
      %p535 = scmp.ne.s32.totalorder %s523, %s524
      %p536 = scmp.eq.s32.totalorder %s39, 1
      %p537 = por %p535, %p536
      %p539 = scmp.ne.s32.totalorder %s524, %s538
      %p540 = scmp.eq.s32.totalorder %s39, 0
      %p541 = por %p539, %p540
      %p542 = scmp.le.s32.totalorder 1, %s33
      %p543 = scmp.lt.s32.totalorder %s33, 3
      %p544 = pnand %p542, %p543
      %p545 = pneg %p544
      // Predicated region
      $region9: #{sentiment_classifier_forward.1} parent=5 // pred_check
        _
      $region10: #{sentiment_classifier_forward.1} parent=5 // pred_check_branch
        %547 = sbr.rel (%p544) target = $region12
      $region11: #{sentiment_classifier_forward.1} parent=5 // pred_region
        %s548 = ssub.s32 %s33, 1
        // Predicated region
        $region13: #{sentiment_classifier_forward.1} parent=11 // pred_check
          %p549 = pneg %p54
        $region14: #{sentiment_classifier_forward.1} parent=11 // pred_check_branch
          %551 = sbr.rel (%p549) target = $region16
        $region15: #{sentiment_classifier_forward.1} parent=11 // pred_region
          _
        $region16: #{sentiment_classifier_forward.1} parent=11 // pred_fallthru
          _
        // Predicated region
        $region17: #{sentiment_classifier_forward.1} parent=11 // pred_check
          %p552 = pneg %p75
        $region18: #{sentiment_classifier_forward.1} parent=11 // pred_check_branch
          %554 = sbr.rel (%p552) target = $region20
        $region19: #{sentiment_classifier_forward.1} parent=11 // pred_region
          _
        $region20: #{sentiment_classifier_forward.1} parent=11 // pred_fallthru
          _
        // Predicated region
        $region21: #{sentiment_classifier_forward.1} parent=11 // pred_check
          %p555 = pneg %p96
        $region22: #{sentiment_classifier_forward.1} parent=11 // pred_check_branch
          %557 = sbr.rel (%p555) target = $region24
        $region23: #{sentiment_classifier_forward.1} parent=11 // pred_region
          _
        $region24: #{sentiment_classifier_forward.1} parent=11 // pred_fallthru
          _
        // Predicated region
        $region25: #{sentiment_classifier_forward.1} parent=11 // pred_check
          %p558 = pneg %p117
        $region26: #{sentiment_classifier_forward.1} parent=11 // pred_check_branch
          %560 = sbr.rel (%p558) target = $region28
        $region27: #{sentiment_classifier_forward.1} parent=11 // pred_region
          _
        $region28: #{sentiment_classifier_forward.1} parent=11 // pred_fallthru
          _
        // Predicated region
        $region29: #{sentiment_classifier_forward.1} parent=11 // pred_check
          %p561 = pneg %p450
        $region30: #{sentiment_classifier_forward.1} parent=11 // pred_check_branch
          %563 = sbr.rel (%p561) target = $region32
        $region31: #{sentiment_classifier_forward.1} parent=11 // pred_region
          _
        $region32: #{sentiment_classifier_forward.1} parent=11 // pred_fallthru
          _
        // Predicated region
        $region33: #{sentiment_classifier_forward.1} parent=11 // pred_check
          %p564 = pneg %p471
        $region34: #{sentiment_classifier_forward.1} parent=11 // pred_check_branch
          %566 = sbr.rel (%p564) target = $region36
        $region35: #{sentiment_classifier_forward.1} parent=11 // pred_region
          _
        $region36: #{sentiment_classifier_forward.1} parent=11 // pred_fallthru
          _
        // Predicated region
        $region37: #{sentiment_classifier_forward.1} parent=11 // pred_check
          %p567 = pneg %p492
        $region38: #{sentiment_classifier_forward.1} parent=11 // pred_check_branch
          %569 = sbr.rel (%p567) target = $region40
        $region39: #{sentiment_classifier_forward.1} parent=11 // pred_region
          _
        $region40: #{sentiment_classifier_forward.1} parent=11 // pred_fallthru
          _
        // Predicated region
        $region41: #{sentiment_classifier_forward.1} parent=11 // pred_check
          %p570 = pneg %p513
        $region42: #{sentiment_classifier_forward.1} parent=11 // pred_check_branch
          %572 = sbr.rel (%p570) target = $region44
        $region43: #{sentiment_classifier_forward.1} parent=11 // pred_region
          _
        $region44: #{sentiment_classifier_forward.1} parent=11 // pred_fallthru
          _
      $region12: #{sentiment_classifier_forward.1} parent=5 // pred_fallthru
        _
      %p573 = scmp.lt.s32.totalorder %s33, 2
      // Predicated region
      $region45: #{sentiment_classifier_forward.1} parent=5 // pred_check
        %p574 = pneg %p573
      $region46: #{sentiment_classifier_forward.1} parent=5 // pred_check_branch
        %576 = sbr.rel (%p574) target = $region48
      $region47: #{sentiment_classifier_forward.1} parent=5 // pred_region
        // Predicated region
        $region49: #{sentiment_classifier_forward.1} parent=47 // pred_check
          %p577 = pneg %p137
        $region50: #{sentiment_classifier_forward.1} parent=47 // pred_check_branch
          %579 = sbr.rel (%p577) target = $region52
        $region51: #{sentiment_classifier_forward.1} parent=47 // pred_region
          %s580 = sand.u32 %s127, 1
          %s581 = scalar_lea.sflag [#allocation5], %s580
          %s582 = sand.u32 %s127, 1
          %s583 = smul.addr %s582, 192
          %s584 = scalar_lea.vmem [#allocation4], %s583
          %586 = vsyncadd %s581, 0
          %s587 = smul.addr %s33, 48
          %s588 = smul.addr %s587, 4
          %s589 = scalar_lea.hbm %s4, %s588
          %s590 = sshll.u32 %s589, 4
          %s591 = int_to_ptr.hbm [resolvable:$true] %s590
          %s592 = sshll.u32 %s584, 4
          %s593 = int_to_ptr.vmem [resolvable:$true] %s592
          %598 = dma.hbm_to_vmem [thread:$0]  %s591, 3072, %s593, %s581, 192, 192, 12
        $region52: #{sentiment_classifier_forward.1} parent=47 // pred_fallthru
          _
        // Predicated region
        $region53: #{sentiment_classifier_forward.1} parent=47 // pred_check
          %p599 = pneg %p163
        $region54: #{sentiment_classifier_forward.1} parent=47 // pred_check_branch
          %601 = sbr.rel (%p599) target = $region56
        $region55: #{sentiment_classifier_forward.1} parent=47 // pred_region
          %p602 = scmp.lt.s32.totalorder %s33, 1
          %s603 = scalar_select %p602, %s33, 1
          %s604 = smul.addr %s603, 3
          %s605 = scalar_lea.vmem %s5, %s604
        $region56: #{sentiment_classifier_forward.1} parent=47 // pred_fallthru
          _
        // Predicated region
        $region57: #{sentiment_classifier_forward.1} parent=47 // pred_check
          %p606 = pneg %p189
        $region58: #{sentiment_classifier_forward.1} parent=47 // pred_check_branch
          %608 = sbr.rel (%p606) target = $region60
        $region59: #{sentiment_classifier_forward.1} parent=47 // pred_region
          %s609 = sand.u32 %s33, 1
          %s610 = scalar_lea.sflag [#allocation8], %s609
          %s611 = sand.u32 %s179, 1
          %s612 = smul.addr %s611, 64
          %s613 = scalar_lea.vmem [#allocation7], %s612
          %615 = vsyncadd %s610, 0
          %s616 = smul.addr %s33, 16
          %s617 = smul.addr %s616, 4
          %s618 = scalar_lea.hbm %s6, %s617
          %s619 = sshll.u32 %s618, 4
          %s620 = int_to_ptr.hbm [resolvable:$true] %s619
          %s621 = sshll.u32 %s613, 4
          %s622 = int_to_ptr.vmem [resolvable:$true] %s621
          %627 = dma.hbm_to_vmem [thread:$0]  %s620, 1024, %s622, %s610, 64, 64, 4
        $region60: #{sentiment_classifier_forward.1} parent=47 // pred_fallthru
          _
        // Predicated region
        $region61: #{sentiment_classifier_forward.1} parent=47 // pred_check
          %p628 = pneg %p215
        $region62: #{sentiment_classifier_forward.1} parent=47 // pred_check_branch
          %630 = sbr.rel (%p628) target = $region64
        $region63: #{sentiment_classifier_forward.1} parent=47 // pred_region
          %p631 = scmp.lt.s32.totalorder %s33, 1
          %s632 = scalar_select %p631, %s33, 1
          %s633 = scalar_lea.vmem %s7, %s632
        $region64: #{sentiment_classifier_forward.1} parent=47 // pred_fallthru
          _
        // Predicated region
        $region65: #{sentiment_classifier_forward.1} parent=47 // pred_check
          %p634 = pneg %p241
        $region66: #{sentiment_classifier_forward.1} parent=47 // pred_check_branch
          %636 = sbr.rel (%p634) target = $region68
        $region67: #{sentiment_classifier_forward.1} parent=47 // pred_region
          %p637 = scmp.lt.s32.totalorder %s33, 1
          %s638 = scalar_select %p637, %s33, 1
          %s639 = scalar_lea.vmem %s8, %s638
        $region68: #{sentiment_classifier_forward.1} parent=47 // pred_fallthru
          _
        // Predicated region
        $region69: #{sentiment_classifier_forward.1} parent=47 // pred_check
          %p640 = pneg %p267
        $region70: #{sentiment_classifier_forward.1} parent=47 // pred_check_branch
          %642 = sbr.rel (%p640) target = $region72
        $region71: #{sentiment_classifier_forward.1} parent=47 // pred_region
          %p643 = scmp.lt.s32.totalorder %s33, 1
          %s644 = scalar_select %p643, %s33, 1
          %s645 = scalar_lea.vmem %s9, %s644
        $region72: #{sentiment_classifier_forward.1} parent=47 // pred_fallthru
          _
        // Predicated region
        $region73: #{sentiment_classifier_forward.1} parent=47 // pred_check
          %p646 = pneg %p293
        $region74: #{sentiment_classifier_forward.1} parent=47 // pred_check_branch
          %648 = sbr.rel (%p646) target = $region76
        $region75: #{sentiment_classifier_forward.1} parent=47 // pred_region
          %p649 = scmp.lt.s32.totalorder %s33, 1
          %s650 = scalar_select %p649, %s33, 1
          %s651 = smul.addr %s650, 32
          %s652 = smul.addr %s651, 4
          %s653 = scalar_lea.vmem %s10, %s652
        $region76: #{sentiment_classifier_forward.1} parent=47 // pred_fallthru
          _
        // Predicated region
        $region77: #{sentiment_classifier_forward.1} parent=47 // pred_check
          %p654 = pneg %p319
        $region78: #{sentiment_classifier_forward.1} parent=47 // pred_check_branch
          %656 = sbr.rel (%p654) target = $region80
        $region79: #{sentiment_classifier_forward.1} parent=47 // pred_region
          %p657 = scmp.lt.s32.totalorder %s33, 1
          %s658 = scalar_select %p657, %s33, 1
          %s659 = smul.addr %s658, 2
          %s660 = scalar_lea.vmem %s11, %s659
        $region80: #{sentiment_classifier_forward.1} parent=47 // pred_fallthru
          _
        // Predicated region
        $region81: #{sentiment_classifier_forward.1} parent=47 // pred_check
          %p661 = pneg %p345
        $region82: #{sentiment_classifier_forward.1} parent=47 // pred_check_branch
          %663 = sbr.rel (%p661) target = $region84
        $region83: #{sentiment_classifier_forward.1} parent=47 // pred_region
          %s664 = sand.u32 %s33, 1
          %s665 = scalar_lea.sflag [#allocation8], %s664
          %s666 = sand.u32 %s335, 1
          %s667 = smul.addr %s666, 128
          %s668 = scalar_lea.vmem [#allocation9], %s667
          %670 = vsyncadd %s665, 0
          %s671 = smul.addr %s33, 32
          %s672 = smul.addr %s671, 4
          %s673 = scalar_lea.hbm %s12, %s672
          %s674 = sshll.u32 %s673, 4
          %s675 = int_to_ptr.hbm [resolvable:$true] %s674
          %s676 = sshll.u32 %s668, 4
          %s677 = int_to_ptr.vmem [resolvable:$true] %s676
          %682 = dma.hbm_to_vmem [thread:$0]  %s675, 2048, %s677, %s665, 64, 64, 4
        $region84: #{sentiment_classifier_forward.1} parent=47 // pred_fallthru
          _
        // Predicated region
        $region85: #{sentiment_classifier_forward.1} parent=47 // pred_check
          %p683 = pneg %p371
        $region86: #{sentiment_classifier_forward.1} parent=47 // pred_check_branch
          %685 = sbr.rel (%p683) target = $region88
        $region87: #{sentiment_classifier_forward.1} parent=47 // pred_region
          %p686 = scmp.lt.s32.totalorder %s33, 1
          %s687 = scalar_select %p686, %s33, 1
          %s688 = scalar_lea.vmem %s13, %s687
        $region88: #{sentiment_classifier_forward.1} parent=47 // pred_fallthru
          _
        // Predicated region
        $region89: #{sentiment_classifier_forward.1} parent=47 // pred_check
          %p689 = pneg %p397
        $region90: #{sentiment_classifier_forward.1} parent=47 // pred_check_branch
          %691 = sbr.rel (%p689) target = $region92
        $region91: #{sentiment_classifier_forward.1} parent=47 // pred_region
          %p692 = scmp.lt.s32.totalorder %s33, 1
          %s693 = scalar_select %p692, %s33, 1
          %s694 = scalar_lea.vmem %s14, %s693
        $region92: #{sentiment_classifier_forward.1} parent=47 // pred_fallthru
          _
        // Predicated region
        $region93: #{sentiment_classifier_forward.1} parent=47 // pred_check
          %p695 = pneg %p423
        $region94: #{sentiment_classifier_forward.1} parent=47 // pred_check_branch
          %697 = sbr.rel (%p695) target = $region96
        $region95: #{sentiment_classifier_forward.1} parent=47 // pred_region
          %p698 = scmp.lt.s32.totalorder %s33, 1
          %s699 = scalar_select %p698, %s33, 1
          %s700 = scalar_lea.vmem %s15, %s699
        $region96: #{sentiment_classifier_forward.1} parent=47 // pred_fallthru
          _
      $region48: #{sentiment_classifier_forward.1} parent=5 // pred_fallthru
        _
      %p701 = scmp.le.s32.totalorder 1, %s33
      %p702 = scmp.lt.s32.totalorder %s33, 3
      %p703 = pnand %p701, %p702
      %p704 = pneg %p703
      // Predicated region
      $region97: #{sentiment_classifier_forward.1} parent=5 // pred_check
        _
      $region98: #{sentiment_classifier_forward.1} parent=5 // pred_check_branch
        %706 = sbr.rel (%p703) target = $region100
      $region99: #{sentiment_classifier_forward.1} parent=5 // pred_region
        %s707 = ssub.s32 %s33, 1
        %s708 = sand.u32 %s130, 1
        %s709 = scalar_lea.sflag [#allocation5], %s708
        %s710 = sand.u32 %s130, 1
        %s711 = smul.addr %s710, 192
        %s712 = scalar_lea.vmem [#allocation4], %s711
        // Predicated region
        $region101: #{sentiment_classifier_forward.1} parent=99 // pred_check
          %p713 = pneg %p143
        $region102: #{sentiment_classifier_forward.1} parent=99 // pred_check_branch
          %715 = sbr.rel (%p713) target = $region104
        $region103: #{sentiment_classifier_forward.1} parent=99 // pred_region
          %717 = dma.done %s709, 3072
        $region104: #{sentiment_classifier_forward.1} parent=99 // pred_fallthru
          _
        %s718 = sand.u32 %s38, 1
        %s719 = scalar_lea.sflag [#allocation8], %s718
        %s720 = sand.u32 %s182, 1
        %s721 = smul.addr %s720, 64
        %s722 = scalar_lea.vmem [#allocation7], %s721
        // Predicated region
        $region105: #{sentiment_classifier_forward.1} parent=99 // pred_check
          %p723 = pneg %p195
        $region106: #{sentiment_classifier_forward.1} parent=99 // pred_check_branch
          %725 = sbr.rel (%p723) target = $region108
        $region107: #{sentiment_classifier_forward.1} parent=99 // pred_region
          %727 = dma.done %s719, 1024
        $region108: #{sentiment_classifier_forward.1} parent=99 // pred_fallthru
          _
        %s728 = sand.u32 %s38, 1
        %s729 = scalar_lea.sflag [#allocation8], %s728
        %s730 = sand.u32 %s338, 1
        %s731 = smul.addr %s730, 128
        %s732 = scalar_lea.vmem [#allocation9], %s731
        // Predicated region
        $region109: #{sentiment_classifier_forward.1} parent=99 // pred_check
          %p733 = pneg %p351
        $region110: #{sentiment_classifier_forward.1} parent=99 // pred_check_branch
          %735 = sbr.rel (%p733) target = $region112
        $region111: #{sentiment_classifier_forward.1} parent=99 // pred_region
          %737 = dma.done %s729, 2048
        $region112: #{sentiment_classifier_forward.1} parent=99 // pred_fallthru
          _
        %p738 = pneg %p54
        %p739 = pneg %p51
        %p740 = pneg %p75
        %p741 = pneg %p72
        %p742 = pneg %p96
        %p743 = pneg %p93
        %p744 = pneg %p117
        %p745 = pneg %p114
        %s746 = sand.u32 %s130, 1
        %s747 = scalar_lea.sflag [#allocation5], %s746
        %s748 = sand.u32 %s130, 1
        %s749 = smul.addr %s748, 192
        %s750 = scalar_lea.vmem [#allocation4], %s749
        %p751 = pneg %p143
        %p752 = pneg %p140
        %p753 = scmp.lt.s32.totalorder %s38, 1
        %s754 = scalar_select %p753, %s38, 1
        %s755 = smul.addr %s754, 3
        %s756 = scalar_lea.vmem %s5, %s755
        %p757 = pneg %p169
        %p758 = pneg %p166
        %s759 = sand.u32 %s38, 1
        %s760 = scalar_lea.sflag [#allocation8], %s759
        %s761 = sand.u32 %s182, 1
        %s762 = smul.addr %s761, 64
        %s763 = scalar_lea.vmem [#allocation7], %s762
        %p764 = pneg %p195
        %p765 = pneg %p192
        %p766 = scmp.lt.s32.totalorder %s38, 1
        %s767 = scalar_select %p766, %s38, 1
        %s768 = scalar_lea.vmem %s7, %s767
        %p769 = pneg %p221
        %p770 = pneg %p218
        %p771 = scmp.lt.s32.totalorder %s38, 1
        %s772 = scalar_select %p771, %s38, 1
        %s773 = scalar_lea.vmem %s8, %s772
        %p774 = pneg %p247
        %p775 = pneg %p244
        %p776 = scmp.lt.s32.totalorder %s38, 1
        %s777 = scalar_select %p776, %s38, 1
        %s778 = scalar_lea.vmem %s9, %s777
        %p779 = pneg %p273
        %p780 = pneg %p270
        %p781 = scmp.lt.s32.totalorder %s38, 1
        %s782 = scalar_select %p781, %s38, 1
        %s783 = smul.addr %s782, 32
        %s784 = smul.addr %s783, 4
        %s785 = scalar_lea.vmem %s10, %s784
        %p786 = pneg %p299
        %p787 = pneg %p296
        %p788 = scmp.lt.s32.totalorder %s38, 1
        %s789 = scalar_select %p788, %s38, 1
        %s790 = smul.addr %s789, 2
        %s791 = scalar_lea.vmem %s11, %s790
        %p792 = pneg %p325
        %p793 = pneg %p322
        %s794 = sand.u32 %s38, 1
        %s795 = scalar_lea.sflag [#allocation8], %s794
        %s796 = sand.u32 %s338, 1
        %s797 = smul.addr %s796, 128
        %s798 = scalar_lea.vmem [#allocation9], %s797
        %p799 = pneg %p351
        %p800 = pneg %p348
        %p801 = scmp.lt.s32.totalorder %s38, 1
        %s802 = scalar_select %p801, %s38, 1
        %s803 = scalar_lea.vmem %s13, %s802
        %p804 = pneg %p377
        %p805 = pneg %p374
        %p806 = scmp.lt.s32.totalorder %s38, 1
        %s807 = scalar_select %p806, %s38, 1
        %s808 = scalar_lea.vmem %s14, %s807
        %p809 = pneg %p403
        %p810 = pneg %p400
        %p811 = scmp.lt.s32.totalorder %s38, 1
        %s812 = scalar_select %p811, %s38, 1
        %s813 = scalar_lea.vmem %s15, %s812
        %p814 = pneg %p429
        %p815 = pneg %p426
        %p816 = pneg %p450
        %p817 = pneg %p447
        %p818 = pneg %p471
        %p819 = pneg %p468
        %p820 = pneg %p492
        %p821 = pneg %p489
        %p822 = pneg %p513
        %p823 = pneg %p510
        %p824 = pneg %p534
        %p825 = pneg %p531
        %p826 = scmp.lt.s32.totalorder %s38, 1
        %s827 = scalar_select %p826, %s38, 1
        %s828 = smul.addr %s827, 3
        %s829 = scalar_lea.vmem %s5, %s828
        %p830 = scmp.lt.s32.totalorder %s38, 1
        %s831 = scalar_select %p830, %s38, 1
        %s832 = scalar_lea.vmem %s7, %s831
        %p833 = scmp.lt.s32.totalorder %s38, 1
        %s834 = scalar_select %p833, %s38, 1
        %s835 = scalar_lea.vmem %s8, %s834
        %p836 = scmp.lt.s32.totalorder %s38, 1
        %s837 = scalar_select %p836, %s38, 1
        %s838 = scalar_lea.vmem %s9, %s837
        %p839 = scmp.lt.s32.totalorder %s38, 1
        %s840 = scalar_select %p839, %s38, 1
        %s841 = smul.addr %s840, 32
        %s842 = smul.addr %s841, 4
        %s843 = scalar_lea.vmem %s10, %s842
        %p844 = scmp.lt.s32.totalorder %s38, 1
        %s845 = scalar_select %p844, %s38, 1
        %s846 = smul.addr %s845, 2
        %s847 = scalar_lea.vmem %s11, %s846
        %p848 = scmp.lt.s32.totalorder %s38, 1
        %s849 = scalar_select %p848, %s38, 1
        %s850 = scalar_lea.vmem %s13, %s849
        %p851 = scmp.lt.s32.totalorder %s38, 1
        %s852 = scalar_select %p851, %s38, 1
        %s853 = scalar_lea.vmem %s14, %s852
        %p854 = scmp.lt.s32.totalorder %s38, 1
        %s855 = scalar_select %p854, %s38, 1
        %s856 = scalar_lea.vmem %s15, %s855
        %p858 = scmp.eq.s32.totalorder %s38, 0
        // Predicated region
        $region113: #{sentiment_classifier_forward.1} parent=99 // pred_check
          %p859 = pneg %p858
        $region114: #{sentiment_classifier_forward.1} parent=99 // pred_check_branch
          %861 = sbr.rel (%p859) target = $region116
        $region115: #{sentiment_classifier_forward.1} parent=99 // pred_region
          %v862 = vld [vmem:[%s0] sm:$0xff]
          %v863 = vld [vmem:[%s0 + $0x8] sm:$0xff]
          %v864 = vld [vmem:[%s0 + $0x10] sm:$0xff]
          %v865 = vld [vmem:[%s0 + $0x18] sm:$0xff]
          %v866 = vld [vmem:[%s2] sm:$0x1]
          %v867 = vld [vmem:[%s3] sm:$0x1]
          %868 = vadd.xlane.f32.xlu0 %v862
          %v869 = vpop.xlane.xlu0 %868
          %870 = vadd.xlane.f32.xlu0 %v863
          %v871 = vpop.xlane.xlu0 %870
          %872 = vadd.xlane.f32.xlu0 %v864
          %v873 = vpop.xlane.xlu0 %872
          %874 = vadd.xlane.f32.xlu0 %v865
          %v875 = vpop.xlane.xlu0 %874
          %v876 = vrcp.pop 128.0
          %v877 = vmul.f32 128.0, %v876
          %v878 = vsub.f32 1.0, %v877
          %v879 = vmul.f32 %v876, %v878
          %v880 = vadd.f32 %v876, %v879
          %vm881 = vweird.f32 %v876
          %v882 = vsel %vm881, %v876, %v880
          %v883 = vmul.f32 %v869, %v882
          %v884 = vmul.f32 %v871, %v882
          %v885 = vmul.f32 %v873, %v882
          %v886 = vmul.f32 %v875, %v882
          %v887 = vsub.f32 %v862, %v883
          %v888 = vsub.f32 %v863, %v884
          %v889 = vsub.f32 %v864, %v885
          %v890 = vsub.f32 %v865, %v886
          %v891 = vmul.f32 %v887, %v887
          %v892 = vmul.f32 %v888, %v888
          %v893 = vmul.f32 %v889, %v889
          %v894 = vmul.f32 %v890, %v890
          %895 = vadd.xlane.f32.xlu0 %v891
          %v896 = vpop.xlane.xlu0 %895
          %897 = vadd.xlane.f32.xlu0 %v892
          %v898 = vpop.xlane.xlu0 %897
          %899 = vadd.xlane.f32.xlu0 %v893
          %v900 = vpop.xlane.xlu0 %899
          %901 = vadd.xlane.f32.xlu0 %v894
          %v902 = vpop.xlane.xlu0 %901
          %v903 = vmul.f32 %v896, %v882
          %v904 = vmul.f32 %v898, %v882
          %v905 = vmul.f32 %v900, %v882
          %v906 = vmul.f32 %v902, %v882
          %v907 = vadd.f32 %v903, 1e-12
          %v908 = vadd.f32 %v904, 1e-12
          %v909 = vadd.f32 %v905, 1e-12
          %v910 = vadd.f32 %v906, 1e-12
          %v911 = vrsqrt.pop %v907
          %v912 = vmul.f32 %v911, %v907
          %v913 = vmul.f32 %v912, %v911
          %v914 = vmul.f32 0.5, %v913
          %v915 = vsub.f32 1.5, %v914
          %v916 = vmul.f32 %v911, %v915
          %vm917 = vweird.f32 %v907
          %vm918 = vweird.f32 %v911
          %vm919 = vmor %vm917, %vm918
          %v920 = vsel %vm919, %v911, %v916
          %v921 = vrsqrt.pop %v908
          %v922 = vmul.f32 %v921, %v908
          %v923 = vmul.f32 %v922, %v921
          %v924 = vmul.f32 0.5, %v923
          %v925 = vsub.f32 1.5, %v924
          %v926 = vmul.f32 %v921, %v925
          %vm927 = vweird.f32 %v908
          %vm928 = vweird.f32 %v921
          %vm929 = vmor %vm927, %vm928
          %v930 = vsel %vm929, %v921, %v926
          %v931 = vrsqrt.pop %v909
          %v932 = vmul.f32 %v931, %v909
          %v933 = vmul.f32 %v932, %v931
          %v934 = vmul.f32 0.5, %v933
          %v935 = vsub.f32 1.5, %v934
          %v936 = vmul.f32 %v931, %v935
          %vm937 = vweird.f32 %v909
          %vm938 = vweird.f32 %v931
          %vm939 = vmor %vm937, %vm938
          %v940 = vsel %vm939, %v931, %v936
          %v941 = vrsqrt.pop %v910
          %v942 = vmul.f32 %v941, %v910
          %v943 = vmul.f32 %v942, %v941
          %v944 = vmul.f32 0.5, %v943
          %v945 = vsub.f32 1.5, %v944
          %v946 = vmul.f32 %v941, %v945
          %vm947 = vweird.f32 %v910
          %vm948 = vweird.f32 %v941
          %vm949 = vmor %vm947, %vm948
          %v950 = vsel %vm949, %v941, %v946
          %v951 = vmul.f32 %v887, %v920
          %v952 = vmul.f32 %v888, %v930
          %v953 = vmul.f32 %v889, %v940
          %v954 = vmul.f32 %v890, %v950
          %v956 = vperm.slane %v866, 0
          %v958 = vmul.f32 %v951, %v956
          %v959 = vmul.f32 %v952, %v956
          %v960 = vmul.f32 %v953, %v956
          %v961 = vmul.f32 %v954, %v956
          %v963 = vperm.slane %v867, 0
          %v965 = vadd.f32 %v958, %v963
          %v966 = vadd.f32 %v959, %v963
          %v967 = vadd.f32 %v960, %v963
          %v968 = vadd.f32 %v961, %v963
          %969 = vst [vmem:[#allocation2] sm:$0xff] %v965
          %970 = vst [vmem:[#allocation2 + $0x8] sm:$0xff] %v966
          %971 = vst [vmem:[#allocation2 + $0x10] sm:$0xff] %v967
          %972 = vst [vmem:[#allocation2 + $0x18] sm:$0xff] %v968
        $region116: #{sentiment_classifier_forward.1} parent=99 // pred_fallthru
          _
        %v973 = vld [vmem:[#allocation2] sm:$0xff]
        %v974 = vld [vmem:[#allocation2 + $0x8] sm:$0xff]
        %v975 = vld [vmem:[#allocation2 + $0x10] sm:$0xff]
        %v976 = vld [vmem:[#allocation2 + $0x18] sm:$0xff]
        %v977 = vld [vmem:[%s1] sm:$0x1]
        %v978 = vld [vmem:[%s1 + $0x1] sm:$0x1]
        %v981 = vperm.slane %v977, 0
        %v982 = vperm.slane %v978, 0
        %v985 = vpack.c.bf16 %v974, %v973
        %v986 = vpack.c.bf16 %v976, %v975
        %v987 = vld [vmem:[%s712] sm:$0xff]
        %v988 = vld [vmem:[%s712 + $0x8] sm:$0xf]
        %v989 = vld [vmem:[%s712 + $0xc] sm:$0xff]
        %v990 = vld [vmem:[%s712 + $0x14] sm:$0xf]
        %v991 = vld [vmem:[%s712 + $0x18] sm:$0xff]
        %v992 = vld [vmem:[%s712 + $0x20] sm:$0xf]
        %v993 = vld [vmem:[%s712 + $0x24] sm:$0xff]
        %v994 = vld [vmem:[%s712 + $0x2c] sm:$0xf]
        %v995 = vld [vmem:[%s712 + $0x30] sm:$0xff]
        %v996 = vld [vmem:[%s712 + $0x38] sm:$0xf]
        %v997 = vld [vmem:[%s712 + $0x3c] sm:$0xff]
        %v998 = vld [vmem:[%s712 + $0x44] sm:$0xf]
        %v999 = vld [vmem:[%s712 + $0x48] sm:$0xff]
        %v1000 = vld [vmem:[%s712 + $0x50] sm:$0xf]
        %v1001 = vld [vmem:[%s712 + $0x54] sm:$0xff]
        %v1002 = vld [vmem:[%s712 + $0x5c] sm:$0xf]
        %v1003 = vld [vmem:[%s712 + $0x60] sm:$0xff]
        %v1004 = vld [vmem:[%s712 + $0x68] sm:$0xf]
        %v1005 = vld [vmem:[%s712 + $0x6c] sm:$0xff]
        %v1006 = vld [vmem:[%s712 + $0x74] sm:$0xf]
        %v1007 = vld [vmem:[%s712 + $0x78] sm:$0xff]
        %v1008 = vld [vmem:[%s712 + $0x80] sm:$0xf]
        %v1009 = vld [vmem:[%s712 + $0x84] sm:$0xff]
        %v1010 = vld [vmem:[%s712 + $0x8c] sm:$0xf]
        %v1011 = vld [vmem:[%s712 + $0x90] sm:$0xff]
        %v1012 = vld [vmem:[%s712 + $0x98] sm:$0xf]
        %v1013 = vld [vmem:[%s712 + $0x9c] sm:$0xff]
        %v1014 = vld [vmem:[%s712 + $0xa4] sm:$0xf]
        %v1015 = vld [vmem:[%s712 + $0xa8] sm:$0xff]
        %v1016 = vld [vmem:[%s712 + $0xb0] sm:$0xf]
        %v1017 = vld [vmem:[%s712 + $0xb4] sm:$0xff]
        %v1018 = vld [vmem:[%s712 + $0xbc] sm:$0xf]
        %v1019 = vld [vmem:[%s829] sm:$0x7]
        %v1021 = vperm.slane %v1019, 0
        %v1022 = vperm.slane %v1019, 1
        %v1023 = vperm.slane %v1019, 2
        %v1059 = vunpack.c.l.b16 %v987
        %v1060 = vunpack.c.h.b16 %v987
        %v1061 = vunpack.c.l.b16 %v988
        %v1062 = vunpack.c.l.b16 %v989
        %v1063 = vunpack.c.h.b16 %v989
        %v1064 = vunpack.c.l.b16 %v990
        %v1065 = vunpack.c.l.b16 %v991
        %v1066 = vunpack.c.h.b16 %v991
        %v1067 = vunpack.c.l.b16 %v992
        %v1068 = vunpack.c.l.b16 %v993
        %v1069 = vunpack.c.h.b16 %v993
        %v1070 = vunpack.c.l.b16 %v994
        %v1071 = vunpack.c.l.b16 %v995
        %v1072 = vunpack.c.h.b16 %v995
        %v1073 = vunpack.c.l.b16 %v996
        %v1074 = vunpack.c.l.b16 %v997
        %v1075 = vunpack.c.h.b16 %v997
        %v1076 = vunpack.c.l.b16 %v998
        %v1077 = vunpack.c.l.b16 %v999
        %v1078 = vunpack.c.h.b16 %v999
        %v1079 = vunpack.c.l.b16 %v1000
        %v1080 = vunpack.c.l.b16 %v1001
        %v1081 = vunpack.c.h.b16 %v1001
        %v1082 = vunpack.c.l.b16 %v1002
        %v1083 = vunpack.c.l.b16 %v1003
        %v1084 = vunpack.c.h.b16 %v1003
        %v1085 = vunpack.c.l.b16 %v1004
        %v1086 = vunpack.c.l.b16 %v1005
        %v1087 = vunpack.c.h.b16 %v1005
        %v1088 = vunpack.c.l.b16 %v1006
        %v1089 = vunpack.c.l.b16 %v1007
        %v1090 = vunpack.c.h.b16 %v1007
        %v1091 = vunpack.c.l.b16 %v1008
        %v1092 = vunpack.c.l.b16 %v1009
        %v1093 = vunpack.c.h.b16 %v1009
        %v1094 = vunpack.c.l.b16 %v1010
        %v1095 = vunpack.c.l.b16 %v1011
        %v1096 = vunpack.c.h.b16 %v1011
        %v1097 = vunpack.c.l.b16 %v1012
        %v1098 = vunpack.c.l.b16 %v1013
        %v1099 = vunpack.c.h.b16 %v1013
        %v1100 = vunpack.c.l.b16 %v1014
        %v1101 = vunpack.c.l.b16 %v1015
        %v1102 = vunpack.c.h.b16 %v1015
        %v1103 = vunpack.c.l.b16 %v1016
        %v1104 = vunpack.c.l.b16 %v1017
        %v1105 = vunpack.c.h.b16 %v1017
        %v1106 = vunpack.c.l.b16 %v1018
        %v1107 = vpack.c.b16 %v1062, %v1059
        %v1108 = vpack.c.b16 %v1063, %v1060
        %v1109 = vpack.c.b16 %v1064, %v1061
        %v1110 = vpack.c.b16 %v1068, %v1065
        %v1111 = vpack.c.b16 %v1069, %v1066
        %v1112 = vpack.c.b16 %v1070, %v1067
        %v1113 = vpack.c.b16 %v1074, %v1071
        %v1114 = vpack.c.b16 %v1075, %v1072
        %v1115 = vpack.c.b16 %v1076, %v1073
        %v1116 = vpack.c.b16 %v1080, %v1077
        %v1117 = vpack.c.b16 %v1081, %v1078
        %v1118 = vpack.c.b16 %v1082, %v1079
        %v1119 = vpack.c.b16 %v1086, %v1083
        %v1120 = vpack.c.b16 %v1087, %v1084
        %v1121 = vpack.c.b16 %v1088, %v1085
        %v1122 = vpack.c.b16 %v1092, %v1089
        %v1123 = vpack.c.b16 %v1093, %v1090
        %v1124 = vpack.c.b16 %v1094, %v1091
        %v1125 = vpack.c.b16 %v1098, %v1095
        %v1126 = vpack.c.b16 %v1099, %v1096
        %v1127 = vpack.c.b16 %v1100, %v1097
        %v1128 = vpack.c.b16 %v1104, %v1101
        %v1129 = vpack.c.b16 %v1105, %v1102
        %v1130 = vpack.c.b16 %v1106, %v1103
        %1155 = vmatpush.bf16.msra.mxu0 %v1128
        %1156 = vmatpush.bf16.msra.mxu0 %v1125
        %1157 = vmatpush.bf16.msra.mxu0 %v1122
        %1158 = vmatpush.bf16.msra.mxu0 %v1119
        %1159 = vmatpush.bf16.msra.mxu0 %v1116
        %1160 = vmatpush.bf16.msra.mxu0 %v1113
        %1161 = vmatpush.bf16.msra.mxu0 %v1110
        %1162 = vmatpush.bf16.msra.mxu0 %v1107
        %1163 = vmatmul.bf16.gmra.mxu0 %v985
        %v1164 = vpop.f32.mrf.mxu0
        %v1165 = vadd.f32 %v1021, %v1164
        %v1166 = vpop.f32.mrf.mxu0
        %v1167 = vadd.f32 %v1021, %v1166
        %1168 = vmatmul.bf16.gmra.mxu0 %v986
        %v1169 = vpop.f32.mrf.mxu0
        %v1170 = vadd.f32 %v1021, %v1169
        %v1171 = vpop.f32.mrf.mxu0
        %v1172 = vadd.f32 %v1021, %v1171
        %1173 = vdwg.mxu0
        %1174 = vmatpush.bf16.msra.mxu0 %v1129
        %1175 = vmatpush.bf16.msra.mxu0 %v1126
        %1176 = vmatpush.bf16.msra.mxu0 %v1123
        %1177 = vmatpush.bf16.msra.mxu0 %v1120
        %1178 = vmatpush.bf16.msra.mxu0 %v1117
        %1179 = vmatpush.bf16.msra.mxu0 %v1114
        %1180 = vmatpush.bf16.msra.mxu0 %v1111
        %1181 = vmatpush.bf16.msra.mxu0 %v1108
        %1182 = vmatmul.bf16.gmra.mxu0 %v985
        %v1183 = vpop.f32.mrf.mxu0
        %v1184 = vadd.f32 %v1022, %v1183
        %v1185 = vpop.f32.mrf.mxu0
        %v1186 = vadd.f32 %v1022, %v1185
        %1187 = vmatmul.bf16.gmra.mxu0 %v986
        %v1188 = vpop.f32.mrf.mxu0
        %v1189 = vadd.f32 %v1022, %v1188
        %v1190 = vpop.f32.mrf.mxu0
        %v1191 = vadd.f32 %v1022, %v1190
        %1192 = vdwg.mxu0
        %1193 = vmatpush.bf16.msra.mxu0 %v1130
        %1194 = vmatpush.bf16.msra.mxu0 %v1127
        %1195 = vmatpush.bf16.msra.mxu0 %v1124
        %1196 = vmatpush.bf16.msra.mxu0 %v1121
        %1197 = vmatpush.bf16.msra.mxu0 %v1118
        %1198 = vmatpush.bf16.msra.mxu0 %v1115
        %1199 = vmatpush.bf16.msra.mxu0 %v1112
        %1200 = vmatpush.bf16.msra.mxu0 %v1109
        %1201 = vmatmul.bf16.gmra.mxu0 %v985
        %v1202 = vpop.f32.mrf.mxu0
        %v1203 = vadd.f32 %v1023, %v1202
        %v1204 = vpop.f32.mrf.mxu0
        %v1205 = vadd.f32 %v1023, %v1204
        %1206 = vmatmul.bf16.gmra.mxu0 %v986
        %v1207 = vpop.f32.mrf.mxu0
        %v1208 = vadd.f32 %v1023, %v1207
        %v1209 = vpop.f32.mrf.mxu0
        %v1210 = vadd.f32 %v1023, %v1209
        %1211 = vdwg.mxu0
        %v1212 = vpack.c.bf16 %v1165, %v1165
        %v1213 = vpack.c.bf16 %v1167, %v1167
        %v1214 = vpack.c.bf16 %v1170, %v1170
        %v1215 = vpack.c.bf16 %v1172, %v1172
        %v1216 = vpack.c.bf16 %v1184, %v1184
        %v1217 = vpack.c.bf16 %v1186, %v1186
        %v1218 = vpack.c.bf16 %v1189, %v1189
        %v1219 = vpack.c.bf16 %v1191, %v1191
        %v1222 = vunpack.c.l.b16 %v1212
        %v1223 = vunpack.c.l.b16 %v1213
        %v1224 = vpack.c.b16 %v1223, %v1222
        %v1227 = vunpack.c.l.b16 %v1216
        %v1228 = vunpack.c.l.b16 %v1217
        %v1229 = vpack.c.b16 %v1228, %v1227
        %vm1230 = vcmask 261120
        %v1232 = vsel %vm1230, %v1224, 0
        %v1235 = vsel %vm1230, %v1229, 0
        %1237 = vmatpush.bf16.xpose.msra.mxu0 0
        %1238 = vmatpush.bf16.xpose.msra.mxu0 0
        %1239 = vmatpush.bf16.xpose.msra.mxu0 0
        %1240 = vmatpush.bf16.xpose.msra.mxu0 0
        %1241 = vmatpush.bf16.xpose.msra.mxu0 0
        %1242 = vmatpush.bf16.xpose.msra.mxu0 0
        %1243 = vmatpush.bf16.xpose.msra.mxu0 0
        %1244 = vmatpush.bf16.xpose.msra.mxu0 %v1235
        %1245 = vmatmul.bf16.gmra.mxu0 %v1232
        %v1246 = vpop.f32.mrf.mxu0
        %v1247 = vadd.f32 0.0, %v1246
        %v1248 = vpop.f32.mrf.mxu0
        %v1249 = vadd.f32 0.0, %v1248
        %1250 = vdwg.mxu0
        %v1253 = vunpack.c.l.b16 %v1214
        %v1254 = vunpack.c.l.b16 %v1215
        %v1255 = vpack.c.b16 %v1254, %v1253
        %v1258 = vunpack.c.l.b16 %v1218
        %v1259 = vunpack.c.l.b16 %v1219
        %v1260 = vpack.c.b16 %v1259, %v1258
        %v1262 = vsel %vm1230, %v1255, 0
        %v1265 = vsel %vm1230, %v1260, 0
        %1267 = vmatpush.bf16.xpose.msra.mxu0 0
        %1268 = vmatpush.bf16.xpose.msra.mxu0 0
        %1269 = vmatpush.bf16.xpose.msra.mxu0 0
        %1270 = vmatpush.bf16.xpose.msra.mxu0 0
        %1271 = vmatpush.bf16.xpose.msra.mxu0 0
        %1272 = vmatpush.bf16.xpose.msra.mxu0 0
        %1273 = vmatpush.bf16.xpose.msra.mxu0 0
        %1274 = vmatpush.bf16.xpose.msra.mxu0 %v1265
        %1275 = vmatmul.bf16.gmra.mxu0 %v1262
        %v1276 = vpop.f32.mrf.mxu0
        %v1277 = vadd.f32 0.0, %v1276
        %v1278 = vpop.f32.mrf.mxu0
        %v1279 = vadd.f32 0.0, %v1278
        %1280 = vdwg.mxu0
        %v1281 = vmul.f32 %v1247, 0.17677669
        %v1282 = vmul.f32 %v1249, 0.17677669
        %v1283 = vmul.f32 %v1277, 0.17677669
        %v1284 = vmul.f32 %v1279, 0.17677669
        %v1285 = vadd.f32 %v1281, %v981
        %v1286 = vadd.f32 %v1282, %v981
        %v1287 = vadd.f32 %v1283, %v982
        %v1288 = vadd.f32 %v1284, %v982
        %vm1289 = vcmask 130048
        %v1290 = vsel %vm1289, %v1285, -inf
        %1291 = vmax.xlane.f32.xlu0 %v1290
        %v1292 = vpop.xlane.xlu0 %1291
        %v1293 = vsel %vm1289, %v1286, -inf
        %1294 = vmax.xlane.f32.xlu0 %v1293
        %v1295 = vpop.xlane.xlu0 %1294
        %v1296 = vsel %vm1289, %v1287, -inf
        %1297 = vmax.xlane.f32.xlu0 %v1296
        %v1298 = vpop.xlane.xlu0 %1297
        %v1299 = vsel %vm1289, %v1288, -inf
        %1300 = vmax.xlane.f32.xlu0 %v1299
        %v1301 = vpop.xlane.xlu0 %1300
        %v1302 = vsub.f32 %v1285, %v1292
        %v1303 = vsub.f32 %v1286, %v1295
        %v1304 = vsub.f32 %v1287, %v1298
        %v1305 = vsub.f32 %v1288, %v1301
        %v1306 = vmul.f32 %v1302, 1.442695
        %v1307 = vpow.pop %v1306
        %v1308 = vmul.f32 %v1303, 1.442695
        %v1309 = vpow.pop %v1308
        %v1310 = vmul.f32 %v1304, 1.442695
        %v1311 = vpow.pop %v1310
        %v1312 = vmul.f32 %v1305, 1.442695
        %v1313 = vpow.pop %v1312
        %v1314 = vsel %vm1289, %v1307, 0.0
        %1315 = vadd.xlane.f32.xlu0 %v1314
        %v1316 = vpop.xlane.xlu0 %1315
        %v1317 = vsel %vm1289, %v1309, 0.0
        %1318 = vadd.xlane.f32.xlu0 %v1317
        %v1319 = vpop.xlane.xlu0 %1318
        %v1320 = vsel %vm1289, %v1311, 0.0
        %1321 = vadd.xlane.f32.xlu0 %v1320
        %v1322 = vpop.xlane.xlu0 %1321
        %v1323 = vsel %vm1289, %v1313, 0.0
        %1324 = vadd.xlane.f32.xlu0 %v1323
        %v1325 = vpop.xlane.xlu0 %1324
        %v1326 = vrcp.pop %v1316
        %v1327 = vrcp.pop %v1319
        %v1328 = vrcp.pop %v1322
        %v1329 = vrcp.pop %v1325
        %v1330 = vmul.f32 %v1307, %v1326
        %v1331 = vmul.f32 %v1309, %v1327
        %v1332 = vmul.f32 %v1311, %v1328
        %v1333 = vmul.f32 %v1313, %v1329
        %v1334 = vpack.c.bf16 %v1330, %v1330
        %v1335 = vpack.c.bf16 %v1331, %v1331
        %v1336 = vpack.c.bf16 %v1332, %v1332
        %v1337 = vpack.c.bf16 %v1333, %v1333
        %v1338 = vpack.c.bf16 %v1203, %v1203
        %v1339 = vpack.c.bf16 %v1205, %v1205
        %v1340 = vpack.c.bf16 %v1208, %v1208
        %v1341 = vpack.c.bf16 %v1210, %v1210
        %v1344 = vunpack.c.l.b16 %v1334
        %v1345 = vunpack.c.l.b16 %v1335
        %v1346 = vpack.c.b16 %v1345, %v1344
        %v1349 = vunpack.c.l.b16 %v1338
        %v1350 = vunpack.c.l.b16 %v1339
        %v1351 = vpack.c.b16 %v1350, %v1349
        %v1354 = vsel %vm1289, %v1346, 0
        %1356 = vmatpush.bf16.msra.mxu0 0
        %1357 = vmatpush.bf16.msra.mxu0 0
        %1358 = vmatpush.bf16.msra.mxu0 0
        %1359 = vmatpush.bf16.msra.mxu0 0
        %1360 = vmatpush.bf16.msra.mxu0 0
        %1361 = vmatpush.bf16.msra.mxu0 0
        %1362 = vmatpush.bf16.msra.mxu0 0
        %1363 = vmatpush.bf16.msra.mxu0 %v1351
        %1364 = vmatmul.bf16.gmra.mxu0 %v1354
        %v1365 = vpop.f32.mrf.mxu0
        %v1366 = vadd.f32 0.0, %v1365
        %v1367 = vpop.f32.mrf.mxu0
        %v1368 = vadd.f32 0.0, %v1367
        %1369 = vdwg.mxu0
        %v1372 = vunpack.c.l.b16 %v1336
        %v1373 = vunpack.c.l.b16 %v1337
        %v1374 = vpack.c.b16 %v1373, %v1372
        %v1377 = vunpack.c.l.b16 %v1340
        %v1378 = vunpack.c.l.b16 %v1341
        %v1379 = vpack.c.b16 %v1378, %v1377
        %v1382 = vsel %vm1289, %v1374, 0
        %1384 = vmatpush.bf16.msra.mxu0 0
        %1385 = vmatpush.bf16.msra.mxu0 0
        %1386 = vmatpush.bf16.msra.mxu0 0
        %1387 = vmatpush.bf16.msra.mxu0 0
        %1388 = vmatpush.bf16.msra.mxu0 0
        %1389 = vmatpush.bf16.msra.mxu0 0
        %1390 = vmatpush.bf16.msra.mxu0 0
        %1391 = vmatpush.bf16.msra.mxu0 %v1379
        %1392 = vmatmul.bf16.gmra.mxu0 %v1382
        %v1393 = vpop.f32.mrf.mxu0
        %v1394 = vadd.f32 0.0, %v1393
        %v1395 = vpop.f32.mrf.mxu0
        %v1396 = vadd.f32 0.0, %v1395
        %1397 = vdwg.mxu0
        %1398 = vst.msk [vmem:[#allocation3] sm:$0xff] %vm1230, %v1366
        %1399 = vst.msk [vmem:[#allocation3 + $0x8] sm:$0xff] %vm1230, %v1368
        %1400 = vst.msk [vmem:[#allocation3 + $0x10] sm:$0xff] %vm1230, %v1394
        %1401 = vst.msk [vmem:[#allocation3 + $0x18] sm:$0xff] %vm1230, %v1396
        %1402 = vrot.lane.b32.xlu0 %v1224, 96
        %v1403 = vpop.permute.xlu0 %1402
        %1404 = vrot.lane.b32.xlu0 %v1229, 96
        %v1405 = vpop.permute.xlu0 %1404
        %v1407 = vsel %vm1230, %v1403, 0
        %v1410 = vsel %vm1230, %v1405, 0
        %1412 = vmatpush.bf16.xpose.msra.mxu0 0
        %1413 = vmatpush.bf16.xpose.msra.mxu0 0
        %1414 = vmatpush.bf16.xpose.msra.mxu0 0
        %1415 = vmatpush.bf16.xpose.msra.mxu0 0
        %1416 = vmatpush.bf16.xpose.msra.mxu0 0
        %1417 = vmatpush.bf16.xpose.msra.mxu0 0
        %1418 = vmatpush.bf16.xpose.msra.mxu0 0
        %1419 = vmatpush.bf16.xpose.msra.mxu0 %v1410
        %1420 = vmatmul.bf16.gmra.mxu0 %v1407
        %v1421 = vpop.f32.mrf.mxu0
        %v1422 = vadd.f32 0.0, %v1421
        %v1423 = vpop.f32.mrf.mxu0
        %v1424 = vadd.f32 0.0, %v1423
        %1425 = vdwg.mxu0
        %1426 = vrot.lane.b32.xlu0 %v1255, 96
        %v1427 = vpop.permute.xlu0 %1426
        %1428 = vrot.lane.b32.xlu0 %v1260, 96
        %v1429 = vpop.permute.xlu0 %1428
        %v1431 = vsel %vm1230, %v1427, 0
        %v1434 = vsel %vm1230, %v1429, 0
        %1436 = vmatpush.bf16.xpose.msra.mxu0 0
        %1437 = vmatpush.bf16.xpose.msra.mxu0 0
        %1438 = vmatpush.bf16.xpose.msra.mxu0 0
        %1439 = vmatpush.bf16.xpose.msra.mxu0 0
        %1440 = vmatpush.bf16.xpose.msra.mxu0 0
        %1441 = vmatpush.bf16.xpose.msra.mxu0 0
        %1442 = vmatpush.bf16.xpose.msra.mxu0 0
        %1443 = vmatpush.bf16.xpose.msra.mxu0 %v1434
        %1444 = vmatmul.bf16.gmra.mxu0 %v1431
        %v1445 = vpop.f32.mrf.mxu0
        %v1446 = vadd.f32 0.0, %v1445
        %v1447 = vpop.f32.mrf.mxu0
        %v1448 = vadd.f32 0.0, %v1447
        %1449 = vdwg.mxu0
        %v1450 = vmul.f32 %v1422, 0.17677669
        %v1451 = vmul.f32 %v1424, 0.17677669
        %v1452 = vmul.f32 %v1446, 0.17677669
        %v1453 = vmul.f32 %v1448, 0.17677669
        %v1454 = vadd.f32 %v1450, %v981
        %v1455 = vadd.f32 %v1451, %v981
        %v1456 = vadd.f32 %v1452, %v982
        %v1457 = vadd.f32 %v1453, %v982
        %v1458 = vsel %vm1289, %v1454, -inf
        %1459 = vmax.xlane.f32.xlu0 %v1458
        %v1460 = vpop.xlane.xlu0 %1459
        %v1461 = vsel %vm1289, %v1455, -inf
        %1462 = vmax.xlane.f32.xlu0 %v1461
        %v1463 = vpop.xlane.xlu0 %1462
        %v1464 = vsel %vm1289, %v1456, -inf
        %1465 = vmax.xlane.f32.xlu0 %v1464
        %v1466 = vpop.xlane.xlu0 %1465
        %v1467 = vsel %vm1289, %v1457, -inf
        %1468 = vmax.xlane.f32.xlu0 %v1467
        %v1469 = vpop.xlane.xlu0 %1468
        %v1470 = vsub.f32 %v1454, %v1460
        %v1471 = vsub.f32 %v1455, %v1463
        %v1472 = vsub.f32 %v1456, %v1466
        %v1473 = vsub.f32 %v1457, %v1469
        %v1474 = vmul.f32 %v1470, 1.442695
        %v1475 = vpow.pop %v1474
        %v1476 = vmul.f32 %v1471, 1.442695
        %v1477 = vpow.pop %v1476
        %v1478 = vmul.f32 %v1472, 1.442695
        %v1479 = vpow.pop %v1478
        %v1480 = vmul.f32 %v1473, 1.442695
        %v1481 = vpow.pop %v1480
        %v1482 = vsel %vm1289, %v1475, 0.0
        %1483 = vadd.xlane.f32.xlu0 %v1482
        %v1484 = vpop.xlane.xlu0 %1483
        %v1485 = vsel %vm1289, %v1477, 0.0
        %1486 = vadd.xlane.f32.xlu0 %v1485
        %v1487 = vpop.xlane.xlu0 %1486
        %v1488 = vsel %vm1289, %v1479, 0.0
        %1489 = vadd.xlane.f32.xlu0 %v1488
        %v1490 = vpop.xlane.xlu0 %1489
        %v1491 = vsel %vm1289, %v1481, 0.0
        %1492 = vadd.xlane.f32.xlu0 %v1491
        %v1493 = vpop.xlane.xlu0 %1492
        %v1494 = vrcp.pop %v1484
        %v1495 = vrcp.pop %v1487
        %v1496 = vrcp.pop %v1490
        %v1497 = vrcp.pop %v1493
        %v1498 = vmul.f32 %v1475, %v1494
        %v1499 = vmul.f32 %v1477, %v1495
        %v1500 = vmul.f32 %v1479, %v1496
        %v1501 = vmul.f32 %v1481, %v1497
        %v1502 = vpack.c.bf16 %v1498, %v1498
        %v1503 = vpack.c.bf16 %v1499, %v1499
        %v1504 = vpack.c.bf16 %v1500, %v1500
        %v1505 = vpack.c.bf16 %v1501, %v1501
        %v1508 = vunpack.c.l.b16 %v1502
        %v1509 = vunpack.c.l.b16 %v1503
        %v1510 = vpack.c.b16 %v1509, %v1508
        %1511 = vrot.lane.b32.xlu0 %v1351, 96
        %v1512 = vpop.permute.xlu0 %1511
        %v1515 = vsel %vm1289, %v1510, 0
        %1517 = vmatpush.bf16.msra.mxu0 0
        %1518 = vmatpush.bf16.msra.mxu0 0
        %1519 = vmatpush.bf16.msra.mxu0 0
        %1520 = vmatpush.bf16.msra.mxu0 0
        %1521 = vmatpush.bf16.msra.mxu0 0
        %1522 = vmatpush.bf16.msra.mxu0 0
        %1523 = vmatpush.bf16.msra.mxu0 0
        %1524 = vmatpush.bf16.msra.mxu0 %v1512
        %1525 = vmatmul.bf16.gmra.mxu0 %v1515
        %v1526 = vpop.f32.mrf.mxu0
        %v1527 = vadd.f32 0.0, %v1526
        %v1528 = vpop.f32.mrf.mxu0
        %v1529 = vadd.f32 0.0, %v1528
        %1530 = vdwg.mxu0
        %v1533 = vunpack.c.l.b16 %v1504
        %v1534 = vunpack.c.l.b16 %v1505
        %v1535 = vpack.c.b16 %v1534, %v1533
        %1536 = vrot.lane.b32.xlu0 %v1379, 96
        %v1537 = vpop.permute.xlu0 %1536
        %v1540 = vsel %vm1289, %v1535, 0
        %1542 = vmatpush.bf16.msra.mxu0 0
        %1543 = vmatpush.bf16.msra.mxu0 0
        %1544 = vmatpush.bf16.msra.mxu0 0
        %1545 = vmatpush.bf16.msra.mxu0 0
        %1546 = vmatpush.bf16.msra.mxu0 0
        %1547 = vmatpush.bf16.msra.mxu0 0
        %1548 = vmatpush.bf16.msra.mxu0 0
        %1549 = vmatpush.bf16.msra.mxu0 %v1537
        %1550 = vmatmul.bf16.gmra.mxu0 %v1540
        %v1551 = vpop.f32.mrf.mxu0
        %v1552 = vadd.f32 0.0, %v1551
        %v1553 = vpop.f32.mrf.mxu0
        %v1554 = vadd.f32 0.0, %v1553
        %1555 = vdwg.mxu0
        %1560 = vrot.lane.b32.xlu0 %v1527, 32
        %v1561 = vpop.permute.xlu0 %1560
        %1562 = vrot.lane.b32.xlu0 %v1529, 32
        %v1563 = vpop.permute.xlu0 %1562
        %1564 = vrot.lane.b32.xlu0 %v1552, 32
        %v1565 = vpop.permute.xlu0 %1564
        %1566 = vrot.lane.b32.xlu0 %v1554, 32
        %v1567 = vpop.permute.xlu0 %1566
        %vm1572 = vcmask 523520
        %1573 = vst.msk [vmem:[#allocation3] sm:$0xff] %vm1572, %v1561
        %1574 = vst.msk [vmem:[#allocation3 + $0x8] sm:$0xff] %vm1572, %v1563
        %1575 = vst.msk [vmem:[#allocation3 + $0x10] sm:$0xff] %vm1572, %v1565
        %1576 = vst.msk [vmem:[#allocation3 + $0x18] sm:$0xff] %vm1572, %v1567
        %1577 = vrot.lane.b32.xlu0 %v1224, 64
        %v1578 = vpop.permute.xlu0 %1577
        %1579 = vrot.lane.b32.xlu0 %v1229, 64
        %v1580 = vpop.permute.xlu0 %1579
        %v1582 = vsel %vm1230, %v1578, 0
        %v1585 = vsel %vm1230, %v1580, 0
        %1587 = vmatpush.bf16.xpose.msra.mxu0 0
        %1588 = vmatpush.bf16.xpose.msra.mxu0 0
        %1589 = vmatpush.bf16.xpose.msra.mxu0 0
        %1590 = vmatpush.bf16.xpose.msra.mxu0 0
        %1591 = vmatpush.bf16.xpose.msra.mxu0 0
        %1592 = vmatpush.bf16.xpose.msra.mxu0 0
        %1593 = vmatpush.bf16.xpose.msra.mxu0 0
        %1594 = vmatpush.bf16.xpose.msra.mxu0 %v1585
        %1595 = vmatmul.bf16.gmra.mxu0 %v1582
        %v1596 = vpop.f32.mrf.mxu0
        %v1597 = vadd.f32 0.0, %v1596
        %v1598 = vpop.f32.mrf.mxu0
        %v1599 = vadd.f32 0.0, %v1598
        %1600 = vdwg.mxu0
        %1601 = vrot.lane.b32.xlu0 %v1255, 64
        %v1602 = vpop.permute.xlu0 %1601
        %1603 = vrot.lane.b32.xlu0 %v1260, 64
        %v1604 = vpop.permute.xlu0 %1603
        %v1606 = vsel %vm1230, %v1602, 0
        %v1609 = vsel %vm1230, %v1604, 0
        %1611 = vmatpush.bf16.xpose.msra.mxu0 0
        %1612 = vmatpush.bf16.xpose.msra.mxu0 0
        %1613 = vmatpush.bf16.xpose.msra.mxu0 0
        %1614 = vmatpush.bf16.xpose.msra.mxu0 0
        %1615 = vmatpush.bf16.xpose.msra.mxu0 0
        %1616 = vmatpush.bf16.xpose.msra.mxu0 0
        %1617 = vmatpush.bf16.xpose.msra.mxu0 0
        %1618 = vmatpush.bf16.xpose.msra.mxu0 %v1609
        %1619 = vmatmul.bf16.gmra.mxu0 %v1606
        %v1620 = vpop.f32.mrf.mxu0
        %v1621 = vadd.f32 0.0, %v1620
        %v1622 = vpop.f32.mrf.mxu0
        %v1623 = vadd.f32 0.0, %v1622
        %1624 = vdwg.mxu0
        %v1625 = vmul.f32 %v1597, 0.17677669
        %v1626 = vmul.f32 %v1599, 0.17677669
        %v1627 = vmul.f32 %v1621, 0.17677669
        %v1628 = vmul.f32 %v1623, 0.17677669
        %v1629 = vadd.f32 %v1625, %v981
        %v1630 = vadd.f32 %v1626, %v981
        %v1631 = vadd.f32 %v1627, %v982
        %v1632 = vadd.f32 %v1628, %v982
        %v1633 = vsel %vm1289, %v1629, -inf
        %1634 = vmax.xlane.f32.xlu0 %v1633
        %v1635 = vpop.xlane.xlu0 %1634
        %v1636 = vsel %vm1289, %v1630, -inf
        %1637 = vmax.xlane.f32.xlu0 %v1636
        %v1638 = vpop.xlane.xlu0 %1637
        %v1639 = vsel %vm1289, %v1631, -inf
        %1640 = vmax.xlane.f32.xlu0 %v1639
        %v1641 = vpop.xlane.xlu0 %1640
        %v1642 = vsel %vm1289, %v1632, -inf
        %1643 = vmax.xlane.f32.xlu0 %v1642
        %v1644 = vpop.xlane.xlu0 %1643
        %v1645 = vsub.f32 %v1629, %v1635
        %v1646 = vsub.f32 %v1630, %v1638
        %v1647 = vsub.f32 %v1631, %v1641
        %v1648 = vsub.f32 %v1632, %v1644
        %v1649 = vmul.f32 %v1645, 1.442695
        %v1650 = vpow.pop %v1649
        %v1651 = vmul.f32 %v1646, 1.442695
        %v1652 = vpow.pop %v1651
        %v1653 = vmul.f32 %v1647, 1.442695
        %v1654 = vpow.pop %v1653
        %v1655 = vmul.f32 %v1648, 1.442695
        %v1656 = vpow.pop %v1655
        %v1657 = vsel %vm1289, %v1650, 0.0
        %1658 = vadd.xlane.f32.xlu0 %v1657
        %v1659 = vpop.xlane.xlu0 %1658
        %v1660 = vsel %vm1289, %v1652, 0.0
        %1661 = vadd.xlane.f32.xlu0 %v1660
        %v1662 = vpop.xlane.xlu0 %1661
        %v1663 = vsel %vm1289, %v1654, 0.0
        %1664 = vadd.xlane.f32.xlu0 %v1663
        %v1665 = vpop.xlane.xlu0 %1664
        %v1666 = vsel %vm1289, %v1656, 0.0
        %1667 = vadd.xlane.f32.xlu0 %v1666
        %v1668 = vpop.xlane.xlu0 %1667
        %v1669 = vrcp.pop %v1659
        %v1670 = vrcp.pop %v1662
        %v1671 = vrcp.pop %v1665
        %v1672 = vrcp.pop %v1668
        %v1673 = vmul.f32 %v1650, %v1669
        %v1674 = vmul.f32 %v1652, %v1670
        %v1675 = vmul.f32 %v1654, %v1671
        %v1676 = vmul.f32 %v1656, %v1672
        %v1677 = vpack.c.bf16 %v1673, %v1673
        %v1678 = vpack.c.bf16 %v1674, %v1674
        %v1679 = vpack.c.bf16 %v1675, %v1675
        %v1680 = vpack.c.bf16 %v1676, %v1676
        %v1683 = vunpack.c.l.b16 %v1677
        %v1684 = vunpack.c.l.b16 %v1678
        %v1685 = vpack.c.b16 %v1684, %v1683
        %1686 = vrot.lane.b32.xlu0 %v1351, 64
        %v1687 = vpop.permute.xlu0 %1686
        %v1690 = vsel %vm1289, %v1685, 0
        %1692 = vmatpush.bf16.msra.mxu0 0
        %1693 = vmatpush.bf16.msra.mxu0 0
        %1694 = vmatpush.bf16.msra.mxu0 0
        %1695 = vmatpush.bf16.msra.mxu0 0
        %1696 = vmatpush.bf16.msra.mxu0 0
        %1697 = vmatpush.bf16.msra.mxu0 0
        %1698 = vmatpush.bf16.msra.mxu0 0
        %1699 = vmatpush.bf16.msra.mxu0 %v1687
        %1700 = vmatmul.bf16.gmra.mxu0 %v1690
        %v1701 = vpop.f32.mrf.mxu0
        %v1702 = vadd.f32 0.0, %v1701
        %v1703 = vpop.f32.mrf.mxu0
        %v1704 = vadd.f32 0.0, %v1703
        %1705 = vdwg.mxu0
        %v1708 = vunpack.c.l.b16 %v1679
        %v1709 = vunpack.c.l.b16 %v1680
        %v1710 = vpack.c.b16 %v1709, %v1708
        %1711 = vrot.lane.b32.xlu0 %v1379, 64
        %v1712 = vpop.permute.xlu0 %1711
        %v1715 = vsel %vm1289, %v1710, 0
        %1717 = vmatpush.bf16.msra.mxu0 0
        %1718 = vmatpush.bf16.msra.mxu0 0
        %1719 = vmatpush.bf16.msra.mxu0 0
        %1720 = vmatpush.bf16.msra.mxu0 0
        %1721 = vmatpush.bf16.msra.mxu0 0
        %1722 = vmatpush.bf16.msra.mxu0 0
        %1723 = vmatpush.bf16.msra.mxu0 0
        %1724 = vmatpush.bf16.msra.mxu0 %v1712
        %1725 = vmatmul.bf16.gmra.mxu0 %v1715
        %v1726 = vpop.f32.mrf.mxu0
        %v1727 = vadd.f32 0.0, %v1726
        %v1728 = vpop.f32.mrf.mxu0
        %v1729 = vadd.f32 0.0, %v1728
        %1730 = vdwg.mxu0
        %1735 = vrot.lane.b32.xlu0 %v1702, 64
        %v1736 = vpop.permute.xlu0 %1735
        %1737 = vrot.lane.b32.xlu0 %v1704, 64
        %v1738 = vpop.permute.xlu0 %1737
        %1739 = vrot.lane.b32.xlu0 %v1727, 64
        %v1740 = vpop.permute.xlu0 %1739
        %1741 = vrot.lane.b32.xlu0 %v1729, 64
        %v1742 = vpop.permute.xlu0 %1741
        %vm1747 = vcmask 785920
        %1748 = vst.msk [vmem:[#allocation3] sm:$0xff] %vm1747, %v1736
        %1749 = vst.msk [vmem:[#allocation3 + $0x8] sm:$0xff] %vm1747, %v1738
        %1750 = vst.msk [vmem:[#allocation3 + $0x10] sm:$0xff] %vm1747, %v1740
        %1751 = vst.msk [vmem:[#allocation3 + $0x18] sm:$0xff] %vm1747, %v1742
        %1752 = vrot.lane.b32.xlu0 %v1224, 32
        %v1753 = vpop.permute.xlu0 %1752
        %1754 = vrot.lane.b32.xlu0 %v1229, 32
        %v1755 = vpop.permute.xlu0 %1754
        %v1757 = vsel %vm1230, %v1753, 0
        %v1760 = vsel %vm1230, %v1755, 0
        %1762 = vmatpush.bf16.xpose.msra.mxu0 0
        %1763 = vmatpush.bf16.xpose.msra.mxu0 0
        %1764 = vmatpush.bf16.xpose.msra.mxu0 0
        %1765 = vmatpush.bf16.xpose.msra.mxu0 0
        %1766 = vmatpush.bf16.xpose.msra.mxu0 0
        %1767 = vmatpush.bf16.xpose.msra.mxu0 0
        %1768 = vmatpush.bf16.xpose.msra.mxu0 0
        %1769 = vmatpush.bf16.xpose.msra.mxu0 %v1760
        %1770 = vmatmul.bf16.gmra.mxu0 %v1757
        %v1771 = vpop.f32.mrf.mxu0
        %v1772 = vadd.f32 0.0, %v1771
        %v1773 = vpop.f32.mrf.mxu0
        %v1774 = vadd.f32 0.0, %v1773
        %1775 = vdwg.mxu0
        %1776 = vrot.lane.b32.xlu0 %v1255, 32
        %v1777 = vpop.permute.xlu0 %1776
        %1778 = vrot.lane.b32.xlu0 %v1260, 32
        %v1779 = vpop.permute.xlu0 %1778
        %v1781 = vsel %vm1230, %v1777, 0
        %v1784 = vsel %vm1230, %v1779, 0
        %1786 = vmatpush.bf16.xpose.msra.mxu0 0
        %1787 = vmatpush.bf16.xpose.msra.mxu0 0
        %1788 = vmatpush.bf16.xpose.msra.mxu0 0
        %1789 = vmatpush.bf16.xpose.msra.mxu0 0
        %1790 = vmatpush.bf16.xpose.msra.mxu0 0
        %1791 = vmatpush.bf16.xpose.msra.mxu0 0
        %1792 = vmatpush.bf16.xpose.msra.mxu0 0
        %1793 = vmatpush.bf16.xpose.msra.mxu0 %v1784
        %1794 = vmatmul.bf16.gmra.mxu0 %v1781
        %v1795 = vpop.f32.mrf.mxu0
        %v1796 = vadd.f32 0.0, %v1795
        %v1797 = vpop.f32.mrf.mxu0
        %v1798 = vadd.f32 0.0, %v1797
        %1799 = vdwg.mxu0
        %v1800 = vmul.f32 %v1772, 0.17677669
        %v1801 = vmul.f32 %v1774, 0.17677669
        %v1802 = vmul.f32 %v1796, 0.17677669
        %v1803 = vmul.f32 %v1798, 0.17677669
        %v1804 = vadd.f32 %v1800, %v981
        %v1805 = vadd.f32 %v1801, %v981
        %v1806 = vadd.f32 %v1802, %v982
        %v1807 = vadd.f32 %v1803, %v982
        %v1808 = vsel %vm1289, %v1804, -inf
        %1809 = vmax.xlane.f32.xlu0 %v1808
        %v1810 = vpop.xlane.xlu0 %1809
        %v1811 = vsel %vm1289, %v1805, -inf
        %1812 = vmax.xlane.f32.xlu0 %v1811
        %v1813 = vpop.xlane.xlu0 %1812
        %v1814 = vsel %vm1289, %v1806, -inf
        %1815 = vmax.xlane.f32.xlu0 %v1814
        %v1816 = vpop.xlane.xlu0 %1815
        %v1817 = vsel %vm1289, %v1807, -inf
        %1818 = vmax.xlane.f32.xlu0 %v1817
        %v1819 = vpop.xlane.xlu0 %1818
        %v1820 = vsub.f32 %v1804, %v1810
        %v1821 = vsub.f32 %v1805, %v1813
        %v1822 = vsub.f32 %v1806, %v1816
        %v1823 = vsub.f32 %v1807, %v1819
        %v1824 = vmul.f32 %v1820, 1.442695
        %v1825 = vpow.pop %v1824
        %v1826 = vmul.f32 %v1821, 1.442695
        %v1827 = vpow.pop %v1826
        %v1828 = vmul.f32 %v1822, 1.442695
        %v1829 = vpow.pop %v1828
        %v1830 = vmul.f32 %v1823, 1.442695
        %v1831 = vpow.pop %v1830
        %v1832 = vsel %vm1289, %v1825, 0.0
        %1833 = vadd.xlane.f32.xlu0 %v1832
        %v1834 = vpop.xlane.xlu0 %1833
        %v1835 = vsel %vm1289, %v1827, 0.0
        %1836 = vadd.xlane.f32.xlu0 %v1835
        %v1837 = vpop.xlane.xlu0 %1836
        %v1838 = vsel %vm1289, %v1829, 0.0
        %1839 = vadd.xlane.f32.xlu0 %v1838
        %v1840 = vpop.xlane.xlu0 %1839
        %v1841 = vsel %vm1289, %v1831, 0.0
        %1842 = vadd.xlane.f32.xlu0 %v1841
        %v1843 = vpop.xlane.xlu0 %1842
        %v1844 = vrcp.pop %v1834
        %v1845 = vrcp.pop %v1837
        %v1846 = vrcp.pop %v1840
        %v1847 = vrcp.pop %v1843
        %v1848 = vmul.f32 %v1825, %v1844
        %v1849 = vmul.f32 %v1827, %v1845
        %v1850 = vmul.f32 %v1829, %v1846
        %v1851 = vmul.f32 %v1831, %v1847
        %v1852 = vpack.c.bf16 %v1848, %v1848
        %v1853 = vpack.c.bf16 %v1849, %v1849
        %v1854 = vpack.c.bf16 %v1850, %v1850
        %v1855 = vpack.c.bf16 %v1851, %v1851
        %v1858 = vunpack.c.l.b16 %v1852
        %v1859 = vunpack.c.l.b16 %v1853
        %v1860 = vpack.c.b16 %v1859, %v1858
        %1861 = vrot.lane.b32.xlu0 %v1351, 32
        %v1862 = vpop.permute.xlu0 %1861
        %v1865 = vsel %vm1289, %v1860, 0
        %1867 = vmatpush.bf16.msra.mxu0 0
        %1868 = vmatpush.bf16.msra.mxu0 0
        %1869 = vmatpush.bf16.msra.mxu0 0
        %1870 = vmatpush.bf16.msra.mxu0 0
        %1871 = vmatpush.bf16.msra.mxu0 0
        %1872 = vmatpush.bf16.msra.mxu0 0
        %1873 = vmatpush.bf16.msra.mxu0 0
        %1874 = vmatpush.bf16.msra.mxu0 %v1862
        %1875 = vmatmul.bf16.gmra.mxu0 %v1865
        %v1876 = vpop.f32.mrf.mxu0
        %v1877 = vadd.f32 0.0, %v1876
        %v1878 = vpop.f32.mrf.mxu0
        %v1879 = vadd.f32 0.0, %v1878
        %1880 = vdwg.mxu0
        %v1883 = vunpack.c.l.b16 %v1854
        %v1884 = vunpack.c.l.b16 %v1855
        %v1885 = vpack.c.b16 %v1884, %v1883
        %1886 = vrot.lane.b32.xlu0 %v1379, 32
        %v1887 = vpop.permute.xlu0 %1886
        %v1890 = vsel %vm1289, %v1885, 0
        %1892 = vmatpush.bf16.msra.mxu0 0
        %1893 = vmatpush.bf16.msra.mxu0 0
        %1894 = vmatpush.bf16.msra.mxu0 0
        %1895 = vmatpush.bf16.msra.mxu0 0
        %1896 = vmatpush.bf16.msra.mxu0 0
        %1897 = vmatpush.bf16.msra.mxu0 0
        %1898 = vmatpush.bf16.msra.mxu0 0
        %1899 = vmatpush.bf16.msra.mxu0 %v1887
        %1900 = vmatmul.bf16.gmra.mxu0 %v1890
        %v1901 = vpop.f32.mrf.mxu0
        %v1902 = vadd.f32 0.0, %v1901
        %v1903 = vpop.f32.mrf.mxu0
        %v1904 = vadd.f32 0.0, %v1903
        %1905 = vdwg.mxu0
        %1910 = vrot.lane.b32.xlu0 %v1877, 96
        %v1911 = vpop.permute.xlu0 %1910
        %1912 = vrot.lane.b32.xlu0 %v1879, 96
        %v1913 = vpop.permute.xlu0 %1912
        %1914 = vrot.lane.b32.xlu0 %v1902, 96
        %v1915 = vpop.permute.xlu0 %1914
        %1916 = vrot.lane.b32.xlu0 %v1904, 96
        %v1917 = vpop.permute.xlu0 %1916
        %vm1922 = vcmask 1048320
        %1923 = vst.msk [vmem:[#allocation3] sm:$0xff] %vm1922, %v1911
        %1924 = vst.msk [vmem:[#allocation3 + $0x8] sm:$0xff] %vm1922, %v1913
        %1925 = vst.msk [vmem:[#allocation3 + $0x10] sm:$0xff] %vm1922, %v1915
        %1926 = vst.msk [vmem:[#allocation3 + $0x18] sm:$0xff] %vm1922, %v1917
        %v1927 = vld [vmem:[#allocation3] sm:$0xff]
        %v1928 = vld [vmem:[#allocation3 + $0x8] sm:$0xff]
        %v1929 = vld [vmem:[#allocation3 + $0x10] sm:$0xff]
        %v1930 = vld [vmem:[#allocation3 + $0x18] sm:$0xff]
        %v1931 = vpack.c.bf16 %v1928, %v1927
        %v1932 = vpack.c.bf16 %v1930, %v1929
        %v1933 = vld [vmem:[%s722] sm:$0xf]
        %v1934 = vld [vmem:[%s722 + $0x4] sm:$0xf]
        %v1935 = vld [vmem:[%s722 + $0x8] sm:$0xf]
        %v1936 = vld [vmem:[%s722 + $0xc] sm:$0xf]
        %v1937 = vld [vmem:[%s722 + $0x10] sm:$0xf]
        %v1938 = vld [vmem:[%s722 + $0x14] sm:$0xf]
        %v1939 = vld [vmem:[%s722 + $0x18] sm:$0xf]
        %v1940 = vld [vmem:[%s722 + $0x1c] sm:$0xf]
        %v1941 = vld [vmem:[%s722 + $0x20] sm:$0xf]
        %v1942 = vld [vmem:[%s722 + $0x24] sm:$0xf]
        %v1943 = vld [vmem:[%s722 + $0x28] sm:$0xf]
        %v1944 = vld [vmem:[%s722 + $0x2c] sm:$0xf]
        %v1945 = vld [vmem:[%s722 + $0x30] sm:$0xf]
        %v1946 = vld [vmem:[%s722 + $0x34] sm:$0xf]
        %v1947 = vld [vmem:[%s722 + $0x38] sm:$0xf]
        %v1948 = vld [vmem:[%s722 + $0x3c] sm:$0xf]
        %v1949 = vld [vmem:[%s832] sm:$0x1]
        %v1951 = vperm.slane %v1949, 0
        %v1969 = vunpack.c.l.b16 %v1933
        %v1970 = vunpack.c.l.b16 %v1934
        %v1971 = vunpack.c.l.b16 %v1935
        %v1972 = vunpack.c.l.b16 %v1936
        %v1973 = vunpack.c.l.b16 %v1937
        %v1974 = vunpack.c.l.b16 %v1938
        %v1975 = vunpack.c.l.b16 %v1939
        %v1976 = vunpack.c.l.b16 %v1940
        %v1977 = vunpack.c.l.b16 %v1941
        %v1978 = vunpack.c.l.b16 %v1942
        %v1979 = vunpack.c.l.b16 %v1943
        %v1980 = vunpack.c.l.b16 %v1944
        %v1981 = vunpack.c.l.b16 %v1945
        %v1982 = vunpack.c.l.b16 %v1946
        %v1983 = vunpack.c.l.b16 %v1947
        %v1984 = vunpack.c.l.b16 %v1948
        %v1985 = vpack.c.b16 %v1970, %v1969
        %v1986 = vpack.c.b16 %v1972, %v1971
        %v1987 = vpack.c.b16 %v1974, %v1973
        %v1988 = vpack.c.b16 %v1976, %v1975
        %v1989 = vpack.c.b16 %v1978, %v1977
        %v1990 = vpack.c.b16 %v1980, %v1979
        %v1991 = vpack.c.b16 %v1982, %v1981
        %v1992 = vpack.c.b16 %v1984, %v1983
        %2001 = vmatpush.bf16.msra.mxu0 %v1992
        %2002 = vmatpush.bf16.msra.mxu0 %v1991
        %2003 = vmatpush.bf16.msra.mxu0 %v1990
        %2004 = vmatpush.bf16.msra.mxu0 %v1989
        %2005 = vmatpush.bf16.msra.mxu0 %v1988
        %2006 = vmatpush.bf16.msra.mxu0 %v1987
        %2007 = vmatpush.bf16.msra.mxu0 %v1986
        %2008 = vmatpush.bf16.msra.mxu0 %v1985
        %2009 = vmatmul.bf16.gmra.mxu0 %v1931
        %v2010 = vpop.f32.mrf.mxu0
        %v2011 = vadd.f32 %v1951, %v2010
        %v2012 = vpop.f32.mrf.mxu0
        %v2013 = vadd.f32 %v1951, %v2012
        %2014 = vmatmul.bf16.gmra.mxu0 %v1932
        %v2015 = vpop.f32.mrf.mxu0
        %v2016 = vadd.f32 %v1951, %v2015
        %v2017 = vpop.f32.mrf.mxu0
        %v2018 = vadd.f32 %v1951, %v2017
        %2019 = vdwg.mxu0
        %v2020 = vadd.f32 %v2011, %v973
        %v2021 = vadd.f32 %v2013, %v974
        %v2022 = vadd.f32 %v2016, %v975
        %v2023 = vadd.f32 %v2018, %v976
        %v2024 = vld [vmem:[%s835] sm:$0x1]
        %v2025 = vld [vmem:[%s838] sm:$0x1]
        %2026 = vadd.xlane.f32.xlu0 %v2020
        %v2027 = vpop.xlane.xlu0 %2026
        %2028 = vadd.xlane.f32.xlu0 %v2021
        %v2029 = vpop.xlane.xlu0 %2028
        %2030 = vadd.xlane.f32.xlu0 %v2022
        %v2031 = vpop.xlane.xlu0 %2030
        %2032 = vadd.xlane.f32.xlu0 %v2023
        %v2033 = vpop.xlane.xlu0 %2032
        %v2034 = vrcp.pop 128.0
        %v2035 = vmul.f32 128.0, %v2034
        %v2036 = vsub.f32 1.0, %v2035
        %v2037 = vmul.f32 %v2034, %v2036
        %v2038 = vadd.f32 %v2034, %v2037
        %vm2039 = vweird.f32 %v2034
        %v2040 = vsel %vm2039, %v2034, %v2038
        %v2041 = vmul.f32 %v2027, %v2040
        %v2042 = vmul.f32 %v2029, %v2040
        %v2043 = vmul.f32 %v2031, %v2040
        %v2044 = vmul.f32 %v2033, %v2040
        %v2045 = vsub.f32 %v2020, %v2041
        %v2046 = vsub.f32 %v2021, %v2042
        %v2047 = vsub.f32 %v2022, %v2043
        %v2048 = vsub.f32 %v2023, %v2044
        %v2049 = vmul.f32 %v2045, %v2045
        %v2050 = vmul.f32 %v2046, %v2046
        %v2051 = vmul.f32 %v2047, %v2047
        %v2052 = vmul.f32 %v2048, %v2048
        %2053 = vadd.xlane.f32.xlu0 %v2049
        %v2054 = vpop.xlane.xlu0 %2053
        %2055 = vadd.xlane.f32.xlu0 %v2050
        %v2056 = vpop.xlane.xlu0 %2055
        %2057 = vadd.xlane.f32.xlu0 %v2051
        %v2058 = vpop.xlane.xlu0 %2057
        %2059 = vadd.xlane.f32.xlu0 %v2052
        %v2060 = vpop.xlane.xlu0 %2059
        %v2061 = vmul.f32 %v2054, %v2040
        %v2062 = vmul.f32 %v2056, %v2040
        %v2063 = vmul.f32 %v2058, %v2040
        %v2064 = vmul.f32 %v2060, %v2040
        %v2065 = vadd.f32 %v2061, 1e-12
        %v2066 = vadd.f32 %v2062, 1e-12
        %v2067 = vadd.f32 %v2063, 1e-12
        %v2068 = vadd.f32 %v2064, 1e-12
        %v2069 = vrsqrt.pop %v2065
        %v2070 = vmul.f32 %v2069, %v2065
        %v2071 = vmul.f32 %v2070, %v2069
        %v2072 = vmul.f32 0.5, %v2071
        %v2073 = vsub.f32 1.5, %v2072
        %v2074 = vmul.f32 %v2069, %v2073
        %vm2075 = vweird.f32 %v2065
        %vm2076 = vweird.f32 %v2069
        %vm2077 = vmor %vm2075, %vm2076
        %v2078 = vsel %vm2077, %v2069, %v2074
        %v2079 = vrsqrt.pop %v2066
        %v2080 = vmul.f32 %v2079, %v2066
        %v2081 = vmul.f32 %v2080, %v2079
        %v2082 = vmul.f32 0.5, %v2081
        %v2083 = vsub.f32 1.5, %v2082
        %v2084 = vmul.f32 %v2079, %v2083
        %vm2085 = vweird.f32 %v2066
        %vm2086 = vweird.f32 %v2079
        %vm2087 = vmor %vm2085, %vm2086
        %v2088 = vsel %vm2087, %v2079, %v2084
        %v2089 = vrsqrt.pop %v2067
        %v2090 = vmul.f32 %v2089, %v2067
        %v2091 = vmul.f32 %v2090, %v2089
        %v2092 = vmul.f32 0.5, %v2091
        %v2093 = vsub.f32 1.5, %v2092
        %v2094 = vmul.f32 %v2089, %v2093
        %vm2095 = vweird.f32 %v2067
        %vm2096 = vweird.f32 %v2089
        %vm2097 = vmor %vm2095, %vm2096
        %v2098 = vsel %vm2097, %v2089, %v2094
        %v2099 = vrsqrt.pop %v2068
        %v2100 = vmul.f32 %v2099, %v2068
        %v2101 = vmul.f32 %v2100, %v2099
        %v2102 = vmul.f32 0.5, %v2101
        %v2103 = vsub.f32 1.5, %v2102
        %v2104 = vmul.f32 %v2099, %v2103
        %vm2105 = vweird.f32 %v2068
        %vm2106 = vweird.f32 %v2099
        %vm2107 = vmor %vm2105, %vm2106
        %v2108 = vsel %vm2107, %v2099, %v2104
        %v2109 = vmul.f32 %v2045, %v2078
        %v2110 = vmul.f32 %v2046, %v2088
        %v2111 = vmul.f32 %v2047, %v2098
        %v2112 = vmul.f32 %v2048, %v2108
        %v2114 = vperm.slane %v2024, 0
        %v2116 = vmul.f32 %v2109, %v2114
        %v2117 = vmul.f32 %v2110, %v2114
        %v2118 = vmul.f32 %v2111, %v2114
        %v2119 = vmul.f32 %v2112, %v2114
        %v2121 = vperm.slane %v2025, 0
        %v2123 = vadd.f32 %v2116, %v2121
        %v2124 = vadd.f32 %v2117, %v2121
        %v2125 = vadd.f32 %v2118, %v2121
        %v2126 = vadd.f32 %v2119, %v2121
        %v2127 = vpack.c.bf16 %v2124, %v2123
        %v2128 = vpack.c.bf16 %v2126, %v2125
        %v2129 = vld [vmem:[%s843] sm:$0xff]
        %v2130 = vld [vmem:[%s843 + $0x8] sm:$0xff]
        %v2131 = vld [vmem:[%s843 + $0x10] sm:$0xff]
        %v2132 = vld [vmem:[%s843 + $0x18] sm:$0xff]
        %v2133 = vld [vmem:[%s843 + $0x20] sm:$0xff]
        %v2134 = vld [vmem:[%s843 + $0x28] sm:$0xff]
        %v2135 = vld [vmem:[%s843 + $0x30] sm:$0xff]
        %v2136 = vld [vmem:[%s843 + $0x38] sm:$0xff]
        %v2137 = vld [vmem:[%s843 + $0x40] sm:$0xff]
        %v2138 = vld [vmem:[%s843 + $0x48] sm:$0xff]
        %v2139 = vld [vmem:[%s843 + $0x50] sm:$0xff]
        %v2140 = vld [vmem:[%s843 + $0x58] sm:$0xff]
        %v2141 = vld [vmem:[%s843 + $0x60] sm:$0xff]
        %v2142 = vld [vmem:[%s843 + $0x68] sm:$0xff]
        %v2143 = vld [vmem:[%s843 + $0x70] sm:$0xff]
        %v2144 = vld [vmem:[%s843 + $0x78] sm:$0xff]
        %v2145 = vld [vmem:[%s847] sm:$0x3]
        %v2147 = vperm.slane %v2145, 0
        %v2148 = vperm.slane %v2145, 1
        %v2167 = vunpack.c.l.b16 %v2129
        %v2168 = vunpack.c.h.b16 %v2129
        %v2169 = vunpack.c.l.b16 %v2130
        %v2170 = vunpack.c.h.b16 %v2130
        %v2171 = vunpack.c.l.b16 %v2131
        %v2172 = vunpack.c.h.b16 %v2131
        %v2173 = vunpack.c.l.b16 %v2132
        %v2174 = vunpack.c.h.b16 %v2132
        %v2175 = vunpack.c.l.b16 %v2133
        %v2176 = vunpack.c.h.b16 %v2133
        %v2177 = vunpack.c.l.b16 %v2134
        %v2178 = vunpack.c.h.b16 %v2134
        %v2179 = vunpack.c.l.b16 %v2135
        %v2180 = vunpack.c.h.b16 %v2135
        %v2181 = vunpack.c.l.b16 %v2136
        %v2182 = vunpack.c.h.b16 %v2136
        %v2183 = vunpack.c.l.b16 %v2137
        %v2184 = vunpack.c.h.b16 %v2137
        %v2185 = vunpack.c.l.b16 %v2138
        %v2186 = vunpack.c.h.b16 %v2138
        %v2187 = vunpack.c.l.b16 %v2139
        %v2188 = vunpack.c.h.b16 %v2139
        %v2189 = vunpack.c.l.b16 %v2140
        %v2190 = vunpack.c.h.b16 %v2140
        %v2191 = vunpack.c.l.b16 %v2141
        %v2192 = vunpack.c.h.b16 %v2141
        %v2193 = vunpack.c.l.b16 %v2142
        %v2194 = vunpack.c.h.b16 %v2142
        %v2195 = vunpack.c.l.b16 %v2143
        %v2196 = vunpack.c.h.b16 %v2143
        %v2197 = vunpack.c.l.b16 %v2144
        %v2198 = vunpack.c.h.b16 %v2144
        %v2199 = vpack.c.b16 %v2169, %v2167
        %v2200 = vpack.c.b16 %v2170, %v2168
        %v2201 = vpack.c.b16 %v2173, %v2171
        %v2202 = vpack.c.b16 %v2174, %v2172
        %v2203 = vpack.c.b16 %v2177, %v2175
        %v2204 = vpack.c.b16 %v2178, %v2176
        %v2205 = vpack.c.b16 %v2181, %v2179
        %v2206 = vpack.c.b16 %v2182, %v2180
        %v2207 = vpack.c.b16 %v2185, %v2183
        %v2208 = vpack.c.b16 %v2186, %v2184
        %v2209 = vpack.c.b16 %v2189, %v2187
        %v2210 = vpack.c.b16 %v2190, %v2188
        %v2211 = vpack.c.b16 %v2193, %v2191
        %v2212 = vpack.c.b16 %v2194, %v2192
        %v2213 = vpack.c.b16 %v2197, %v2195
        %v2214 = vpack.c.b16 %v2198, %v2196
        %2231 = vmatpush.bf16.msra.mxu0 %v2213
        %2232 = vmatpush.bf16.msra.mxu0 %v2211
        %2233 = vmatpush.bf16.msra.mxu0 %v2209
        %2234 = vmatpush.bf16.msra.mxu0 %v2207
        %2235 = vmatpush.bf16.msra.mxu0 %v2205
        %2236 = vmatpush.bf16.msra.mxu0 %v2203
        %2237 = vmatpush.bf16.msra.mxu0 %v2201
        %2238 = vmatpush.bf16.msra.mxu0 %v2199
        %2239 = vmatmul.bf16.gmra.mxu0 %v2127
        %v2240 = vpop.f32.mrf.mxu0
        %v2241 = vadd.f32 %v2147, %v2240
        %v2242 = vpop.f32.mrf.mxu0
        %v2243 = vadd.f32 %v2147, %v2242
        %2244 = vmatmul.bf16.gmra.mxu0 %v2128
        %v2245 = vpop.f32.mrf.mxu0
        %v2246 = vadd.f32 %v2147, %v2245
        %v2247 = vpop.f32.mrf.mxu0
        %v2248 = vadd.f32 %v2147, %v2247
        %2249 = vdwg.mxu0
        %2250 = vmatpush.bf16.msra.mxu0 %v2214
        %2251 = vmatpush.bf16.msra.mxu0 %v2212
        %2252 = vmatpush.bf16.msra.mxu0 %v2210
        %2253 = vmatpush.bf16.msra.mxu0 %v2208
        %2254 = vmatpush.bf16.msra.mxu0 %v2206
        %2255 = vmatpush.bf16.msra.mxu0 %v2204
        %2256 = vmatpush.bf16.msra.mxu0 %v2202
        %2257 = vmatpush.bf16.msra.mxu0 %v2200
        %2258 = vmatmul.bf16.gmra.mxu0 %v2127
        %v2259 = vpop.f32.mrf.mxu0
        %v2260 = vadd.f32 %v2148, %v2259
        %v2261 = vpop.f32.mrf.mxu0
        %v2262 = vadd.f32 %v2148, %v2261
        %2263 = vmatmul.bf16.gmra.mxu0 %v2128
        %v2264 = vpop.f32.mrf.mxu0
        %v2265 = vadd.f32 %v2148, %v2264
        %v2266 = vpop.f32.mrf.mxu0
        %v2267 = vadd.f32 %v2148, %v2266
        %2268 = vdwg.mxu0
        %v2269 = vmul.f32 %v2241, 0.5
        %v2270 = vmul.f32 %v2260, 0.5
        %v2271 = vmul.f32 %v2243, 0.5
        %v2272 = vmul.f32 %v2262, 0.5
        %v2273 = vmul.f32 %v2246, 0.5
        %v2274 = vmul.f32 %v2265, 0.5
        %v2275 = vmul.f32 %v2248, 0.5
        %v2276 = vmul.f32 %v2267, 0.5
        %v2277 = vmul.f32 %v2241, 0.044715
        %v2278 = vmul.f32 %v2260, 0.044715
        %v2279 = vmul.f32 %v2243, 0.044715
        %v2280 = vmul.f32 %v2262, 0.044715
        %v2281 = vmul.f32 %v2246, 0.044715
        %v2282 = vmul.f32 %v2265, 0.044715
        %v2283 = vmul.f32 %v2248, 0.044715
        %v2284 = vmul.f32 %v2267, 0.044715
        %v2285 = vmul.f32 %v2277, %v2241
        %v2286 = vmul.f32 %v2278, %v2260
        %v2287 = vmul.f32 %v2279, %v2243
        %v2288 = vmul.f32 %v2280, %v2262
        %v2289 = vmul.f32 %v2281, %v2246
        %v2290 = vmul.f32 %v2282, %v2265
        %v2291 = vmul.f32 %v2283, %v2248
        %v2292 = vmul.f32 %v2284, %v2267
        %v2293 = vmul.f32 %v2285, %v2241
        %v2294 = vmul.f32 %v2286, %v2260
        %v2295 = vmul.f32 %v2287, %v2243
        %v2296 = vmul.f32 %v2288, %v2262
        %v2297 = vmul.f32 %v2289, %v2246
        %v2298 = vmul.f32 %v2290, %v2265
        %v2299 = vmul.f32 %v2291, %v2248
        %v2300 = vmul.f32 %v2292, %v2267
        %v2301 = vadd.f32 %v2241, %v2293
        %v2302 = vadd.f32 %v2260, %v2294
        %v2303 = vadd.f32 %v2243, %v2295
        %v2304 = vadd.f32 %v2262, %v2296
        %v2305 = vadd.f32 %v2246, %v2297
        %v2306 = vadd.f32 %v2265, %v2298
        %v2307 = vadd.f32 %v2248, %v2299
        %v2308 = vadd.f32 %v2267, %v2300
        %v2309 = vmul.f32 %v2301, 0.7978846
        %v2310 = vmul.f32 %v2302, 0.7978846
        %v2311 = vmul.f32 %v2303, 0.7978846
        %v2312 = vmul.f32 %v2304, 0.7978846
        %v2313 = vmul.f32 %v2305, 0.7978846
        %v2314 = vmul.f32 %v2306, 0.7978846
        %v2315 = vmul.f32 %v2307, 0.7978846
        %v2316 = vmul.f32 %v2308, 0.7978846
        %v2317 = vtanh.pop %v2309
        %v2318 = vtanh.pop %v2310
        %v2319 = vtanh.pop %v2311
        %v2320 = vtanh.pop %v2312
        %v2321 = vtanh.pop %v2313
        %v2322 = vtanh.pop %v2314
        %v2323 = vtanh.pop %v2315
        %v2324 = vtanh.pop %v2316
        %v2325 = vadd.f32 %v2317, 1.0
        %v2326 = vadd.f32 %v2318, 1.0
        %v2327 = vadd.f32 %v2319, 1.0
        %v2328 = vadd.f32 %v2320, 1.0
        %v2329 = vadd.f32 %v2321, 1.0
        %v2330 = vadd.f32 %v2322, 1.0
        %v2331 = vadd.f32 %v2323, 1.0
        %v2332 = vadd.f32 %v2324, 1.0
        %v2333 = vmul.f32 %v2269, %v2325
        %v2334 = vmul.f32 %v2270, %v2326
        %v2335 = vmul.f32 %v2271, %v2327
        %v2336 = vmul.f32 %v2272, %v2328
        %v2337 = vmul.f32 %v2273, %v2329
        %v2338 = vmul.f32 %v2274, %v2330
        %v2339 = vmul.f32 %v2275, %v2331
        %v2340 = vmul.f32 %v2276, %v2332
        %v2341 = vpack.c.bf16 %v2335, %v2333
        %v2342 = vpack.c.bf16 %v2336, %v2334
        %v2343 = vpack.c.bf16 %v2339, %v2337
        %v2344 = vpack.c.bf16 %v2340, %v2338
        %v2345 = vld [vmem:[%s732] sm:$0xf]
        %v2346 = vld [vmem:[%s732 + $0x4] sm:$0xf]
        %v2347 = vld [vmem:[%s732 + $0x8] sm:$0xf]
        %v2348 = vld [vmem:[%s732 + $0xc] sm:$0xf]
        %v2349 = vld [vmem:[%s732 + $0x10] sm:$0xf]
        %v2350 = vld [vmem:[%s732 + $0x14] sm:$0xf]
        %v2351 = vld [vmem:[%s732 + $0x18] sm:$0xf]
        %v2352 = vld [vmem:[%s732 + $0x1c] sm:$0xf]
        %v2353 = vld [vmem:[%s732 + $0x20] sm:$0xf]
        %v2354 = vld [vmem:[%s732 + $0x24] sm:$0xf]
        %v2355 = vld [vmem:[%s732 + $0x28] sm:$0xf]
        %v2356 = vld [vmem:[%s732 + $0x2c] sm:$0xf]
        %v2357 = vld [vmem:[%s732 + $0x30] sm:$0xf]
        %v2358 = vld [vmem:[%s732 + $0x34] sm:$0xf]
        %v2359 = vld [vmem:[%s732 + $0x38] sm:$0xf]
        %v2360 = vld [vmem:[%s732 + $0x3c] sm:$0xf]
        %v2361 = vld [vmem:[%s732 + $0x40] sm:$0xf]
        %v2362 = vld [vmem:[%s732 + $0x44] sm:$0xf]
        %v2363 = vld [vmem:[%s732 + $0x48] sm:$0xf]
        %v2364 = vld [vmem:[%s732 + $0x4c] sm:$0xf]
        %v2365 = vld [vmem:[%s732 + $0x50] sm:$0xf]
        %v2366 = vld [vmem:[%s732 + $0x54] sm:$0xf]
        %v2367 = vld [vmem:[%s732 + $0x58] sm:$0xf]
        %v2368 = vld [vmem:[%s732 + $0x5c] sm:$0xf]
        %v2369 = vld [vmem:[%s732 + $0x60] sm:$0xf]
        %v2370 = vld [vmem:[%s732 + $0x64] sm:$0xf]
        %v2371 = vld [vmem:[%s732 + $0x68] sm:$0xf]
        %v2372 = vld [vmem:[%s732 + $0x6c] sm:$0xf]
        %v2373 = vld [vmem:[%s732 + $0x70] sm:$0xf]
        %v2374 = vld [vmem:[%s732 + $0x74] sm:$0xf]
        %v2375 = vld [vmem:[%s732 + $0x78] sm:$0xf]
        %v2376 = vld [vmem:[%s732 + $0x7c] sm:$0xf]
        %v2377 = vld [vmem:[%s850] sm:$0x1]
        %v2379 = vperm.slane %v2377, 0
        %v2413 = vunpack.c.l.b16 %v2345
        %v2414 = vunpack.c.l.b16 %v2346
        %v2415 = vunpack.c.l.b16 %v2347
        %v2416 = vunpack.c.l.b16 %v2348
        %v2417 = vunpack.c.l.b16 %v2349
        %v2418 = vunpack.c.l.b16 %v2350
        %v2419 = vunpack.c.l.b16 %v2351
        %v2420 = vunpack.c.l.b16 %v2352
        %v2421 = vunpack.c.l.b16 %v2353
        %v2422 = vunpack.c.l.b16 %v2354
        %v2423 = vunpack.c.l.b16 %v2355
        %v2424 = vunpack.c.l.b16 %v2356
        %v2425 = vunpack.c.l.b16 %v2357
        %v2426 = vunpack.c.l.b16 %v2358
        %v2427 = vunpack.c.l.b16 %v2359
        %v2428 = vunpack.c.l.b16 %v2360
        %v2429 = vunpack.c.l.b16 %v2361
        %v2430 = vunpack.c.l.b16 %v2362
        %v2431 = vunpack.c.l.b16 %v2363
        %v2432 = vunpack.c.l.b16 %v2364
        %v2433 = vunpack.c.l.b16 %v2365
        %v2434 = vunpack.c.l.b16 %v2366
        %v2435 = vunpack.c.l.b16 %v2367
        %v2436 = vunpack.c.l.b16 %v2368
        %v2437 = vunpack.c.l.b16 %v2369
        %v2438 = vunpack.c.l.b16 %v2370
        %v2439 = vunpack.c.l.b16 %v2371
        %v2440 = vunpack.c.l.b16 %v2372
        %v2441 = vunpack.c.l.b16 %v2373
        %v2442 = vunpack.c.l.b16 %v2374
        %v2443 = vunpack.c.l.b16 %v2375
        %v2444 = vunpack.c.l.b16 %v2376
        %v2445 = vpack.c.b16 %v2414, %v2413
        %v2446 = vpack.c.b16 %v2416, %v2415
        %v2447 = vpack.c.b16 %v2418, %v2417
        %v2448 = vpack.c.b16 %v2420, %v2419
        %v2449 = vpack.c.b16 %v2422, %v2421
        %v2450 = vpack.c.b16 %v2424, %v2423
        %v2451 = vpack.c.b16 %v2426, %v2425
        %v2452 = vpack.c.b16 %v2428, %v2427
        %v2453 = vpack.c.b16 %v2430, %v2429
        %v2454 = vpack.c.b16 %v2432, %v2431
        %v2455 = vpack.c.b16 %v2434, %v2433
        %v2456 = vpack.c.b16 %v2436, %v2435
        %v2457 = vpack.c.b16 %v2438, %v2437
        %v2458 = vpack.c.b16 %v2440, %v2439
        %v2459 = vpack.c.b16 %v2442, %v2441
        %v2460 = vpack.c.b16 %v2444, %v2443
        %2477 = vmatpush.bf16.msra.mxu0 %v2452
        %2478 = vmatpush.bf16.msra.mxu0 %v2451
        %2479 = vmatpush.bf16.msra.mxu0 %v2450
        %2480 = vmatpush.bf16.msra.mxu0 %v2449
        %2481 = vmatpush.bf16.msra.mxu0 %v2448
        %2482 = vmatpush.bf16.msra.mxu0 %v2447
        %2483 = vmatpush.bf16.msra.mxu0 %v2446
        %2484 = vmatpush.bf16.msra.mxu0 %v2445
        %2485 = vmatmul.bf16.gmra.mxu0 %v2341
        %v2486 = vpop.f32.mrf.mxu0
        %v2487 = vadd.f32 %v2379, %v2486
        %v2488 = vpop.f32.mrf.mxu0
        %v2489 = vadd.f32 %v2379, %v2488
        %2490 = vmatmul.bf16.gmra.mxu0 %v2343
        %v2491 = vpop.f32.mrf.mxu0
        %v2492 = vadd.f32 %v2379, %v2491
        %v2493 = vpop.f32.mrf.mxu0
        %v2494 = vadd.f32 %v2379, %v2493
        %2495 = vdwg.mxu0
        %2496 = vmatpush.bf16.msra.mxu0 %v2460
        %2497 = vmatpush.bf16.msra.mxu0 %v2459
        %2498 = vmatpush.bf16.msra.mxu0 %v2458
        %2499 = vmatpush.bf16.msra.mxu0 %v2457
        %2500 = vmatpush.bf16.msra.mxu0 %v2456
        %2501 = vmatpush.bf16.msra.mxu0 %v2455
        %2502 = vmatpush.bf16.msra.mxu0 %v2454
        %2503 = vmatpush.bf16.msra.mxu0 %v2453
        %2504 = vmatmul.bf16.gmra.mxu0 %v2342
        %v2505 = vpop.f32.mrf.mxu0
        %v2506 = vadd.f32 %v2487, %v2505
        %v2507 = vpop.f32.mrf.mxu0
        %v2508 = vadd.f32 %v2489, %v2507
        %2509 = vmatmul.bf16.gmra.mxu0 %v2344
        %v2510 = vpop.f32.mrf.mxu0
        %v2511 = vadd.f32 %v2492, %v2510
        %v2512 = vpop.f32.mrf.mxu0
        %v2513 = vadd.f32 %v2494, %v2512
        %2514 = vdwg.mxu0
        %v2515 = vadd.f32 %v2506, %v2123
        %v2516 = vadd.f32 %v2508, %v2124
        %v2517 = vadd.f32 %v2511, %v2125
        %v2518 = vadd.f32 %v2513, %v2126
        %v2519 = vld [vmem:[%s853] sm:$0x1]
        %v2520 = vld [vmem:[%s856] sm:$0x1]
        %2521 = vadd.xlane.f32.xlu0 %v2515
        %v2522 = vpop.xlane.xlu0 %2521
        %2523 = vadd.xlane.f32.xlu0 %v2516
        %v2524 = vpop.xlane.xlu0 %2523
        %2525 = vadd.xlane.f32.xlu0 %v2517
        %v2526 = vpop.xlane.xlu0 %2525
        %2527 = vadd.xlane.f32.xlu0 %v2518
        %v2528 = vpop.xlane.xlu0 %2527
        %v2529 = vmul.f32 %v2522, %v2040
        %v2530 = vmul.f32 %v2524, %v2040
        %v2531 = vmul.f32 %v2526, %v2040
        %v2532 = vmul.f32 %v2528, %v2040
        %v2533 = vsub.f32 %v2515, %v2529
        %v2534 = vsub.f32 %v2516, %v2530
        %v2535 = vsub.f32 %v2517, %v2531
        %v2536 = vsub.f32 %v2518, %v2532
        %v2537 = vmul.f32 %v2533, %v2533
        %v2538 = vmul.f32 %v2534, %v2534
        %v2539 = vmul.f32 %v2535, %v2535
        %v2540 = vmul.f32 %v2536, %v2536
        %2541 = vadd.xlane.f32.xlu0 %v2537
        %v2542 = vpop.xlane.xlu0 %2541
        %2543 = vadd.xlane.f32.xlu0 %v2538
        %v2544 = vpop.xlane.xlu0 %2543
        %2545 = vadd.xlane.f32.xlu0 %v2539
        %v2546 = vpop.xlane.xlu0 %2545
        %2547 = vadd.xlane.f32.xlu0 %v2540
        %v2548 = vpop.xlane.xlu0 %2547
        %v2549 = vmul.f32 %v2542, %v2040
        %v2550 = vmul.f32 %v2544, %v2040
        %v2551 = vmul.f32 %v2546, %v2040
        %v2552 = vmul.f32 %v2548, %v2040
        %v2553 = vadd.f32 %v2549, 1e-12
        %v2554 = vadd.f32 %v2550, 1e-12
        %v2555 = vadd.f32 %v2551, 1e-12
        %v2556 = vadd.f32 %v2552, 1e-12
        %v2557 = vrsqrt.pop %v2553
        %v2558 = vmul.f32 %v2557, %v2553
        %v2559 = vmul.f32 %v2558, %v2557
        %v2560 = vmul.f32 0.5, %v2559
        %v2561 = vsub.f32 1.5, %v2560
        %v2562 = vmul.f32 %v2557, %v2561
        %vm2563 = vweird.f32 %v2553
        %vm2564 = vweird.f32 %v2557
        %vm2565 = vmor %vm2563, %vm2564
        %v2566 = vsel %vm2565, %v2557, %v2562
        %v2567 = vrsqrt.pop %v2554
        %v2568 = vmul.f32 %v2567, %v2554
        %v2569 = vmul.f32 %v2568, %v2567
        %v2570 = vmul.f32 0.5, %v2569
        %v2571 = vsub.f32 1.5, %v2570
        %v2572 = vmul.f32 %v2567, %v2571
        %vm2573 = vweird.f32 %v2554
        %vm2574 = vweird.f32 %v2567
        %vm2575 = vmor %vm2573, %vm2574
        %v2576 = vsel %vm2575, %v2567, %v2572
        %v2577 = vrsqrt.pop %v2555
        %v2578 = vmul.f32 %v2577, %v2555
        %v2579 = vmul.f32 %v2578, %v2577
        %v2580 = vmul.f32 0.5, %v2579
        %v2581 = vsub.f32 1.5, %v2580
        %v2582 = vmul.f32 %v2577, %v2581
        %vm2583 = vweird.f32 %v2555
        %vm2584 = vweird.f32 %v2577
        %vm2585 = vmor %vm2583, %vm2584
        %v2586 = vsel %vm2585, %v2577, %v2582
        %v2587 = vrsqrt.pop %v2556
        %v2588 = vmul.f32 %v2587, %v2556
        %v2589 = vmul.f32 %v2588, %v2587
        %v2590 = vmul.f32 0.5, %v2589
        %v2591 = vsub.f32 1.5, %v2590
        %v2592 = vmul.f32 %v2587, %v2591
        %vm2593 = vweird.f32 %v2556
        %vm2594 = vweird.f32 %v2587
        %vm2595 = vmor %vm2593, %vm2594
        %v2596 = vsel %vm2595, %v2587, %v2592
        %v2597 = vmul.f32 %v2533, %v2566
        %v2598 = vmul.f32 %v2534, %v2576
        %v2599 = vmul.f32 %v2535, %v2586
        %v2600 = vmul.f32 %v2536, %v2596
        %v2602 = vperm.slane %v2519, 0
        %v2604 = vmul.f32 %v2597, %v2602
        %v2605 = vmul.f32 %v2598, %v2602
        %v2606 = vmul.f32 %v2599, %v2602
        %v2607 = vmul.f32 %v2600, %v2602
        %v2609 = vperm.slane %v2520, 0
        %v2611 = vadd.f32 %v2604, %v2609
        %v2612 = vadd.f32 %v2605, %v2609
        %v2613 = vadd.f32 %v2606, %v2609
        %v2614 = vadd.f32 %v2607, %v2609
        %2615 = vst [vmem:[#allocation2] sm:$0xff] %v2611
        %2616 = vst [vmem:[#allocation2 + $0x8] sm:$0xff] %v2612
        %2617 = vst [vmem:[#allocation2 + $0x10] sm:$0xff] %v2613
        %2618 = vst [vmem:[#allocation2 + $0x18] sm:$0xff] %v2614
        %p2619 = scmp.eq.s32.totalorder %s38, 1
        // Predicated region
        $region117: #{sentiment_classifier_forward.1} parent=99 // pred_check
          %p2620 = pneg %p2619
        $region118: #{sentiment_classifier_forward.1} parent=99 // pred_check_branch
          %2622 = sbr.rel (%p2620) target = $region120
        $region119: #{sentiment_classifier_forward.1} parent=99 // pred_region
          %v2624 = vrot.slane %v2613, 7
          %vm2626 = vcmask 1040384
          %v2627 = vsel %vm2626, %v2611, %v2624
          %v2628 = vpack.c.bf16 %v2627, %v2627
          %v2629 = vld [vmem:[%s16] sm:$0xf]
          %v2630 = vld [vmem:[%s16 + $0x4] sm:$0xf]
          %v2631 = vld [vmem:[%s16 + $0x8] sm:$0xf]
          %v2632 = vld [vmem:[%s16 + $0xc] sm:$0xf]
          %v2633 = vld [vmem:[%s16 + $0x10] sm:$0xf]
          %v2634 = vld [vmem:[%s16 + $0x14] sm:$0xf]
          %v2635 = vld [vmem:[%s16 + $0x18] sm:$0xf]
          %v2636 = vld [vmem:[%s16 + $0x1c] sm:$0xf]
          %v2637 = vld [vmem:[%s16 + $0x20] sm:$0xf]
          %v2638 = vld [vmem:[%s16 + $0x24] sm:$0xf]
          %v2639 = vld [vmem:[%s16 + $0x28] sm:$0xf]
          %v2640 = vld [vmem:[%s16 + $0x2c] sm:$0xf]
          %v2641 = vld [vmem:[%s16 + $0x30] sm:$0xf]
          %v2642 = vld [vmem:[%s16 + $0x34] sm:$0xf]
          %v2643 = vld [vmem:[%s16 + $0x38] sm:$0xf]
          %v2644 = vld [vmem:[%s16 + $0x3c] sm:$0xf]
          %v2645 = vld [vmem:[%s17] sm:$0x1]
          %v2647 = vperm.slane %v2645, 0
          %v2665 = vunpack.c.l.b16 %v2629
          %v2666 = vunpack.c.l.b16 %v2630
          %v2667 = vunpack.c.l.b16 %v2631
          %v2668 = vunpack.c.l.b16 %v2632
          %v2669 = vunpack.c.l.b16 %v2633
          %v2670 = vunpack.c.l.b16 %v2634
          %v2671 = vunpack.c.l.b16 %v2635
          %v2672 = vunpack.c.l.b16 %v2636
          %v2673 = vunpack.c.l.b16 %v2637
          %v2674 = vunpack.c.l.b16 %v2638
          %v2675 = vunpack.c.l.b16 %v2639
          %v2676 = vunpack.c.l.b16 %v2640
          %v2677 = vunpack.c.l.b16 %v2641
          %v2678 = vunpack.c.l.b16 %v2642
          %v2679 = vunpack.c.l.b16 %v2643
          %v2680 = vunpack.c.l.b16 %v2644
          %v2681 = vpack.c.b16 %v2666, %v2665
          %v2682 = vpack.c.b16 %v2668, %v2667
          %v2683 = vpack.c.b16 %v2670, %v2669
          %v2684 = vpack.c.b16 %v2672, %v2671
          %v2685 = vpack.c.b16 %v2674, %v2673
          %v2686 = vpack.c.b16 %v2676, %v2675
          %v2687 = vpack.c.b16 %v2678, %v2677
          %v2688 = vpack.c.b16 %v2680, %v2679
          %2697 = vmatpush.bf16.msra.mxu0 %v2688
          %2698 = vmatpush.bf16.msra.mxu0 %v2687
          %2699 = vmatpush.bf16.msra.mxu0 %v2686
          %2700 = vmatpush.bf16.msra.mxu0 %v2685
          %2701 = vmatpush.bf16.msra.mxu0 %v2684
          %2702 = vmatpush.bf16.msra.mxu0 %v2683
          %2703 = vmatpush.bf16.msra.mxu0 %v2682
          %2704 = vmatpush.bf16.msra.mxu0 %v2681
          %2705 = vmatmul.bf16.gmra.mxu0 %v2628
          %v2706 = vpop.f32.mrf.mxu0
          %v2707 = vadd.f32 %v2647, %v2706
          %v2708 = vpop.f32.mrf.mxu0
          %2709 = vdwg.mxu0
          %v2710 = vtanh.pop %v2707
          %v2711 = vpack.c.bf16 %v2710, %v2710
          %v2712 = vld [vmem:[%s18] sm:$0xf]
          %v2713 = vld [vmem:[%s18 + $0x4] sm:$0xf]
          %v2714 = vld [vmem:[%s18 + $0x8] sm:$0xf]
          %v2715 = vld [vmem:[%s18 + $0xc] sm:$0xf]
          %v2716 = vld [vmem:[%s18 + $0x10] sm:$0xf]
          %v2717 = vld [vmem:[%s18 + $0x14] sm:$0xf]
          %v2718 = vld [vmem:[%s18 + $0x18] sm:$0xf]
          %v2719 = vld [vmem:[%s18 + $0x1c] sm:$0xf]
          %v2720 = vld [vmem:[%s18 + $0x20] sm:$0xf]
          %v2721 = vld [vmem:[%s18 + $0x24] sm:$0xf]
          %v2722 = vld [vmem:[%s18 + $0x28] sm:$0xf]
          %v2723 = vld [vmem:[%s18 + $0x2c] sm:$0xf]
          %v2724 = vld [vmem:[%s18 + $0x30] sm:$0xf]
          %v2725 = vld [vmem:[%s18 + $0x34] sm:$0xf]
          %v2726 = vld [vmem:[%s18 + $0x38] sm:$0xf]
          %v2727 = vld [vmem:[%s18 + $0x3c] sm:$0xf]
          %v2728 = vld [vmem:[%s19] sm:$0x1]
          %v2730 = vperm.slane %v2728, 0
          %v2748 = vunpack.c.l.b16 %v2712
          %v2749 = vunpack.c.l.b16 %v2713
          %v2750 = vunpack.c.l.b16 %v2714
          %v2751 = vunpack.c.l.b16 %v2715
          %v2752 = vunpack.c.l.b16 %v2716
          %v2753 = vunpack.c.l.b16 %v2717
          %v2754 = vunpack.c.l.b16 %v2718
          %v2755 = vunpack.c.l.b16 %v2719
          %v2756 = vunpack.c.l.b16 %v2720
          %v2757 = vunpack.c.l.b16 %v2721
          %v2758 = vunpack.c.l.b16 %v2722
          %v2759 = vunpack.c.l.b16 %v2723
          %v2760 = vunpack.c.l.b16 %v2724
          %v2761 = vunpack.c.l.b16 %v2725
          %v2762 = vunpack.c.l.b16 %v2726
          %v2763 = vunpack.c.l.b16 %v2727
          %v2764 = vpack.c.b16 %v2749, %v2748
          %v2765 = vpack.c.b16 %v2751, %v2750
          %v2766 = vpack.c.b16 %v2753, %v2752
          %v2767 = vpack.c.b16 %v2755, %v2754
          %v2768 = vpack.c.b16 %v2757, %v2756
          %v2769 = vpack.c.b16 %v2759, %v2758
          %v2770 = vpack.c.b16 %v2761, %v2760
          %v2771 = vpack.c.b16 %v2763, %v2762
          %2780 = vmatpush.bf16.msra.mxu0 %v2771
          %2781 = vmatpush.bf16.msra.mxu0 %v2770
          %2782 = vmatpush.bf16.msra.mxu0 %v2769
          %2783 = vmatpush.bf16.msra.mxu0 %v2768
          %2784 = vmatpush.bf16.msra.mxu0 %v2767
          %2785 = vmatpush.bf16.msra.mxu0 %v2766
          %2786 = vmatpush.bf16.msra.mxu0 %v2765
          %2787 = vmatpush.bf16.msra.mxu0 %v2764
          %2788 = vmatmul.bf16.gmra.mxu0 %v2711
          %v2789 = vpop.f32.mrf.mxu0
          %v2790 = vadd.f32 %v2730, %v2789
          %v2791 = vpop.f32.mrf.mxu0
          %2792 = vdwg.mxu0
          %2793 = vst [vmem:[#allocation10] sm:$0x3] %v2790
        $region120: #{sentiment_classifier_forward.1} parent=99 // pred_fallthru
          _
        // Predicated region
        $region121: #{sentiment_classifier_forward.1} parent=99 // pred_check
          %p2794 = pneg %p531
        $region122: #{sentiment_classifier_forward.1} parent=99 // pred_check_branch
          %2796 = sbr.rel (%p2794) target = $region124
        $region123: #{sentiment_classifier_forward.1} parent=99 // pred_region
          %2798 = vsyncadd [#allocation6], 0
          %s2800 = sshll.u32 [#allocation10], 4
          %s2801 = int_to_ptr.vmem [resolvable:$true] %s2800
          %s2802 = sshll.u32 %s20, 4
          %s2803 = int_to_ptr.hbm [resolvable:$true] %s2802
          %2805 = dma.vmem_to_hbm [thread:$0]  %s2801, 32, %s2803, [#allocation6]
        $region124: #{sentiment_classifier_forward.1} parent=99 // pred_fallthru
          _
        // Predicated region
        $region125: #{sentiment_classifier_forward.1} parent=99 // pred_check
          %p2806 = pneg %p531
        $region126: #{sentiment_classifier_forward.1} parent=99 // pred_check_branch
          %2808 = sbr.rel (%p2806) target = $region128
        $region127: #{sentiment_classifier_forward.1} parent=99 // pred_region
          %2810 = dma.done [#allocation6], 32
        $region128: #{sentiment_classifier_forward.1} parent=99 // pred_fallthru
          _
      $region100: #{sentiment_classifier_forward.1} parent=5 // pred_fallthru
        _
      %p2811 = scmp.le.s32.totalorder 2, %s33
      // Predicated region
      $region129: #{sentiment_classifier_forward.1} parent=5 // pred_check
        %p2812 = pneg %p2811
      $region130: #{sentiment_classifier_forward.1} parent=5 // pred_check_branch
        %2814 = sbr.rel (%p2812) target = $region132
      $region131: #{sentiment_classifier_forward.1} parent=5 // pred_region
        %s2815 = ssub.s32 %s33, 2
      $region132: #{sentiment_classifier_forward.1} parent=5 // pred_fallthru
        _
    $region6: #{sentiment_classifier_forward.1} parent=1 // loop_footer
      %s37 = sadd.s32 1, %s33
    $region7: #{sentiment_classifier_forward.1} parent=1 // loop_footer_branch
      %32 = sbr.rel target = $region3
    $region8: #{sentiment_classifier_forward.1} parent=1 // loop_exit
      _
    %2816 = vsyncpa [#allocation5], 1
    %s2817 = scalar_lea.sflag [#allocation5], 1
    %2818 = vsyncpa %s2817, 1
    %2819 = vsyncpa [#allocation8], 1
    %s2820 = scalar_lea.sflag [#allocation8], 1
    %2821 = vsyncpa %s2820, 1
    %2822 = vsyncpa [#allocation6], 1
    %s2823 = scalar_lea.sflag [#allocation6], 1
    %2824 = vsyncpa %s2823, 1

</llo_original>
